<compile_context>
chip_gen: v6e
topology: v6e:2x2x1
jax: 0.10.0
libtpu: 0.0.40
codegen_flags: <defaults>
</compile_context>

<pallas_src>
import functools

import jax
import jax.numpy as jnp
from jax.experimental import pallas as pl
from jax.experimental.pallas import tpu as pltpu


def _round_up(x, m):
    return (x + m - 1) // m * m


def _bottleneck_kernel(*refs, H, W, stride, has_downsample, cdt, pad_l):
    if has_downsample:
        (x_ref, w1_ref, s1_ref, b1_ref, w2_ref, s2_ref, b2_ref,
         w3_ref, s3_ref, b3_ref, wd_ref, sd_ref, bd_ref,
         out_ref, y1p_ref) = refs
    else:
        (x_ref, w1_ref, s1_ref, b1_ref, w2_ref, s2_ref, b2_ref,
         w3_ref, s3_ref, b3_ref, out_ref, y1p_ref) = refs
        wd_ref = sd_ref = bd_ref = None

    c_in = x_ref.shape[-1]
    c_mid = w1_ref.shape[-1]
    c_out = w3_ref.shape[-1]
    w_slab = y1p_ref.shape[1]
    ho = (H - 1) // stride + 1
    wo = (W - 1) // stride + 1

    # ---- Stage 1: 1x1 reduce conv + BN + ReLU (result stays in VMEM) -------
    xm = x_ref[0].reshape(H * W, c_in)                       # bf16
    a1 = jnp.dot(xm, w1_ref[...], preferred_element_type=jnp.float32)
    y1 = jnp.maximum(a1 * s1_ref[...] + b1_ref[...], 0.0)    # f32

    # ---- Stage 2: 3x3 conv (padding=1, stride) ------------------------------
    # Refresh only the zero halo (small aligned strips); the interior is fully
    # rewritten below.  Re-zeroing per step stays correct under megacore
    # "parallel" grid partitioning (no reliance on program_id == 0).
    y1p_ref[0:1, :, :] = jnp.zeros((1, w_slab, c_mid), cdt)
    y1p_ref[H + 1:H + 2, :, :] = jnp.zeros((1, w_slab, c_mid), cdt)
    y1p_ref[:, pad_l - 8:pad_l, :] = jnp.zeros((H + 2, 8, c_mid), cdt)
    y1p_ref[:, pad_l + W:, :] = jnp.zeros(
        (H + 2, w_slab - pad_l - W, c_mid), cdt)
    # Drop y1 into the slab interior, cast once to the compute dtype.
    y1p_ref[1:H + 1, pad_l:pad_l + W, :] = y1.reshape(H, W, c_mid).astype(cdt)

    # Per ky, concatenate the three kx taps along channels -> K = 3*c_mid
    # (better MXU fill on the 256-deep v6e/v7x arrays); accumulate in f32 and
    # seed the accumulator with the first matmul result.
    acc2 = None
    for dy in range(3):
        taps = []
        for dx in range(3):
            off = pad_l - 1 + dx
            if stride == 1:
                t = y1p_ref[dy:dy + H, off:off + W, :]
            else:
                # TODO(synk): the strided tap path is not exercised by the
                # tests below (stride==1 only); validate before relying on it.
                t = y1p_ref[pl.ds(dy, ho, stride=stride),
                            pl.ds(off, wo, stride=stride), :]
            taps.append(t)
        cat = jnp.concatenate(taps, axis=-1).reshape(ho * wo, 3 * c_mid)
        part = jnp.dot(cat, w2_ref[dy], preferred_element_type=jnp.float32)
        acc2 = part if acc2 is None else acc2 + part
    y2 = jnp.maximum(acc2 * s2_ref[...] + b2_ref[...], 0.0).astype(cdt)

    # ---- Stage 3: 1x1 expand conv + BN, fused residual + ReLU epilogue ------
    a3 = jnp.dot(y2, w3_ref[...], preferred_element_type=jnp.float32)
    out = a3 * s3_ref[...] + b3_ref[...]

    if has_downsample:
        if stride == 1:
            xs = x_ref[0]
        else:
            # TODO(synk): strided downsample read untested (stride==1 tests).
            xs = x_ref[0, pl.ds(0, ho, stride=stride),
                       pl.ds(0, wo, stride=stride), :]
        sc = jnp.dot(xs.reshape(ho * wo, c_in), wd_ref[...],
                     preferred_element_type=jnp.float32)
        sc = sc * sd_ref[...] + bd_ref[...]
    else:
        # Identity shortcut (c_in == c_out, stride == 1): re-read x here so a
        # full-size value is not kept live across all three stages.
        sc = x_ref[0].reshape(H * W, c_in).astype(jnp.float32)

    out = jnp.maximum(out + sc, 0.0)
    out_ref[...] = out.reshape(1, ho, wo, c_out).astype(out_ref.dtype)


def _fold_bn(gamma, beta, mean, var, eps):
    inv = gamma * jax.lax.rsqrt(var + eps)
    return (inv.reshape(1, -1).astype(jnp.float32),
            (beta - mean * inv).reshape(1, -1).astype(jnp.float32))


def _vmem_limit_bytes():
    try:
        cap = int(pltpu.get_tpu_info().vmem_capacity_bytes)
    except Exception:
        cap = 64 * 1024 * 1024       # conservative (v7x per-core capacity)
    return int(min(cap * 3 // 4, 100 * 1024 * 1024))


def bottleneck_forward(x_nchw, params, *, stride=1, eps=1e-5,
                       compute_dtype=jnp.bfloat16):
    """Eval-mode ResNet Bottleneck forward.  x_nchw: (N, C_in, H, W) float32."""
    n, c_in, H, W = x_nchw.shape
    # NCHW -> NHWC once; channels land in the lane dimension.
    # TODO(synk): when chaining blocks, keep activations NHWC/bf16 between
    # blocks instead of converting back to NCHW per block.
    x = jnp.transpose(x_nchw, (0, 2, 3, 1)).astype(compute_dtype)

    w1 = params["conv1_w"]          # (c_mid, c_in, 1, 1)
    w2 = params["conv2_w"]          # (c_mid, c_mid, 3, 3)
    w3 = params["conv3_w"]          # (c_out, c_mid, 1, 1)
    c_mid = w1.shape[0]
    c_out = w3.shape[0]
    ho = (H - 1) // stride + 1
    wo = (W - 1) // stride + 1

    # Weights in (C_in, C_out) layout; 3x3 laid out (ky, 3*c_mid, c_mid) so
    # each ky slice matches the in-kernel [kx=0 | kx=1 | kx=2] channel concat.
    w1p = jnp.transpose(w1[:, :, 0, 0], (1, 0)).astype(compute_dtype)
    w2p = jnp.transpose(w2, (2, 3, 1, 0)).reshape(
        3, 3 * c_mid, c_mid).astype(compute_dtype)
    w3p = jnp.transpose(w3[:, :, 0, 0], (1, 0)).astype(compute_dtype)

    s1, b1 = _fold_bn(params["bn1_gamma"], params["bn1_beta"],
                      params["bn1_mean"], params["bn1_var"], eps)
    s2, b2 = _fold_bn(params["bn2_gamma"], params["bn2_beta"],
                      params["bn2_mean"], params["bn2_var"], eps)
    s3, b3 = _fold_bn(params["bn3_gamma"], params["bn3_beta"],
                      params["bn3_mean"], params["bn3_var"], eps)

    has_downsample = "convd_w" in params

    # Slab geometry: left pad aligned to the packed sublane tile so the big
    # interior store and the center tap read are aligned; >=1 zero column on
    # the right for the conv halo.
    pad_l = 16 if jnp.dtype(compute_dtype).itemsize < 4 else 8
    w_slab = pad_l + _round_up(W + 1, 8)

    const2 = lambda i: (0, 0)
    const3 = lambda i: (0, 0, 0)
    inputs = [x, w1p, s1, b1, w2p, s2, b2, w3p, s3, b3]
    in_specs = [
        pl.BlockSpec((1, H, W, c_in), lambda i: (i, 0, 0, 0)),
        pl.BlockSpec((c_in, c_mid), const2),
        pl.BlockSpec((1, c_mid), const2),
        pl.BlockSpec((1, c_mid), const2),
        pl.BlockSpec((3, 3 * c_mid, c_mid), const3),
        pl.BlockSpec((1, c_mid), const2),
        pl.BlockSpec((1, c_mid), const2),
        pl.BlockSpec((c_mid, c_out), const2),
        pl.BlockSpec((1, c_out), const2),
        pl.BlockSpec((1, c_out), const2),
    ]
    if has_downsample:
        wd = params["convd_w"]
        wdp = jnp.transpose(wd[:, :, 0, 0], (1, 0)).astype(compute_dtype)
        sd, bd = _fold_bn(params["bnd_gamma"], params["bnd_beta"],
                          params["bnd_mean"], params["bnd_var"], eps)
        inputs += [wdp, sd, bd]
        in_specs += [
            pl.BlockSpec((c_in, c_out), const2),
            pl.BlockSpec((1, c_out), const2),
            pl.BlockSpec((1, c_out), const2),
        ]

    kernel = functools.partial(
        _bottleneck_kernel, H=H, W=W, stride=stride,
        has_downsample=has_downsample, cdt=compute_dtype, pad_l=pad_l)

    out_nhwc = pl.pallas_call(
        kernel,
        grid=(n,),
        in_specs=in_specs,
        out_specs=pl.BlockSpec((1, ho, wo, c_out), lambda i: (i, 0, 0, 0)),
        out_shape=jax.ShapeDtypeStruct((n, ho, wo, c_out), compute_dtype),
        scratch_shapes=[pltpu.VMEM((H + 2, w_slab, c_mid), compute_dtype)],
        compiler_params=pltpu.CompilerParams(
            dimension_semantics=("parallel",),
            vmem_limit_bytes=_vmem_limit_bytes()),
    )(*inputs)

    return jnp.transpose(out_nhwc, (0, 3, 1, 2))   # NHWC -> NCHW


# ----------------------------- pure-JAX reference ---------------------------

def _bn_ref(x, gamma, beta, mean, var, eps):
    return (x - mean) * jax.lax.rsqrt(var + eps) * gamma + beta


def _conv_ref(x_nhwc, w_torch, stride, padding):
    w = jnp.transpose(w_torch, (2, 3, 1, 0)).astype(jnp.float32)   # HWIO
    return jax.lax.conv_general_dilated(
        x_nhwc, w, window_strides=(stride, stride),
        padding=[(padding, padding), (padding, padding)],
        dimension_numbers=("NHWC", "HWIO", "NHWC"))


def bottleneck_reference(x_nchw, params, *, stride=1, eps=1e-5):
    x = jnp.transpose(x_nchw, (0, 2, 3, 1)).astype(jnp.float32)
    out = jax.nn.relu(_bn_ref(_conv_ref(x, params["conv1_w"], 1, 0),
                              params["bn1_gamma"], params["bn1_beta"],
                              params["bn1_mean"], params["bn1_var"], eps))
    out = jax.nn.relu(_bn_ref(_conv_ref(out, params["conv2_w"], stride, 1),
                              params["bn2_gamma"], params["bn2_beta"],
                              params["bn2_mean"], params["bn2_var"], eps))
    out = _bn_ref(_conv_ref(out, params["conv3_w"], 1, 0),
                  params["bn3_gamma"], params["bn3_beta"],
                  params["bn3_mean"], params["bn3_var"], eps)
    if "convd_w" in params:
        sc = _bn_ref(_conv_ref(x, params["convd_w"], stride, 0),
                     params["bnd_gamma"], params["bnd_beta"],
                     params["bnd_mean"], params["bnd_var"], eps)
    else:
        sc = x
    return jnp.transpose(jax.nn.relu(out + sc), (0, 3, 1, 2))


def make_bottleneck_params(key, in_planes, planes, stride, expansion=4):
    c_out = expansion * planes
    ks = jax.random.split(key, 8)

    def conv_w(k, co, ci, kh, kw):
        fan_in = ci * kh * kw
        return jax.random.normal(k, (co, ci, kh, kw), jnp.float32) / jnp.sqrt(fan_in)

    def bn_p(k, c, prefix):
        k1, k2, k3, k4 = jax.random.split(k, 4)
        return {
            f"{prefix}_gamma": 1.0 + 0.1 * jax.random.normal(k1, (c,), jnp.float32),
            f"{prefix}_beta": 0.1 * jax.random.normal(k2, (c,), jnp.float32),
            f"{prefix}_mean": 0.1 * jax.random.normal(k3, (c,), jnp.float32),
            f"{prefix}_var": 0.5 + jax.random.uniform(k4, (c,), jnp.float32),
        }

    params = {"conv1_w": conv_w(ks[0], planes, in_planes, 1, 1),
              "conv2_w": conv_w(ks[1], planes, planes, 3, 3),
              "conv3_w": conv_w(ks[2], c_out, planes, 1, 1)}
    params.update(bn_p(ks[3], planes, "bn1"))
    params.update(bn_p(ks[4], planes, "bn2"))
    params.update(bn_p(ks[5], c_out, "bn3"))
    if stride != 1 or in_planes != c_out:
        params["convd_w"] = conv_w(ks[6], c_out, in_planes, 1, 1)
        params.update(bn_p(ks[7], c_out, "bnd"))
    return params


if __name__ == "__main__":
    key = jax.random.PRNGKey(0)
    k1, k2, k3, k4 = jax.random.split(key, 4)

    # Config A: projection shortcut (in_planes != 4 * planes), stride 1.
    n, in_planes, planes, H, W = 2, 16, 16, 16, 16
    x = jax.random.normal(k1, (n, in_planes, H, W), jnp.float32)
    params = make_bottleneck_params(k2, in_planes, planes, stride=1)
    out = jax.block_until_ready(bottleneck_forward(x, params, stride=1))
    ref = bottleneck_reference(x, params, stride=1)
    assert out.shape == ref.shape == (n, 4 * planes, H, W)
    rel = float(jnp.linalg.norm(out.astype(jnp.float32) - ref)
                / (jnp.linalg.norm(ref) + 1e-6))
    assert rel < 3e-2, f"config A relative error too high: {rel}"

    # Config B: identity shortcut (in_planes == 4 * planes), stride 1.
    n_b, planes_b = 1, 8
    in_b = 4 * planes_b
    x_b = jax.random.normal(k3, (n_b, in_b, 16, 16), jnp.float32)
    params_b = make_bottleneck_params(k4, in_b, planes_b, stride=1)
    out_b = jax.block_until_ready(bottleneck_forward(x_b, params_b, stride=1))
    ref_b = bottleneck_reference(x_b, params_b, stride=1)
    rel_b = float(jnp.linalg.norm(out_b.astype(jnp.float32) - ref_b)
                  / (jnp.linalg.norm(ref_b) + 1e-6))
    assert rel_b < 3e-2, f"config B relative error too high: {rel_b}"

    print("KERNEL_OK")
</pallas_src>

<mosaic_0001>
module attributes {stable_mosaic.version = 11 : i64} {
  func.func @_bottleneck_kernel(%arg0: i32, %arg1: memref<1x16x16x16xbf16, #tpu.memory_space<vmem>>, %arg2: memref<16x16xbf16, #tpu.memory_space<vmem>>, %arg3: memref<1x16xf32, #tpu.memory_space<vmem>>, %arg4: memref<1x16xf32, #tpu.memory_space<vmem>>, %arg5: memref<3x48x16xbf16, #tpu.memory_space<vmem>>, %arg6: memref<1x16xf32, #tpu.memory_space<vmem>>, %arg7: memref<1x16xf32, #tpu.memory_space<vmem>>, %arg8: memref<16x64xbf16, #tpu.memory_space<vmem>>, %arg9: memref<1x64xf32, #tpu.memory_space<vmem>>, %arg10: memref<1x64xf32, #tpu.memory_space<vmem>>, %arg11: memref<16x64xbf16, #tpu.memory_space<vmem>>, %arg12: memref<1x64xf32, #tpu.memory_space<vmem>>, %arg13: memref<1x64xf32, #tpu.memory_space<vmem>>, %arg14: memref<1x16x16x64xbf16, #tpu.memory_space<vmem>>, %arg15: memref<18x40x16xbf16, #tpu.memory_space<vmem>>) attributes {dimension_semantics = [#tpu.dimension_semantics<parallel>], iteration_bounds = array<i64: 2>, scalar_prefetch = 0 : i64, scratch_operands = 1 : i64, tpu.core_type = #tpu.core_type<tc>, window_params = [{transform_indices = @transform_0, window_bounds = array<i64: 1, 16, 16, 16>}, {pipeline_mode = #tpu.pipeline_mode<synchronous>, transform_indices = @transform_1, window_bounds = array<i64: 16, 16>}, {pipeline_mode = #tpu.pipeline_mode<synchronous>, transform_indices = @transform_2, window_bounds = array<i64: 1, 16>}, {pipeline_mode = #tpu.pipeline_mode<synchronous>, transform_indices = @transform_3, window_bounds = array<i64: 1, 16>}, {pipeline_mode = #tpu.pipeline_mode<synchronous>, transform_indices = @transform_4, window_bounds = array<i64: 3, 48, 16>}, {pipeline_mode = #tpu.pipeline_mode<synchronous>, transform_indices = @transform_5, window_bounds = array<i64: 1, 16>}, {pipeline_mode = #tpu.pipeline_mode<synchronous>, transform_indices = @transform_6, window_bounds = array<i64: 1, 16>}, {pipeline_mode = #tpu.pipeline_mode<synchronous>, transform_indices = @transform_7, window_bounds = array<i64: 16, 64>}, {pipeline_mode = #tpu.pipeline_mode<synchronous>, transform_indices = @transform_8, window_bounds = array<i64: 1, 64>}, {pipeline_mode = #tpu.pipeline_mode<synchronous>, transform_indices = @transform_9, window_bounds = array<i64: 1, 64>}, {pipeline_mode = #tpu.pipeline_mode<synchronous>, transform_indices = @transform_10, window_bounds = array<i64: 16, 64>}, {pipeline_mode = #tpu.pipeline_mode<synchronous>, transform_indices = @transform_11, window_bounds = array<i64: 1, 64>}, {pipeline_mode = #tpu.pipeline_mode<synchronous>, transform_indices = @transform_12, window_bounds = array<i64: 1, 64>}, {transform_indices = @transform_13, window_bounds = array<i64: 1, 16, 16, 64>}]} {
    %c0 = arith.constant 0 : index
    %c0_0 = arith.constant 0 : index
    %c0_1 = arith.constant 0 : index
    %c0_2 = arith.constant 0 : index
    %0 = vector.load %arg1[%c0, %c0_0, %c0_1, %c0_2] : memref<1x16x16x16xbf16, #tpu.memory_space<vmem>>, vector<1x16x16x16xbf16>
    %1 = vector.shape_cast %0 : vector<1x16x16x16xbf16> to vector<16x16x16xbf16>
    %2 = vector.shape_cast %1 : vector<16x16x16xbf16> to vector<256x16xbf16>
    %c0_3 = arith.constant 0 : index
    %c0_4 = arith.constant 0 : index
    %3 = vector.load %arg2[%c0_3, %c0_4] : memref<16x16xbf16, #tpu.memory_space<vmem>>, vector<16x16xbf16>
    %cst = arith.constant dense<0.000000e+00> : vector<256x16xf32>
    %4 = tpu.matmul %2, %3, %cst {dimension_numbers = #tpu.dot_dimension_numbers<[1], [0], [0], [1], [0, 0, 1, 1], [], []>} : vector<256x16xbf16>, vector<16x16xbf16>, vector<256x16xf32> -> vector<256x16xf32>
    %c0_5 = arith.constant 0 : index
    %c0_6 = arith.constant 0 : index
    %5 = vector.load %arg3[%c0_5, %c0_6] : memref<1x16xf32, #tpu.memory_space<vmem>>, vector<1x16xf32>
    %6 = vector.broadcast %5 : vector<1x16xf32> to vector<256x16xf32>
    %7 = arith.mulf %4, %6 : vector<256x16xf32>
    %c0_7 = arith.constant 0 : index
    %c0_8 = arith.constant 0 : index
    %8 = vector.load %arg4[%c0_7, %c0_8] : memref<1x16xf32, #tpu.memory_space<vmem>>, vector<1x16xf32>
    %9 = vector.broadcast %8 : vector<1x16xf32> to vector<256x16xf32>
    %10 = arith.addf %7, %9 : vector<256x16xf32>
    %cst_9 = arith.constant 0.000000e+00 : f32
    %11 = vector.broadcast %cst_9 : f32 to vector<256x16xf32>
    %12 = arith.maximumf %10, %11 : vector<256x16xf32>
    %cst_10 = arith.constant 0.000000e+00 : bf16
    %13 = vector.broadcast %cst_10 : bf16 to vector<1x40x16xbf16>
    %c0_11 = arith.constant 0 : index
    %c0_12 = arith.constant 0 : index
    %c0_13 = arith.constant 0 : index
    %14 = vector.load %arg15[%c0_11, %c0_12, %c0_13] : memref<18x40x16xbf16, #tpu.memory_space<vmem>>, vector<1x40x16xbf16>
    tpu.vector_store %arg15[%c0_11, %c0_12, %c0_13], %13 {strides = array<i32>} : memref<18x40x16xbf16, #tpu.memory_space<vmem>>, vector<1x40x16xbf16>,
    %cst_14 = arith.constant 0.000000e+00 : bf16
    %15 = vector.broadcast %cst_14 : bf16 to vector<1x40x16xbf16>
    %c17 = arith.constant 17 : index
    %c0_15 = arith.constant 0 : index
    %c0_16 = arith.constant 0 : index
    %16 = vector.load %arg15[%c17, %c0_15, %c0_16] : memref<18x40x16xbf16, #tpu.memory_space<vmem>>, vector<1x40x16xbf16>
    tpu.vector_store %arg15[%c17, %c0_15, %c0_16], %15 {strides = array<i32>} : memref<18x40x16xbf16, #tpu.memory_space<vmem>>, vector<1x40x16xbf16>,
    %cst_17 = arith.constant 0.000000e+00 : bf16
    %17 = vector.broadcast %cst_17 : bf16 to vector<18x8x16xbf16>
    %c0_18 = arith.constant 0 : index
    %c8 = arith.constant 8 : index
    %c0_19 = arith.constant 0 : index
    %18 = vector.load %arg15[%c0_18, %c8, %c0_19] : memref<18x40x16xbf16, #tpu.memory_space<vmem>>, vector<18x8x16xbf16>
    tpu.vector_store %arg15[%c0_18, %c8, %c0_19], %17 {strides = array<i32>} : memref<18x40x16xbf16, #tpu.memory_space<vmem>>, vector<18x8x16xbf16>,
    %cst_20 = arith.constant 0.000000e+00 : bf16
    %19 = vector.broadcast %cst_20 : bf16 to vector<18x8x16xbf16>
    %c0_21 = arith.constant 0 : index
    %c32 = arith.constant 32 : index
    %c0_22 = arith.constant 0 : index
    %20 = vector.load %arg15[%c0_21, %c32, %c0_22] : memref<18x40x16xbf16, #tpu.memory_space<vmem>>, vector<18x8x16xbf16>
    tpu.vector_store %arg15[%c0_21, %c32, %c0_22], %19 {strides = array<i32>} : memref<18x40x16xbf16, #tpu.memory_space<vmem>>, vector<18x8x16xbf16>,
    %21 = vector.shape_cast %12 : vector<256x16xf32> to vector<16x16x16xf32>
    %22 = arith.truncf %21 : vector<16x16x16xf32> to vector<16x16x16xbf16>
    %c1 = arith.constant 1 : index
    %c16 = arith.constant 16 : index
    %c0_23 = arith.constant 0 : index
    %23 = vector.load %arg15[%c1, %c16, %c0_23] : memref<18x40x16xbf16, #tpu.memory_space<vmem>>, vector<16x16x16xbf16>
    tpu.vector_store %arg15[%c1, %c16, %c0_23], %22 {strides = array<i32>} : memref<18x40x16xbf16, #tpu.memory_space<vmem>>, vector<16x16x16xbf16>,
    %c0_24 = arith.constant 0 : index
    %c15 = arith.constant 15 : index
    %c0_25 = arith.constant 0 : index
    %24 = vector.load %arg15[%c0_24, %c15, %c0_25] : memref<18x40x16xbf16, #tpu.memory_space<vmem>>, vector<16x16x16xbf16>
    %c0_26 = arith.constant 0 : index
    %c16_27 = arith.constant 16 : index
    %c0_28 = arith.constant 0 : index
    %25 = vector.load %arg15[%c0_26, %c16_27, %c0_28] : memref<18x40x16xbf16, #tpu.memory_space<vmem>>, vector<16x16x16xbf16>
    %c0_29 = arith.constant 0 : index
    %c17_30 = arith.constant 17 : index
    %c0_31 = arith.constant 0 : index
    %26 = vector.load %arg15[%c0_29, %c17_30, %c0_31] : memref<18x40x16xbf16, #tpu.memory_space<vmem>>, vector<16x16x16xbf16>
    %27 = tpu.concatenate %24, %25, %26 in 2 : vector<16x16x16xbf16>, vector<16x16x16xbf16>, vector<16x16x16xbf16> -> vector<16x16x48xbf16>
    %28 = vector.shape_cast %27 : vector<16x16x48xbf16> to vector<256x48xbf16>
    %c0_32 = arith.constant 0 : index
    %c0_33 = arith.constant 0 : index
    %c0_34 = arith.constant 0 : index
    %29 = vector.load %arg5[%c0_32, %c0_33, %c0_34] : memref<3x48x16xbf16, #tpu.memory_space<vmem>>, vector<1x48x16xbf16>
    %30 = vector.shape_cast %29 : vector<1x48x16xbf16> to vector<48x16xbf16>
    %cst_35 = arith.constant dense<0.000000e+00> : vector<256x16xf32>
    %31 = tpu.matmul %28, %30, %cst_35 {dimension_numbers = #tpu.dot_dimension_numbers<[1], [0], [0], [1], [0, 0, 1, 1], [], []>} : vector<256x48xbf16>, vector<48x16xbf16>, vector<256x16xf32> -> vector<256x16xf32>
    %c1_36 = arith.constant 1 : index
    %c15_37 = arith.constant 15 : index
    %c0_38 = arith.constant 0 : index
    %32 = vector.load %arg15[%c1_36, %c15_37, %c0_38] : memref<18x40x16xbf16, #tpu.memory_space<vmem>>, vector<16x16x16xbf16>
    %c1_39 = arith.constant 1 : index
    %c16_40 = arith.constant 16 : index
    %c0_41 = arith.constant 0 : index
    %33 = vector.load %arg15[%c1_39, %c16_40, %c0_41] : memref<18x40x16xbf16, #tpu.memory_space<vmem>>, vector<16x16x16xbf16>
    %c1_42 = arith.constant 1 : index
    %c17_43 = arith.constant 17 : index
    %c0_44 = arith.constant 0 : index
    %34 = vector.load %arg15[%c1_42, %c17_43, %c0_44] : memref<18x40x16xbf16, #tpu.memory_space<vmem>>, vector<16x16x16xbf16>
    %35 = tpu.concatenate %32, %33, %34 in 2 : vector<16x16x16xbf16>, vector<16x16x16xbf16>, vector<16x16x16xbf16> -> vector<16x16x48xbf16>
    %36 = vector.shape_cast %35 : vector<16x16x48xbf16> to vector<256x48xbf16>
    %c1_45 = arith.constant 1 : index
    %c0_46 = arith.constant 0 : index
    %c0_47 = arith.constant 0 : index
    %37 = vector.load %arg5[%c1_45, %c0_46, %c0_47] : memref<3x48x16xbf16, #tpu.memory_space<vmem>>, vector<1x48x16xbf16>
    %38 = vector.shape_cast %37 : vector<1x48x16xbf16> to vector<48x16xbf16>
    %cst_48 = arith.constant dense<0.000000e+00> : vector<256x16xf32>
    %39 = tpu.matmul %36, %38, %cst_48 {dimension_numbers = #tpu.dot_dimension_numbers<[1], [0], [0], [1], [0, 0, 1, 1], [], []>} : vector<256x48xbf16>, vector<48x16xbf16>, vector<256x16xf32> -> vector<256x16xf32>
    %40 = arith.addf %31, %39 : vector<256x16xf32>
    %c2 = arith.constant 2 : index
    %c15_49 = arith.constant 15 : index
    %c0_50 = arith.constant 0 : index
    %41 = vector.load %arg15[%c2, %c15_49, %c0_50] : memref<18x40x16xbf16, #tpu.memory_space<vmem>>, vector<16x16x16xbf16>
    %c2_51 = arith.constant 2 : index
    %c16_52 = arith.constant 16 : index
    %c0_53 = arith.constant 0 : index
    %42 = vector.load %arg15[%c2_51, %c16_52, %c0_53] : memref<18x40x16xbf16, #tpu.memory_space<vmem>>, vector<16x16x16xbf16>
    %c2_54 = arith.constant 2 : index
    %c17_55 = arith.constant 17 : index
    %c0_56 = arith.constant 0 : index
    %43 = vector.load %arg15[%c2_54, %c17_55, %c0_56] : memref<18x40x16xbf16, #tpu.memory_space<vmem>>, vector<16x16x16xbf16>
    %44 = tpu.concatenate %41, %42, %43 in 2 : vector<16x16x16xbf16>, vector<16x16x16xbf16>, vector<16x16x16xbf16> -> vector<16x16x48xbf16>
    %45 = vector.shape_cast %44 : vector<16x16x48xbf16> to vector<256x48xbf16>
    %c2_57 = arith.constant 2 : index
    %c0_58 = arith.constant 0 : index
    %c0_59 = arith.constant 0 : index
    %46 = vector.load %arg5[%c2_57, %c0_58, %c0_59] : memref<3x48x16xbf16, #tpu.memory_space<vmem>>, vector<1x48x16xbf16>
    %47 = vector.shape_cast %46 : vector<1x48x16xbf16> to vector<48x16xbf16>
    %cst_60 = arith.constant dense<0.000000e+00> : vector<256x16xf32>
    %48 = tpu.matmul %45, %47, %cst_60 {dimension_numbers = #tpu.dot_dimension_numbers<[1], [0], [0], [1], [0, 0, 1, 1], [], []>} : vector<256x48xbf16>, vector<48x16xbf16>, vector<256x16xf32> -> vector<256x16xf32>
    %49 = arith.addf %40, %48 : vector<256x16xf32>
    %c0_61 = arith.constant 0 : index
    %c0_62 = arith.constant 0 : index
    %50 = vector.load %arg6[%c0_61, %c0_62] : memref<1x16xf32, #tpu.memory_space<vmem>>, vector<1x16xf32>
    %51 = vector.broadcast %50 : vector<1x16xf32> to vector<256x16xf32>
    %52 = arith.mulf %49, %51 : vector<256x16xf32>
    %c0_63 = arith.constant 0 : index
    %c0_64 = arith.constant 0 : index
    %53 = vector.load %arg7[%c0_63, %c0_64] : memref<1x16xf32, #tpu.memory_space<vmem>>, vector<1x16xf32>
    %54 = vector.broadcast %53 : vector<1x16xf32> to vector<256x16xf32>
    %55 = arith.addf %52, %54 : vector<256x16xf32>
    %cst_65 = arith.constant 0.000000e+00 : f32
    %56 = vector.broadcast %cst_65 : f32 to vector<256x16xf32>
    %57 = arith.maximumf %55, %56 : vector<256x16xf32>
    %58 = arith.truncf %57 : vector<256x16xf32> to vector<256x16xbf16>
    %c0_66 = arith.constant 0 : index
    %c0_67 = arith.constant 0 : index
    %59 = vector.load %arg8[%c0_66, %c0_67] : memref<16x64xbf16, #tpu.memory_space<vmem>>, vector<16x64xbf16>
    %cst_68 = arith.constant dense<0.000000e+00> : vector<256x64xf32>
    %60 = tpu.matmul %58, %59, %cst_68 {dimension_numbers = #tpu.dot_dimension_numbers<[1], [0], [0], [1], [0, 0, 1, 1], [], []>} : vector<256x16xbf16>, vector<16x64xbf16>, vector<256x64xf32> -> vector<256x64xf32>
    %c0_69 = arith.constant 0 : index
    %c0_70 = arith.constant 0 : index
    %61 = vector.load %arg9[%c0_69, %c0_70] : memref<1x64xf32, #tpu.memory_space<vmem>>, vector<1x64xf32>
    %62 = vector.broadcast %61 : vector<1x64xf32> to vector<256x64xf32>
    %63 = arith.mulf %60, %62 : vector<256x64xf32>
    %c0_71 = arith.constant 0 : index
    %c0_72 = arith.constant 0 : index
    %64 = vector.load %arg10[%c0_71, %c0_72] : memref<1x64xf32, #tpu.memory_space<vmem>>, vector<1x64xf32>
    %65 = vector.broadcast %64 : vector<1x64xf32> to vector<256x64xf32>
    %66 = arith.addf %63, %65 : vector<256x64xf32>
    %c0_73 = arith.constant 0 : index
    %c0_74 = arith.constant 0 : index
    %c0_75 = arith.constant 0 : index
    %c0_76 = arith.constant 0 : index
    %67 = vector.load %arg1[%c0_73, %c0_74, %c0_75, %c0_76] : memref<1x16x16x16xbf16, #tpu.memory_space<vmem>>, vector<1x16x16x16xbf16>
    %68 = vector.shape_cast %67 : vector<1x16x16x16xbf16> to vector<16x16x16xbf16>
    %69 = vector.shape_cast %68 : vector<16x16x16xbf16> to vector<256x16xbf16>
    %c0_77 = arith.constant 0 : index
    %c0_78 = arith.constant 0 : index
    %70 = vector.load %arg11[%c0_77, %c0_78] : memref<16x64xbf16, #tpu.memory_space<vmem>>, vector<16x64xbf16>
    %cst_79 = arith.constant dense<0.000000e+00> : vector<256x64xf32>
    %71 = tpu.matmul %69, %70, %cst_79 {dimension_numbers = #tpu.dot_dimension_numbers<[1], [0], [0], [1], [0, 0, 1, 1], [], []>} : vector<256x16xbf16>, vector<16x64xbf16>, vector<256x64xf32> -> vector<256x64xf32>
    %c0_80 = arith.constant 0 : index
    %c0_81 = arith.constant 0 : index
    %72 = vector.load %arg12[%c0_80, %c0_81] : memref<1x64xf32, #tpu.memory_space<vmem>>, vector<1x64xf32>
    %73 = vector.broadcast %72 : vector<1x64xf32> to vector<256x64xf32>
    %74 = arith.mulf %71, %73 : vector<256x64xf32>
    %c0_82 = arith.constant 0 : index
    %c0_83 = arith.constant 0 : index
    %75 = vector.load %arg13[%c0_82, %c0_83] : memref<1x64xf32, #tpu.memory_space<vmem>>, vector<1x64xf32>
    %76 = vector.broadcast %75 : vector<1x64xf32> to vector<256x64xf32>
    %77 = arith.addf %74, %76 : vector<256x64xf32>
    %78 = arith.addf %66, %77 : vector<256x64xf32>
    %cst_84 = arith.constant 0.000000e+00 : f32
    %79 = vector.broadcast %cst_84 : f32 to vector<256x64xf32>
    %80 = arith.maximumf %78, %79 : vector<256x64xf32>
    %81 = vector.shape_cast %80 : vector<256x64xf32> to vector<1x16x16x64xf32>
    %82 = arith.truncf %81 : vector<1x16x16x64xf32> to vector<1x16x16x64xbf16>
    %c0_85 = arith.constant 0 : index
    %c0_86 = arith.constant 0 : index
    %c0_87 = arith.constant 0 : index
    %c0_88 = arith.constant 0 : index
    %83 = vector.load %arg14[%c0_85, %c0_86, %c0_87, %c0_88] : memref<1x16x16x64xbf16, #tpu.memory_space<vmem>>, vector<1x16x16x64xbf16>
    tpu.vector_store %arg14[%c0_85, %c0_86, %c0_87, %c0_88], %82 {strides = array<i32>} : memref<1x16x16x64xbf16, #tpu.memory_space<vmem>>, vector<1x16x16x64xbf16>,
    return
  }
  func.func @transform_0(%arg0: i32) -> (i32, i32, i32, i32) {
    %c0_i32 = arith.constant 0 : i32
    %c0_i32_0 = arith.constant 0 : i32
    %c0_i32_1 = arith.constant 0 : i32
    %c0_i32_2 = arith.constant 0 : i32
    return %arg0, %c0_i32, %c0_i32_0, %c0_i32_1 : i32, i32, i32, i32
  }
  func.func @transform_1(%arg0: i32) -> (i32, i32) {
    %c0_i32 = arith.constant 0 : i32
    %c0_i32_0 = arith.constant 0 : i32
    %c0_i32_1 = arith.constant 0 : i32
    return %c0_i32, %c0_i32_0 : i32, i32
  }
  func.func @transform_2(%arg0: i32) -> (i32, i32) {
    %c0_i32 = arith.constant 0 : i32
    %c0_i32_0 = arith.constant 0 : i32
    %c0_i32_1 = arith.constant 0 : i32
    return %c0_i32, %c0_i32_0 : i32, i32
  }
  func.func @transform_3(%arg0: i32) -> (i32, i32) {
    %c0_i32 = arith.constant 0 : i32
    %c0_i32_0 = arith.constant 0 : i32
    %c0_i32_1 = arith.constant 0 : i32
    return %c0_i32, %c0_i32_0 : i32, i32
  }
  func.func @transform_4(%arg0: i32) -> (i32, i32, i32) {
    %c0_i32 = arith.constant 0 : i32
    %c0_i32_0 = arith.constant 0 : i32
    %c0_i32_1 = arith.constant 0 : i32
    %c0_i32_2 = arith.constant 0 : i32
    return %c0_i32, %c0_i32_0, %c0_i32_1 : i32, i32, i32
  }
  func.func @transform_5(%arg0: i32) -> (i32, i32) {
    %c0_i32 = arith.constant 0 : i32
    %c0_i32_0 = arith.constant 0 : i32
    %c0_i32_1 = arith.constant 0 : i32
    return %c0_i32, %c0_i32_0 : i32, i32
  }
  func.func @transform_6(%arg0: i32) -> (i32, i32) {
    %c0_i32 = arith.constant 0 : i32
    %c0_i32_0 = arith.constant 0 : i32
    %c0_i32_1 = arith.constant 0 : i32
    return %c0_i32, %c0_i32_0 : i32, i32
  }
  func.func @transform_7(%arg0: i32) -> (i32, i32) {
    %c0_i32 = arith.constant 0 : i32
    %c0_i32_0 = arith.constant 0 : i32
    %c0_i32_1 = arith.constant 0 : i32
    return %c0_i32, %c0_i32_0 : i32, i32
  }
  func.func @transform_8(%arg0: i32) -> (i32, i32) {
    %c0_i32 = arith.constant 0 : i32
    %c0_i32_0 = arith.constant 0 : i32
    %c0_i32_1 = arith.constant 0 : i32
    return %c0_i32, %c0_i32_0 : i32, i32
  }
  func.func @transform_9(%arg0: i32) -> (i32, i32) {
    %c0_i32 = arith.constant 0 : i32
    %c0_i32_0 = arith.constant 0 : i32
    %c0_i32_1 = arith.constant 0 : i32
    return %c0_i32, %c0_i32_0 : i32, i32
  }
  func.func @transform_10(%arg0: i32) -> (i32, i32) {
    %c0_i32 = arith.constant 0 : i32
    %c0_i32_0 = arith.constant 0 : i32
    %c0_i32_1 = arith.constant 0 : i32
    return %c0_i32, %c0_i32_0 : i32, i32
  }
  func.func @transform_11(%arg0: i32) -> (i32, i32) {
    %c0_i32 = arith.constant 0 : i32
    %c0_i32_0 = arith.constant 0 : i32
    %c0_i32_1 = arith.constant 0 : i32
    return %c0_i32, %c0_i32_0 : i32, i32
  }
  func.func @transform_12(%arg0: i32) -> (i32, i32) {
    %c0_i32 = arith.constant 0 : i32
    %c0_i32_0 = arith.constant 0 : i32
    %c0_i32_1 = arith.constant 0 : i32
    return %c0_i32, %c0_i32_0 : i32, i32
  }
  func.func @transform_13(%arg0: i32) -> (i32, i32, i32, i32) {
    %c0_i32 = arith.constant 0 : i32
    %c0_i32_0 = arith.constant 0 : i32
    %c0_i32_1 = arith.constant 0 : i32
    %c0_i32_2 = arith.constant 0 : i32
    return %arg0, %c0_i32, %c0_i32_0, %c0_i32_1 : i32, i32, i32, i32
  }
}

</mosaic_0001>

<llo_original>
// kernel: tpu_custom_call.1
$region0: #{tpu_custom_call.1}
  #allocation0 [shape = 'u32[]', space=smem, size = 0x4, offset = 0x4, fixed_abs, tag = 'smem constant byte address 0x4 - core index']
  #allocation1 [shape = 'u32[144,128]{1,0:T(1,128)}', space=vmem, size = 0x12000, scoped, tag = 'internal scratch']
  #allocation2 [shape = 'bf16[18,40,16]{2,1,0:T(8,128)(2,1)}', space=vmem, size = 0x2d000, scoped, tag = 'scratch operand']
  %s0 = inlined_call_operand.hbm [shape: bf16[2,16,16,16], index: 0, kind: input, shape index: {}]
  %s1 = inlined_call_operand.vmem [shape: bf16[16,16], index: 1, kind: input, shape index: {}]
  %s2 = inlined_call_operand.vmem [shape: f32[1,16], index: 2, kind: input, shape index: {}]
  %s3 = inlined_call_operand.vmem [shape: f32[1,16], index: 3, kind: input, shape index: {}]
  %s4 = inlined_call_operand.vmem [shape: bf16[3,48,16], index: 4, kind: input, shape index: {}]
  %s5 = inlined_call_operand.vmem [shape: f32[1,16], index: 5, kind: input, shape index: {}]
  %s6 = inlined_call_operand.vmem [shape: f32[1,16], index: 6, kind: input, shape index: {}]
  %s7 = inlined_call_operand.vmem [shape: bf16[16,64], index: 7, kind: input, shape index: {}]
  %s8 = inlined_call_operand.vmem [shape: f32[1,64], index: 8, kind: input, shape index: {}]
  %s9 = inlined_call_operand.vmem [shape: f32[1,64], index: 9, kind: input, shape index: {}]
  %s10 = inlined_call_operand.vmem [shape: bf16[16,64], index: 10, kind: input, shape index: {}]
  %s11 = inlined_call_operand.vmem [shape: f32[1,64], index: 11, kind: input, shape index: {}]
  %s12 = inlined_call_operand.vmem [shape: f32[1,64], index: 12, kind: input, shape index: {}]
  %s13 = inlined_call_operand.hbm [shape: bf16[2,16,16,64], index: 13, kind: output, shape index: {}]
  %s14 = sld [smem:[#allocation0]]
  $region89: #{tpu_custom_call.1} parent=0
    _
  %s16 = ssub.s32 1, %s14
  %s17 = scalar_select 0, %s16, %s14
  $region1: #{tpu_custom_call.1} parent=0
    #allocation3 [shape = 'u8[131072]{0}', space=vmem, size = 0x20000, scoped, tag = 'input window, operand 0']
    #allocation4 [shape = 's32[2]{0}', space=sflag, size = 0x8, scoped, tag = 'scoped memory for tpu_custom_call.1']
    #allocation5 [shape = 's32[2]{0}', space=sflag, size = 0x8, scoped, tag = 'scoped memory for tpu_custom_call.1']
    #allocation6 [shape = 'u8[131072]{0}', space=vmem, size = 0x20000, scoped, tag = 'output window, operand 0']
    %18 = vsyncpa [#allocation4], 0
    %s19 = scalar_lea.sflag [#allocation4], 1
    %20 = vsyncpa %s19, 0
    %21 = vsyncpa [#allocation5], 0
    %s22 = scalar_lea.sflag [#allocation5], 1
    %23 = vsyncpa %s22, 0
    loop: start=0, step=1, limit=4
    $region2: #{tpu_custom_call.1} parent=1 // loop_pre_header
      _
    $region3: #{tpu_custom_call.1} parent=1 // loop_header
      %s25 = sphi 0, %s29
      %p26 = scmp.ge.s32.totalorder %s25, 4
      %s35 = sphi 0, %s37
      %s38 = sphi 0, %s35
      %s39 = sphi 0, %s38
      %s55 = sphi 0, %s39
      %s59 = sphi 0, %s59
      %s61 = sphi 0, %s59
      %s62 = sphi 0, %s61
      %s76 = sphi 0, %s62
      %s80 = sphi 0, %s80
      %s82 = sphi 0, %s80
      %s83 = sphi 0, %s82
      %s97 = sphi 0, %s83
      %s101 = sphi 0, %s101
      %s103 = sphi 0, %s101
      %s104 = sphi 0, %s103
      %s118 = sphi 0, %s104
      %s122 = sphi 0, %s122
      %s124 = sphi 0, %s122
      %s125 = sphi 0, %s124
      %s139 = sphi 0, %s125
      %s143 = sphi 0, %s143
      %s145 = sphi 0, %s143
      %s146 = sphi 0, %s145
      %s160 = sphi 0, %s146
      %s164 = sphi 0, %s164
      %s166 = sphi 0, %s164
      %s167 = sphi 0, %s166
      %s181 = sphi 0, %s167
      %s185 = sphi 0, %s185
      %s187 = sphi 0, %s185
      %s188 = sphi 0, %s187
      %s202 = sphi 0, %s188
      %s206 = sphi 0, %s206
      %s208 = sphi 0, %s206
      %s209 = sphi 0, %s208
      %s223 = sphi 0, %s209
      %s227 = sphi 0, %s227
      %s229 = sphi 0, %s227
      %s230 = sphi 0, %s229
      %s244 = sphi 0, %s230
      %s248 = sphi 0, %s248
      %s250 = sphi 0, %s248
      %s251 = sphi 0, %s250
      %s265 = sphi 0, %s251
      %s269 = sphi 0, %s269
      %s271 = sphi 0, %s269
      %s272 = sphi 0, %s271
      %s286 = sphi 0, %s272
      %s290 = sphi 0, %s290
      %s292 = sphi 0, %s290
      %s293 = sphi 0, %s292
      %s307 = sphi 0, %s293
      %s313 = sphi 0, %s315
      %s316 = sphi 0, %s313
      %s317 = sphi 0, %s316
      %s333 = sphi 0, %s317
    $region4: #{tpu_custom_call.1} parent=1 // loop_header_branch
      %28 = sbr.rel (%p26) target = $region8
    $region5: #{tpu_custom_call.1} parent=1 // loop_body
      %s30 = ssub.s32 %s25, 1
      %s31 = ssub.s32 %s25, 2
      %s32 = sadd.s32 %s25, 1
      %s33 = ssub.s32 %s25, %s32
      %p34 = scmp.eq.s32.totalorder %s33, 0
      %s36 = sadd.s32 %s35, 1
      %s37 = scalar_select %p34, %s35, %s36
      %p40 = pneg %p34
      %p41 = scmp.eq.s32.totalorder %s25, 1
      %p42 = por %p40, %p41
      %p43 = scmp.ne.s32.totalorder %s35, %s38
      %p44 = scmp.eq.s32.totalorder %s25, 0
      %p45 = por %p43, %p44
      %p46 = scmp.ne.s32.totalorder %s35, %s38
      %p47 = scmp.eq.s32.totalorder %s30, 1
      %p48 = por %p46, %p47
      %p49 = scmp.ne.s32.totalorder %s38, %s39
      %p50 = scmp.eq.s32.totalorder %s30, 0
      %p51 = por %p49, %p50
      %p52 = scmp.ne.s32.totalorder %s38, %s39
      %p53 = scmp.eq.s32.totalorder %s31, 1
      %p54 = por %p52, %p53
      %p56 = scmp.ne.s32.totalorder %s39, %s55
      %p57 = scmp.eq.s32.totalorder %s31, 0
      %p58 = por %p56, %p57
      %s60 = sadd.s32 %s59, 1
      %p63 = scmp.eq.s32.totalorder %s25, 1
      %p64 = scmp.ne.s32.totalorder %s59, %s61
      %p65 = scmp.eq.s32.totalorder %s25, 0
      %p66 = por %p64, %p65
      %p67 = scmp.ne.s32.totalorder %s59, %s61
      %p68 = scmp.eq.s32.totalorder %s30, 1
      %p69 = por %p67, %p68
      %p70 = scmp.ne.s32.totalorder %s61, %s62
      %p71 = scmp.eq.s32.totalorder %s30, 0
      %p72 = por %p70, %p71
      %p73 = scmp.ne.s32.totalorder %s61, %s62
      %p74 = scmp.eq.s32.totalorder %s31, 1
      %p75 = por %p73, %p74
      %p77 = scmp.ne.s32.totalorder %s62, %s76
      %p78 = scmp.eq.s32.totalorder %s31, 0
      %p79 = por %p77, %p78
      %s81 = sadd.s32 %s80, 1
      %p84 = scmp.eq.s32.totalorder %s25, 1
      %p85 = scmp.ne.s32.totalorder %s80, %s82
      %p86 = scmp.eq.s32.totalorder %s25, 0
      %p87 = por %p85, %p86
      %p88 = scmp.ne.s32.totalorder %s80, %s82
      %p89 = scmp.eq.s32.totalorder %s30, 1
      %p90 = por %p88, %p89
      %p91 = scmp.ne.s32.totalorder %s82, %s83
      %p92 = scmp.eq.s32.totalorder %s30, 0
      %p93 = por %p91, %p92
      %p94 = scmp.ne.s32.totalorder %s82, %s83
      %p95 = scmp.eq.s32.totalorder %s31, 1
      %p96 = por %p94, %p95
      %p98 = scmp.ne.s32.totalorder %s83, %s97
      %p99 = scmp.eq.s32.totalorder %s31, 0
      %p100 = por %p98, %p99
      %s102 = sadd.s32 %s101, 1
      %p105 = scmp.eq.s32.totalorder %s25, 1
      %p106 = scmp.ne.s32.totalorder %s101, %s103
      %p107 = scmp.eq.s32.totalorder %s25, 0
      %p108 = por %p106, %p107
      %p109 = scmp.ne.s32.totalorder %s101, %s103
      %p110 = scmp.eq.s32.totalorder %s30, 1
      %p111 = por %p109, %p110
      %p112 = scmp.ne.s32.totalorder %s103, %s104
      %p113 = scmp.eq.s32.totalorder %s30, 0
      %p114 = por %p112, %p113
      %p115 = scmp.ne.s32.totalorder %s103, %s104
      %p116 = scmp.eq.s32.totalorder %s31, 1
      %p117 = por %p115, %p116
      %p119 = scmp.ne.s32.totalorder %s104, %s118
      %p120 = scmp.eq.s32.totalorder %s31, 0
      %p121 = por %p119, %p120
      %s123 = sadd.s32 %s122, 1
      %p126 = scmp.eq.s32.totalorder %s25, 1
      %p127 = scmp.ne.s32.totalorder %s122, %s124
      %p128 = scmp.eq.s32.totalorder %s25, 0
      %p129 = por %p127, %p128
      %p130 = scmp.ne.s32.totalorder %s122, %s124
      %p131 = scmp.eq.s32.totalorder %s30, 1
      %p132 = por %p130, %p131
      %p133 = scmp.ne.s32.totalorder %s124, %s125
      %p134 = scmp.eq.s32.totalorder %s30, 0
      %p135 = por %p133, %p134
      %p136 = scmp.ne.s32.totalorder %s124, %s125
      %p137 = scmp.eq.s32.totalorder %s31, 1
      %p138 = por %p136, %p137
      %p140 = scmp.ne.s32.totalorder %s125, %s139
      %p141 = scmp.eq.s32.totalorder %s31, 0
      %p142 = por %p140, %p141
      %s144 = sadd.s32 %s143, 1
      %p147 = scmp.eq.s32.totalorder %s25, 1
      %p148 = scmp.ne.s32.totalorder %s143, %s145
      %p149 = scmp.eq.s32.totalorder %s25, 0
      %p150 = por %p148, %p149
      %p151 = scmp.ne.s32.totalorder %s143, %s145
      %p152 = scmp.eq.s32.totalorder %s30, 1
      %p153 = por %p151, %p152
      %p154 = scmp.ne.s32.totalorder %s145, %s146
      %p155 = scmp.eq.s32.totalorder %s30, 0
      %p156 = por %p154, %p155
      %p157 = scmp.ne.s32.totalorder %s145, %s146
      %p158 = scmp.eq.s32.totalorder %s31, 1
      %p159 = por %p157, %p158
      %p161 = scmp.ne.s32.totalorder %s146, %s160
      %p162 = scmp.eq.s32.totalorder %s31, 0
      %p163 = por %p161, %p162
      %s165 = sadd.s32 %s164, 1
      %p168 = scmp.eq.s32.totalorder %s25, 1
      %p169 = scmp.ne.s32.totalorder %s164, %s166
      %p170 = scmp.eq.s32.totalorder %s25, 0
      %p171 = por %p169, %p170
      %p172 = scmp.ne.s32.totalorder %s164, %s166
      %p173 = scmp.eq.s32.totalorder %s30, 1
      %p174 = por %p172, %p173
      %p175 = scmp.ne.s32.totalorder %s166, %s167
      %p176 = scmp.eq.s32.totalorder %s30, 0
      %p177 = por %p175, %p176
      %p178 = scmp.ne.s32.totalorder %s166, %s167
      %p179 = scmp.eq.s32.totalorder %s31, 1
      %p180 = por %p178, %p179
      %p182 = scmp.ne.s32.totalorder %s167, %s181
      %p183 = scmp.eq.s32.totalorder %s31, 0
      %p184 = por %p182, %p183
      %s186 = sadd.s32 %s185, 1
      %p189 = scmp.eq.s32.totalorder %s25, 1
      %p190 = scmp.ne.s32.totalorder %s185, %s187
      %p191 = scmp.eq.s32.totalorder %s25, 0
      %p192 = por %p190, %p191
      %p193 = scmp.ne.s32.totalorder %s185, %s187
      %p194 = scmp.eq.s32.totalorder %s30, 1
      %p195 = por %p193, %p194
      %p196 = scmp.ne.s32.totalorder %s187, %s188
      %p197 = scmp.eq.s32.totalorder %s30, 0
      %p198 = por %p196, %p197
      %p199 = scmp.ne.s32.totalorder %s187, %s188
      %p200 = scmp.eq.s32.totalorder %s31, 1
      %p201 = por %p199, %p200
      %p203 = scmp.ne.s32.totalorder %s188, %s202
      %p204 = scmp.eq.s32.totalorder %s31, 0
      %p205 = por %p203, %p204
      %s207 = sadd.s32 %s206, 1
      %p210 = scmp.eq.s32.totalorder %s25, 1
      %p211 = scmp.ne.s32.totalorder %s206, %s208
      %p212 = scmp.eq.s32.totalorder %s25, 0
      %p213 = por %p211, %p212
      %p214 = scmp.ne.s32.totalorder %s206, %s208
      %p215 = scmp.eq.s32.totalorder %s30, 1
      %p216 = por %p214, %p215
      %p217 = scmp.ne.s32.totalorder %s208, %s209
      %p218 = scmp.eq.s32.totalorder %s30, 0
      %p219 = por %p217, %p218
      %p220 = scmp.ne.s32.totalorder %s208, %s209
      %p221 = scmp.eq.s32.totalorder %s31, 1
      %p222 = por %p220, %p221
      %p224 = scmp.ne.s32.totalorder %s209, %s223
      %p225 = scmp.eq.s32.totalorder %s31, 0
      %p226 = por %p224, %p225
      %s228 = sadd.s32 %s227, 1
      %p231 = scmp.eq.s32.totalorder %s25, 1
      %p232 = scmp.ne.s32.totalorder %s227, %s229
      %p233 = scmp.eq.s32.totalorder %s25, 0
      %p234 = por %p232, %p233
      %p235 = scmp.ne.s32.totalorder %s227, %s229
      %p236 = scmp.eq.s32.totalorder %s30, 1
      %p237 = por %p235, %p236
      %p238 = scmp.ne.s32.totalorder %s229, %s230
      %p239 = scmp.eq.s32.totalorder %s30, 0
      %p240 = por %p238, %p239
      %p241 = scmp.ne.s32.totalorder %s229, %s230
      %p242 = scmp.eq.s32.totalorder %s31, 1
      %p243 = por %p241, %p242
      %p245 = scmp.ne.s32.totalorder %s230, %s244
      %p246 = scmp.eq.s32.totalorder %s31, 0
      %p247 = por %p245, %p246
      %s249 = sadd.s32 %s248, 1
      %p252 = scmp.eq.s32.totalorder %s25, 1
      %p253 = scmp.ne.s32.totalorder %s248, %s250
      %p254 = scmp.eq.s32.totalorder %s25, 0
      %p255 = por %p253, %p254
      %p256 = scmp.ne.s32.totalorder %s248, %s250
      %p257 = scmp.eq.s32.totalorder %s30, 1
      %p258 = por %p256, %p257
      %p259 = scmp.ne.s32.totalorder %s250, %s251
      %p260 = scmp.eq.s32.totalorder %s30, 0
      %p261 = por %p259, %p260
      %p262 = scmp.ne.s32.totalorder %s250, %s251
      %p263 = scmp.eq.s32.totalorder %s31, 1
      %p264 = por %p262, %p263
      %p266 = scmp.ne.s32.totalorder %s251, %s265
      %p267 = scmp.eq.s32.totalorder %s31, 0
      %p268 = por %p266, %p267
      %s270 = sadd.s32 %s269, 1
      %p273 = scmp.eq.s32.totalorder %s25, 1
      %p274 = scmp.ne.s32.totalorder %s269, %s271
      %p275 = scmp.eq.s32.totalorder %s25, 0
      %p276 = por %p274, %p275
      %p277 = scmp.ne.s32.totalorder %s269, %s271
      %p278 = scmp.eq.s32.totalorder %s30, 1
      %p279 = por %p277, %p278
      %p280 = scmp.ne.s32.totalorder %s271, %s272
      %p281 = scmp.eq.s32.totalorder %s30, 0
      %p282 = por %p280, %p281
      %p283 = scmp.ne.s32.totalorder %s271, %s272
      %p284 = scmp.eq.s32.totalorder %s31, 1
      %p285 = por %p283, %p284
      %p287 = scmp.ne.s32.totalorder %s272, %s286
      %p288 = scmp.eq.s32.totalorder %s31, 0
      %p289 = por %p287, %p288
      %s291 = sadd.s32 %s290, 1
      %p294 = scmp.eq.s32.totalorder %s25, 1
      %p295 = scmp.ne.s32.totalorder %s290, %s292
      %p296 = scmp.eq.s32.totalorder %s25, 0
      %p297 = por %p295, %p296
      %p298 = scmp.ne.s32.totalorder %s290, %s292
      %p299 = scmp.eq.s32.totalorder %s30, 1
      %p300 = por %p298, %p299
      %p301 = scmp.ne.s32.totalorder %s292, %s293
      %p302 = scmp.eq.s32.totalorder %s30, 0
      %p303 = por %p301, %p302
      %p304 = scmp.ne.s32.totalorder %s292, %s293
      %p305 = scmp.eq.s32.totalorder %s31, 1
      %p306 = por %p304, %p305
      %p308 = scmp.ne.s32.totalorder %s293, %s307
      %p309 = scmp.eq.s32.totalorder %s31, 0
      %p310 = por %p308, %p309
      %s311 = ssub.s32 %s25, %s32
      %p312 = scmp.eq.s32.totalorder %s311, 0
      %s314 = sadd.s32 %s313, 1
      %s315 = scalar_select %p312, %s313, %s314
      %p318 = pneg %p312
      %p319 = scmp.eq.s32.totalorder %s25, 1
      %p320 = por %p318, %p319
      %p321 = scmp.ne.s32.totalorder %s313, %s316
      %p322 = scmp.eq.s32.totalorder %s25, 0
      %p323 = por %p321, %p322
      %p324 = scmp.ne.s32.totalorder %s313, %s316
      %p325 = scmp.eq.s32.totalorder %s30, 1
      %p326 = por %p324, %p325
      %p327 = scmp.ne.s32.totalorder %s316, %s317
      %p328 = scmp.eq.s32.totalorder %s30, 0
      %p329 = por %p327, %p328
      %p330 = scmp.ne.s32.totalorder %s316, %s317
      %p331 = scmp.eq.s32.totalorder %s31, 1
      %p332 = por %p330, %p331
      %p334 = scmp.ne.s32.totalorder %s317, %s333
      %p335 = scmp.eq.s32.totalorder %s31, 0
      %p336 = por %p334, %p335
      %p337 = scmp.le.s32.totalorder 1, %s25
      %p338 = scmp.lt.s32.totalorder %s25, 3
      %p339 = pnand %p337, %p338
      %p340 = pneg %p339
      // Predicated region
      $region9: #{tpu_custom_call.1} parent=5 // pred_check
        _
      $region10: #{tpu_custom_call.1} parent=5 // pred_check_branch
        %342 = sbr.rel (%p339) target = $region12
      $region11: #{tpu_custom_call.1} parent=5 // pred_region
        %s343 = ssub.s32 %s25, 1
        // Predicated region
        $region13: #{tpu_custom_call.1} parent=11 // pred_check
          %p344 = pneg %p72
        $region14: #{tpu_custom_call.1} parent=11 // pred_check_branch
          %346 = sbr.rel (%p344) target = $region16
        $region15: #{tpu_custom_call.1} parent=11 // pred_region
          _
        $region16: #{tpu_custom_call.1} parent=11 // pred_fallthru
          _
        // Predicated region
        $region17: #{tpu_custom_call.1} parent=11 // pred_check
          %p347 = pneg %p93
        $region18: #{tpu_custom_call.1} parent=11 // pred_check_branch
          %349 = sbr.rel (%p347) target = $region20
        $region19: #{tpu_custom_call.1} parent=11 // pred_region
          _
        $region20: #{tpu_custom_call.1} parent=11 // pred_fallthru
          _
        // Predicated region
        $region21: #{tpu_custom_call.1} parent=11 // pred_check
          %p350 = pneg %p114
        $region22: #{tpu_custom_call.1} parent=11 // pred_check_branch
          %352 = sbr.rel (%p350) target = $region24
        $region23: #{tpu_custom_call.1} parent=11 // pred_region
          _
        $region24: #{tpu_custom_call.1} parent=11 // pred_fallthru
          _
        // Predicated region
        $region25: #{tpu_custom_call.1} parent=11 // pred_check
          %p353 = pneg %p135
        $region26: #{tpu_custom_call.1} parent=11 // pred_check_branch
          %355 = sbr.rel (%p353) target = $region28
        $region27: #{tpu_custom_call.1} parent=11 // pred_region
          _
        $region28: #{tpu_custom_call.1} parent=11 // pred_fallthru
          _
        // Predicated region
        $region29: #{tpu_custom_call.1} parent=11 // pred_check
          %p356 = pneg %p156
        $region30: #{tpu_custom_call.1} parent=11 // pred_check_branch
          %358 = sbr.rel (%p356) target = $region32
        $region31: #{tpu_custom_call.1} parent=11 // pred_region
          _
        $region32: #{tpu_custom_call.1} parent=11 // pred_fallthru
          _
        // Predicated region
        $region33: #{tpu_custom_call.1} parent=11 // pred_check
          %p359 = pneg %p177
        $region34: #{tpu_custom_call.1} parent=11 // pred_check_branch
          %361 = sbr.rel (%p359) target = $region36
        $region35: #{tpu_custom_call.1} parent=11 // pred_region
          _
        $region36: #{tpu_custom_call.1} parent=11 // pred_fallthru
          _
        // Predicated region
        $region37: #{tpu_custom_call.1} parent=11 // pred_check
          %p362 = pneg %p198
        $region38: #{tpu_custom_call.1} parent=11 // pred_check_branch
          %364 = sbr.rel (%p362) target = $region40
        $region39: #{tpu_custom_call.1} parent=11 // pred_region
          _
        $region40: #{tpu_custom_call.1} parent=11 // pred_fallthru
          _
        // Predicated region
        $region41: #{tpu_custom_call.1} parent=11 // pred_check
          %p365 = pneg %p219
        $region42: #{tpu_custom_call.1} parent=11 // pred_check_branch
          %367 = sbr.rel (%p365) target = $region44
        $region43: #{tpu_custom_call.1} parent=11 // pred_region
          _
        $region44: #{tpu_custom_call.1} parent=11 // pred_fallthru
          _
        // Predicated region
        $region45: #{tpu_custom_call.1} parent=11 // pred_check
          %p368 = pneg %p240
        $region46: #{tpu_custom_call.1} parent=11 // pred_check_branch
          %370 = sbr.rel (%p368) target = $region48
        $region47: #{tpu_custom_call.1} parent=11 // pred_region
          _
        $region48: #{tpu_custom_call.1} parent=11 // pred_fallthru
          _
        // Predicated region
        $region49: #{tpu_custom_call.1} parent=11 // pred_check
          %p371 = pneg %p261
        $region50: #{tpu_custom_call.1} parent=11 // pred_check_branch
          %373 = sbr.rel (%p371) target = $region52
        $region51: #{tpu_custom_call.1} parent=11 // pred_region
          _
        $region52: #{tpu_custom_call.1} parent=11 // pred_fallthru
          _
        // Predicated region
        $region53: #{tpu_custom_call.1} parent=11 // pred_check
          %p374 = pneg %p282
        $region54: #{tpu_custom_call.1} parent=11 // pred_check_branch
          %376 = sbr.rel (%p374) target = $region56
        $region55: #{tpu_custom_call.1} parent=11 // pred_region
          _
        $region56: #{tpu_custom_call.1} parent=11 // pred_fallthru
          _
        // Predicated region
        $region57: #{tpu_custom_call.1} parent=11 // pred_check
          %p377 = pneg %p303
        $region58: #{tpu_custom_call.1} parent=11 // pred_check_branch
          %379 = sbr.rel (%p377) target = $region60
        $region59: #{tpu_custom_call.1} parent=11 // pred_region
          _
        $region60: #{tpu_custom_call.1} parent=11 // pred_fallthru
          _
      $region12: #{tpu_custom_call.1} parent=5 // pred_fallthru
        _
      %p380 = scmp.lt.s32.totalorder %s25, 2
      // Predicated region
      $region61: #{tpu_custom_call.1} parent=5 // pred_check
        %p381 = pneg %p380
      $region62: #{tpu_custom_call.1} parent=5 // pred_check_branch
        %383 = sbr.rel (%p381) target = $region64
      $region63: #{tpu_custom_call.1} parent=5 // pred_region
        // Predicated region
        $region65: #{tpu_custom_call.1} parent=63 // pred_check
          %p384 = pneg %p45
        $region66: #{tpu_custom_call.1} parent=63 // pred_check_branch
          %386 = sbr.rel (%p384) target = $region68
        $region67: #{tpu_custom_call.1} parent=63 // pred_region
          %s387 = sand.u32 %s35, 1
          %s388 = scalar_lea.sflag [#allocation4], %s387
          %s389 = sand.u32 %s35, 1
          %s390 = smul.addr %s389, 128
          %s391 = scalar_lea.vmem [#allocation3], %s390
          %s393 = ssub.s32 2048, 2048
          %394 = vsyncadd %s388, %s393
          %s395 = smul.addr %s25, 32
          %s396 = smul.addr %s395, 64
          %s397 = scalar_lea.hbm %s0, %s396
          %s398 = sshll.u32 %s391, 4
          %s399 = int_to_ptr.vmem [resolvable:$true] %s398
          %404 = dma.hbm_to_vmem [thread:$0]  %s397, 2048, %s399, %s388, 64, 64, 4
        $region68: #{tpu_custom_call.1} parent=63 // pred_fallthru
          _
      $region64: #{tpu_custom_call.1} parent=5 // pred_fallthru
        _
      %p405 = scmp.le.s32.totalorder 1, %s25
      %p406 = scmp.lt.s32.totalorder %s25, 3
      %p407 = pnand %p405, %p406
      %p408 = pneg %p407
      // Predicated region
      $region69: #{tpu_custom_call.1} parent=5 // pred_check
        _
      $region70: #{tpu_custom_call.1} parent=5 // pred_check_branch
        %410 = sbr.rel (%p407) target = $region72
      $region71: #{tpu_custom_call.1} parent=5 // pred_region
        %s411 = ssub.s32 %s25, 1
        %s412 = sand.u32 %s38, 1
        %s413 = scalar_lea.sflag [#allocation4], %s412
        %s414 = sand.u32 %s38, 1
        %s415 = smul.addr %s414, 128
        %s416 = scalar_lea.vmem [#allocation3], %s415
        // Predicated region
        $region73: #{tpu_custom_call.1} parent=71 // pred_check
          %p417 = pneg %p51
        $region74: #{tpu_custom_call.1} parent=71 // pred_check_branch
          %419 = sbr.rel (%p417) target = $region76
        $region75: #{tpu_custom_call.1} parent=71 // pred_region
          %420 = dma.done %s413, 2048
        $region76: #{tpu_custom_call.1} parent=71 // pred_fallthru
          _
        %s421 = sand.u32 %s38, 1
        %s422 = scalar_lea.sflag [#allocation4], %s421
        %s423 = sand.u32 %s38, 1
        %s424 = smul.addr %s423, 128
        %s425 = scalar_lea.vmem [#allocation3], %s424
        %p426 = pneg %p51
        %p427 = pneg %p48
        %p428 = pneg %p72
        %p429 = pneg %p69
        %p430 = pneg %p93
        %p431 = pneg %p90
        %p432 = pneg %p114
        %p433 = pneg %p111
        %p434 = pneg %p135
        %p435 = pneg %p132
        %p436 = pneg %p156
        %p437 = pneg %p153
        %p438 = pneg %p177
        %p439 = pneg %p174
        %p440 = pneg %p198
        %p441 = pneg %p195
        %p442 = pneg %p219
        %p443 = pneg %p216
        %p444 = pneg %p240
        %p445 = pneg %p237
        %p446 = pneg %p261
        %p447 = pneg %p258
        %p448 = pneg %p282
        %p449 = pneg %p279
        %p450 = pneg %p303
        %p451 = pneg %p300
        %p452 = pneg %p329
        %p453 = pneg %p326
        %s454 = sand.u32 %s316, 1
        %s455 = scalar_lea.sflag [#allocation5], %s454
        %s456 = sand.u32 %s316, 1
        %s457 = smul.addr %s456, 128
        %s458 = scalar_lea.vmem [#allocation6], %s457
        %v460 = vld [vmem:[%s416] sm:$0xf]
        %v461 = vld [vmem:[%s416 + $0x4] sm:$0xf]
        %v462 = vld [vmem:[%s416 + $0x8] sm:$0xf]
        %v463 = vld [vmem:[%s416 + $0xc] sm:$0xf]
        %v464 = vld [vmem:[%s416 + $0x10] sm:$0xf]
        %v465 = vld [vmem:[%s416 + $0x14] sm:$0xf]
        %v466 = vld [vmem:[%s416 + $0x18] sm:$0xf]
        %v467 = vld [vmem:[%s416 + $0x1c] sm:$0xf]
        %v468 = vld [vmem:[%s416 + $0x20] sm:$0xf]
        %v469 = vld [vmem:[%s416 + $0x24] sm:$0xf]
        %v470 = vld [vmem:[%s416 + $0x28] sm:$0xf]
        %v471 = vld [vmem:[%s416 + $0x2c] sm:$0xf]
        %v472 = vld [vmem:[%s416 + $0x30] sm:$0xf]
        %v473 = vld [vmem:[%s416 + $0x34] sm:$0xf]
        %v474 = vld [vmem:[%s416 + $0x38] sm:$0xf]
        %v475 = vld [vmem:[%s416 + $0x3c] sm:$0xf]
        %v476 = vld [vmem:[%s416 + $0x40] sm:$0xf]
        %v477 = vld [vmem:[%s416 + $0x44] sm:$0xf]
        %v478 = vld [vmem:[%s416 + $0x48] sm:$0xf]
        %v479 = vld [vmem:[%s416 + $0x4c] sm:$0xf]
        %v480 = vld [vmem:[%s416 + $0x50] sm:$0xf]
        %v481 = vld [vmem:[%s416 + $0x54] sm:$0xf]
        %v482 = vld [vmem:[%s416 + $0x58] sm:$0xf]
        %v483 = vld [vmem:[%s416 + $0x5c] sm:$0xf]
        %v484 = vld [vmem:[%s416 + $0x60] sm:$0xf]
        %v485 = vld [vmem:[%s416 + $0x64] sm:$0xf]
        %v486 = vld [vmem:[%s416 + $0x68] sm:$0xf]
        %v487 = vld [vmem:[%s416 + $0x6c] sm:$0xf]
        %v488 = vld [vmem:[%s416 + $0x70] sm:$0xf]
        %v489 = vld [vmem:[%s416 + $0x74] sm:$0xf]
        %v490 = vld [vmem:[%s416 + $0x78] sm:$0xf]
        %v491 = vld [vmem:[%s416 + $0x7c] sm:$0xf]
        %v492 = vld [vmem:[%s1] sm:$0xf]
        %v493 = vld [vmem:[%s1 + $0x4] sm:$0xf]
        %v526 = vunpack.c.l.b16 %v460
        %v527 = vunpack.c.l.b16 %v461
        %v528 = vunpack.c.l.b16 %v462
        %v529 = vunpack.c.l.b16 %v463
        %v530 = vunpack.c.l.b16 %v464
        %v531 = vunpack.c.l.b16 %v465
        %v532 = vunpack.c.l.b16 %v466
        %v533 = vunpack.c.l.b16 %v467
        %v534 = vunpack.c.l.b16 %v468
        %v535 = vunpack.c.l.b16 %v469
        %v536 = vunpack.c.l.b16 %v470
        %v537 = vunpack.c.l.b16 %v471
        %v538 = vunpack.c.l.b16 %v472
        %v539 = vunpack.c.l.b16 %v473
        %v540 = vunpack.c.l.b16 %v474
        %v541 = vunpack.c.l.b16 %v475
        %v542 = vunpack.c.l.b16 %v476
        %v543 = vunpack.c.l.b16 %v477
        %v544 = vunpack.c.l.b16 %v478
        %v545 = vunpack.c.l.b16 %v479
        %v546 = vunpack.c.l.b16 %v480
        %v547 = vunpack.c.l.b16 %v481
        %v548 = vunpack.c.l.b16 %v482
        %v549 = vunpack.c.l.b16 %v483
        %v550 = vunpack.c.l.b16 %v484
        %v551 = vunpack.c.l.b16 %v485
        %v552 = vunpack.c.l.b16 %v486
        %v553 = vunpack.c.l.b16 %v487
        %v554 = vunpack.c.l.b16 %v488
        %v555 = vunpack.c.l.b16 %v489
        %v556 = vunpack.c.l.b16 %v490
        %v557 = vunpack.c.l.b16 %v491
        %v558 = vpack.c.b16 %v527, %v526
        %v559 = vpack.c.b16 %v529, %v528
        %v560 = vpack.c.b16 %v531, %v530
        %v561 = vpack.c.b16 %v533, %v532
        %v562 = vpack.c.b16 %v535, %v534
        %v563 = vpack.c.b16 %v537, %v536
        %v564 = vpack.c.b16 %v539, %v538
        %v565 = vpack.c.b16 %v541, %v540
        %v566 = vpack.c.b16 %v543, %v542
        %v567 = vpack.c.b16 %v545, %v544
        %v568 = vpack.c.b16 %v547, %v546
        %v569 = vpack.c.b16 %v549, %v548
        %v570 = vpack.c.b16 %v551, %v550
        %v571 = vpack.c.b16 %v553, %v552
        %v572 = vpack.c.b16 %v555, %v554
        %v573 = vpack.c.b16 %v557, %v556
        %v576 = vunpack.c.l.b16 %v492
        %v577 = vunpack.c.l.b16 %v493
        %v578 = vpack.c.b16 %v577, %v576
        %vm580 = vcmask 130048
        %v582 = vsel %vm580, %v558, 0
        %v585 = vsel %vm580, %v559, 0
        %v588 = vsel %vm580, %v560, 0
        %v591 = vsel %vm580, %v561, 0
        %v594 = vsel %vm580, %v562, 0
        %v597 = vsel %vm580, %v563, 0
        %v600 = vsel %vm580, %v564, 0
        %v603 = vsel %vm580, %v565, 0
        %v606 = vsel %vm580, %v566, 0
        %v609 = vsel %vm580, %v567, 0
        %v612 = vsel %vm580, %v568, 0
        %v615 = vsel %vm580, %v569, 0
        %v618 = vsel %vm580, %v570, 0
        %v621 = vsel %vm580, %v571, 0
        %v624 = vsel %vm580, %v572, 0
        %v627 = vsel %vm580, %v573, 0
        %629 = vmatprep.subr.bf16.mxu0 0
        %630 = vmatpush1.bf16.msra.mxu0 0
        %631 = vmatprep.subr.bf16.mxu0 0
        %632 = vmatpush1.bf16.msra.mxu0 0
        %633 = vmatprep.subr.bf16.mxu0 0
        %634 = vmatpush1.bf16.msra.mxu0 0
        %635 = vmatprep.subr.bf16.mxu0 0
        %636 = vmatpush1.bf16.msra.mxu0 0
        %637 = vmatprep.subr.bf16.mxu0 0
        %638 = vmatpush1.bf16.msra.mxu0 0
        %639 = vmatprep.subr.bf16.mxu0 0
        %640 = vmatpush1.bf16.msra.mxu0 0
        %641 = vmatprep.subr.bf16.mxu0 0
        %642 = vmatpush1.bf16.msra.mxu0 0
        %643 = vmatprep.subr.bf16.mxu0 0
        %644 = vmatpush1.bf16.msra.mxu0 %v578
        %645 = vmatprep.subr.bf16.mxu0 0
        %646 = vmatpush2.bf16.msra.mxu0 0
        %647 = vmatprep.subr.bf16.mxu0 0
        %648 = vmatpush2.bf16.msra.mxu0 0
        %649 = vmatprep.subr.bf16.mxu0 0
        %650 = vmatpush2.bf16.msra.mxu0 0
        %651 = vmatprep.subr.bf16.mxu0 0
        %652 = vmatpush2.bf16.msra.mxu0 0
        %653 = vmatprep.subr.bf16.mxu0 0
        %654 = vmatpush2.bf16.msra.mxu0 0
        %655 = vmatprep.subr.bf16.mxu0 0
        %656 = vmatpush2.bf16.msra.mxu0 0
        %657 = vmatprep.subr.bf16.mxu0 0
        %658 = vmatpush2.bf16.msra.mxu0 0
        %659 = vmatprep.subr.bf16.mxu0 0
        %660 = vmatpush2.bf16.msra.mxu0 0
        %661 = vmatprep.mubr.bf16.mxu0 0
        %662 = vmatmul.mubr.bf16.gmra.mxu0 %v582
        %v663 = vpop.f32.mrf.mxu0
        %v664 = vadd.f32 0.0, %v663
        %v665 = vpop.f32.mrf.mxu0
        %v666 = vpop.f32.mrf.mxu0
        %v667 = vadd.f32 0.0, %v666
        %v668 = vpop.f32.mrf.mxu0
        %669 = vmatprep.mubr.bf16.mxu0 0
        %670 = vmatmul.mubr.bf16.gmra.mxu0 %v585
        %v671 = vpop.f32.mrf.mxu0
        %v672 = vadd.f32 0.0, %v671
        %v673 = vpop.f32.mrf.mxu0
        %v674 = vpop.f32.mrf.mxu0
        %v675 = vadd.f32 0.0, %v674
        %v676 = vpop.f32.mrf.mxu0
        %677 = vmatprep.mubr.bf16.mxu0 0
        %678 = vmatmul.mubr.bf16.gmra.mxu0 %v588
        %v679 = vpop.f32.mrf.mxu0
        %v680 = vadd.f32 0.0, %v679
        %v681 = vpop.f32.mrf.mxu0
        %v682 = vpop.f32.mrf.mxu0
        %v683 = vadd.f32 0.0, %v682
        %v684 = vpop.f32.mrf.mxu0
        %685 = vmatprep.mubr.bf16.mxu0 0
        %686 = vmatmul.mubr.bf16.gmra.mxu0 %v591
        %v687 = vpop.f32.mrf.mxu0
        %v688 = vadd.f32 0.0, %v687
        %v689 = vpop.f32.mrf.mxu0
        %v690 = vpop.f32.mrf.mxu0
        %v691 = vadd.f32 0.0, %v690
        %v692 = vpop.f32.mrf.mxu0
        %693 = vmatprep.mubr.bf16.mxu0 0
        %694 = vmatmul.mubr.bf16.gmra.mxu0 %v594
        %v695 = vpop.f32.mrf.mxu0
        %v696 = vadd.f32 0.0, %v695
        %v697 = vpop.f32.mrf.mxu0
        %v698 = vpop.f32.mrf.mxu0
        %v699 = vadd.f32 0.0, %v698
        %v700 = vpop.f32.mrf.mxu0
        %701 = vmatprep.mubr.bf16.mxu0 0
        %702 = vmatmul.mubr.bf16.gmra.mxu0 %v597
        %v703 = vpop.f32.mrf.mxu0
        %v704 = vadd.f32 0.0, %v703
        %v705 = vpop.f32.mrf.mxu0
        %v706 = vpop.f32.mrf.mxu0
        %v707 = vadd.f32 0.0, %v706
        %v708 = vpop.f32.mrf.mxu0
        %709 = vmatprep.mubr.bf16.mxu0 0
        %710 = vmatmul.mubr.bf16.gmra.mxu0 %v600
        %v711 = vpop.f32.mrf.mxu0
        %v712 = vadd.f32 0.0, %v711
        %v713 = vpop.f32.mrf.mxu0
        %v714 = vpop.f32.mrf.mxu0
        %v715 = vadd.f32 0.0, %v714
        %v716 = vpop.f32.mrf.mxu0
        %717 = vmatprep.mubr.bf16.mxu0 0
        %718 = vmatmul.mubr.bf16.gmra.mxu0 %v603
        %v719 = vpop.f32.mrf.mxu0
        %v720 = vadd.f32 0.0, %v719
        %v721 = vpop.f32.mrf.mxu0
        %v722 = vpop.f32.mrf.mxu0
        %v723 = vadd.f32 0.0, %v722
        %v724 = vpop.f32.mrf.mxu0
        %725 = vmatprep.mubr.bf16.mxu0 0
        %726 = vmatmul.mubr.bf16.gmra.mxu0 %v606
        %v727 = vpop.f32.mrf.mxu0
        %v728 = vadd.f32 0.0, %v727
        %v729 = vpop.f32.mrf.mxu0
        %v730 = vpop.f32.mrf.mxu0
        %v731 = vadd.f32 0.0, %v730
        %v732 = vpop.f32.mrf.mxu0
        %733 = vmatprep.mubr.bf16.mxu0 0
        %734 = vmatmul.mubr.bf16.gmra.mxu0 %v609
        %v735 = vpop.f32.mrf.mxu0
        %v736 = vadd.f32 0.0, %v735
        %v737 = vpop.f32.mrf.mxu0
        %v738 = vpop.f32.mrf.mxu0
        %v739 = vadd.f32 0.0, %v738
        %v740 = vpop.f32.mrf.mxu0
        %741 = vmatprep.mubr.bf16.mxu0 0
        %742 = vmatmul.mubr.bf16.gmra.mxu0 %v612
        %v743 = vpop.f32.mrf.mxu0
        %v744 = vadd.f32 0.0, %v743
        %v745 = vpop.f32.mrf.mxu0
        %v746 = vpop.f32.mrf.mxu0
        %v747 = vadd.f32 0.0, %v746
        %v748 = vpop.f32.mrf.mxu0
        %749 = vmatprep.mubr.bf16.mxu0 0
        %750 = vmatmul.mubr.bf16.gmra.mxu0 %v615
        %v751 = vpop.f32.mrf.mxu0
        %v752 = vadd.f32 0.0, %v751
        %v753 = vpop.f32.mrf.mxu0
        %v754 = vpop.f32.mrf.mxu0
        %v755 = vadd.f32 0.0, %v754
        %v756 = vpop.f32.mrf.mxu0
        %757 = vmatprep.mubr.bf16.mxu0 0
        %758 = vmatmul.mubr.bf16.gmra.mxu0 %v618
        %v759 = vpop.f32.mrf.mxu0
        %v760 = vadd.f32 0.0, %v759
        %v761 = vpop.f32.mrf.mxu0
        %v762 = vpop.f32.mrf.mxu0
        %v763 = vadd.f32 0.0, %v762
        %v764 = vpop.f32.mrf.mxu0
        %765 = vmatprep.mubr.bf16.mxu0 0
        %766 = vmatmul.mubr.bf16.gmra.mxu0 %v621
        %v767 = vpop.f32.mrf.mxu0
        %v768 = vadd.f32 0.0, %v767
        %v769 = vpop.f32.mrf.mxu0
        %v770 = vpop.f32.mrf.mxu0
        %v771 = vadd.f32 0.0, %v770
        %v772 = vpop.f32.mrf.mxu0
        %773 = vmatprep.mubr.bf16.mxu0 0
        %774 = vmatmul.mubr.bf16.gmra.mxu0 %v624
        %v775 = vpop.f32.mrf.mxu0
        %v776 = vadd.f32 0.0, %v775
        %v777 = vpop.f32.mrf.mxu0
        %v778 = vpop.f32.mrf.mxu0
        %v779 = vadd.f32 0.0, %v778
        %v780 = vpop.f32.mrf.mxu0
        %781 = vmatprep.mubr.bf16.mxu0 0
        %782 = vmatmul.mubr.bf16.gmra.mxu0 %v627
        %v783 = vpop.f32.mrf.mxu0
        %v784 = vadd.f32 0.0, %v783
        %v785 = vpop.f32.mrf.mxu0
        %v786 = vpop.f32.mrf.mxu0
        %v787 = vadd.f32 0.0, %v786
        %v788 = vpop.f32.mrf.mxu0
        %789 = vdwg.mxu0
        %v790 = vld [vmem:[%s2] sm:$0x1]
        %v792 = vlaneseq
        %v793 = vshrl.u32 %v792, 7
        %v794 = vsub.s32 0, %v793
        %v795 = vrot.slane %v790, %v794
        %v797 = vmul.f32 %v664, %v795
        %v798 = vmul.f32 %v667, %v795
        %v799 = vmul.f32 %v672, %v795
        %v800 = vmul.f32 %v675, %v795
        %v801 = vmul.f32 %v680, %v795
        %v802 = vmul.f32 %v683, %v795
        %v803 = vmul.f32 %v688, %v795
        %v804 = vmul.f32 %v691, %v795
        %v805 = vmul.f32 %v696, %v795
        %v806 = vmul.f32 %v699, %v795
        %v807 = vmul.f32 %v704, %v795
        %v808 = vmul.f32 %v707, %v795
        %v809 = vmul.f32 %v712, %v795
        %v810 = vmul.f32 %v715, %v795
        %v811 = vmul.f32 %v720, %v795
        %v812 = vmul.f32 %v723, %v795
        %v813 = vmul.f32 %v728, %v795
        %v814 = vmul.f32 %v731, %v795
        %v815 = vmul.f32 %v736, %v795
        %v816 = vmul.f32 %v739, %v795
        %v817 = vmul.f32 %v744, %v795
        %v818 = vmul.f32 %v747, %v795
        %v819 = vmul.f32 %v752, %v795
        %v820 = vmul.f32 %v755, %v795
        %v821 = vmul.f32 %v760, %v795
        %v822 = vmul.f32 %v763, %v795
        %v823 = vmul.f32 %v768, %v795
        %v824 = vmul.f32 %v771, %v795
        %v825 = vmul.f32 %v776, %v795
        %v826 = vmul.f32 %v779, %v795
        %v827 = vmul.f32 %v784, %v795
        %v828 = vmul.f32 %v787, %v795
        %v829 = vld [vmem:[%s3] sm:$0x1]
        %v831 = vlaneseq
        %v832 = vshrl.u32 %v831, 7
        %v833 = vsub.s32 0, %v832
        %v834 = vrot.slane %v829, %v833
        %v836 = vadd.f32 %v797, %v834
        %v837 = vadd.f32 %v798, %v834
        %v838 = vadd.f32 %v799, %v834
        %v839 = vadd.f32 %v800, %v834
        %v840 = vadd.f32 %v801, %v834
        %v841 = vadd.f32 %v802, %v834
        %v842 = vadd.f32 %v803, %v834
        %v843 = vadd.f32 %v804, %v834
        %v844 = vadd.f32 %v805, %v834
        %v845 = vadd.f32 %v806, %v834
        %v846 = vadd.f32 %v807, %v834
        %v847 = vadd.f32 %v808, %v834
        %v848 = vadd.f32 %v809, %v834
        %v849 = vadd.f32 %v810, %v834
        %v850 = vadd.f32 %v811, %v834
        %v851 = vadd.f32 %v812, %v834
        %v852 = vadd.f32 %v813, %v834
        %v853 = vadd.f32 %v814, %v834
        %v854 = vadd.f32 %v815, %v834
        %v855 = vadd.f32 %v816, %v834
        %v856 = vadd.f32 %v817, %v834
        %v857 = vadd.f32 %v818, %v834
        %v858 = vadd.f32 %v819, %v834
        %v859 = vadd.f32 %v820, %v834
        %v860 = vadd.f32 %v821, %v834
        %v861 = vadd.f32 %v822, %v834
        %v862 = vadd.f32 %v823, %v834
        %v863 = vadd.f32 %v824, %v834
        %v864 = vadd.f32 %v825, %v834
        %v865 = vadd.f32 %v826, %v834
        %v866 = vadd.f32 %v827, %v834
        %v867 = vadd.f32 %v828, %v834
        %v868 = vmax.f32 %v836, 0.0
        %v869 = vmax.f32 %v837, 0.0
        %v870 = vmax.f32 %v838, 0.0
        %v871 = vmax.f32 %v839, 0.0
        %v872 = vmax.f32 %v840, 0.0
        %v873 = vmax.f32 %v841, 0.0
        %v874 = vmax.f32 %v842, 0.0
        %v875 = vmax.f32 %v843, 0.0
        %v876 = vmax.f32 %v844, 0.0
        %v877 = vmax.f32 %v845, 0.0
        %v878 = vmax.f32 %v846, 0.0
        %v879 = vmax.f32 %v847, 0.0
        %v880 = vmax.f32 %v848, 0.0
        %v881 = vmax.f32 %v849, 0.0
        %v882 = vmax.f32 %v850, 0.0
        %v883 = vmax.f32 %v851, 0.0
        %v884 = vmax.f32 %v852, 0.0
        %v885 = vmax.f32 %v853, 0.0
        %v886 = vmax.f32 %v854, 0.0
        %v887 = vmax.f32 %v855, 0.0
        %v888 = vmax.f32 %v856, 0.0
        %v889 = vmax.f32 %v857, 0.0
        %v890 = vmax.f32 %v858, 0.0
        %v891 = vmax.f32 %v859, 0.0
        %v892 = vmax.f32 %v860, 0.0
        %v893 = vmax.f32 %v861, 0.0
        %v894 = vmax.f32 %v862, 0.0
        %v895 = vmax.f32 %v863, 0.0
        %v896 = vmax.f32 %v864, 0.0
        %v897 = vmax.f32 %v865, 0.0
        %v898 = vmax.f32 %v866, 0.0
        %v899 = vmax.f32 %v867, 0.0
        %vm900 = vcmask 125952
        %901 = vst.msk [vmem:[#allocation2] sm:$0xf] %vm900, 0
        %902 = vst.msk [vmem:[#allocation2 + $0x4] sm:$0xf] %vm900, 0
        %903 = vst.msk [vmem:[#allocation2 + $0x8] sm:$0xf] %vm900, 0
        %904 = vst.msk [vmem:[#allocation2 + $0xc] sm:$0xf] %vm900, 0
        %905 = vst.msk [vmem:[#allocation2 + $0x10] sm:$0xf] %vm900, 0
        %s906 = scalar_lea.vmem [#allocation2], 340
        %907 = vst.msk [vmem:[%s906] sm:$0xf] %vm900, 0
        %908 = vst.msk [vmem:[%s906 + $0x4] sm:$0xf] %vm900, 0
        %909 = vst.msk [vmem:[%s906 + $0x8] sm:$0xf] %vm900, 0
        %910 = vst.msk [vmem:[%s906 + $0xc] sm:$0xf] %vm900, 0
        %911 = vst.msk [vmem:[%s906 + $0x10] sm:$0xf] %vm900, 0
        %912 = vst.msk [vmem:[#allocation2 + $0x4] sm:$0xf] %vm900, 0
        %913 = vst.msk [vmem:[#allocation2 + $0x18] sm:$0xf] %vm900, 0
        %914 = vst.msk [vmem:[#allocation2 + $0x2c] sm:$0xf] %vm900, 0
        %915 = vst.msk [vmem:[#allocation2 + $0x40] sm:$0xf] %vm900, 0
        %916 = vst.msk [vmem:[#allocation2 + $0x54] sm:$0xf] %vm900, 0
        %917 = vst.msk [vmem:[#allocation2 + $0x68] sm:$0xf] %vm900, 0
        %918 = vst.msk [vmem:[#allocation2 + $0x7c] sm:$0xf] %vm900, 0
        %919 = vst.msk [vmem:[#allocation2 + $0x90] sm:$0xf] %vm900, 0
        %920 = vst.msk [vmem:[#allocation2 + $0xa4] sm:$0xf] %vm900, 0
        %921 = vst.msk [vmem:[#allocation2 + $0xb8] sm:$0xf] %vm900, 0
        %922 = vst.msk [vmem:[#allocation2 + $0xcc] sm:$0xf] %vm900, 0
        %923 = vst.msk [vmem:[#allocation2 + $0xe0] sm:$0xf] %vm900, 0
        %924 = vst.msk [vmem:[#allocation2 + $0xf4] sm:$0xf] %vm900, 0
        %925 = vst.msk [vmem:[#allocation2 + $0x108] sm:$0xf] %vm900, 0
        %926 = vst.msk [vmem:[#allocation2 + $0x11c] sm:$0xf] %vm900, 0
        %927 = vst.msk [vmem:[#allocation2 + $0x130] sm:$0xf] %vm900, 0
        %928 = vst.msk [vmem:[#allocation2 + $0x144] sm:$0xf] %vm900, 0
        %929 = vst.msk [vmem:[#allocation2 + $0x158] sm:$0xf] %vm900, 0
        %930 = vst.msk [vmem:[#allocation2 + $0x10] sm:$0xf] %vm900, 0
        %931 = vst.msk [vmem:[#allocation2 + $0x24] sm:$0xf] %vm900, 0
        %932 = vst.msk [vmem:[#allocation2 + $0x38] sm:$0xf] %vm900, 0
        %933 = vst.msk [vmem:[#allocation2 + $0x4c] sm:$0xf] %vm900, 0
        %934 = vst.msk [vmem:[#allocation2 + $0x60] sm:$0xf] %vm900, 0
        %935 = vst.msk [vmem:[#allocation2 + $0x74] sm:$0xf] %vm900, 0
        %936 = vst.msk [vmem:[#allocation2 + $0x88] sm:$0xf] %vm900, 0
        %937 = vst.msk [vmem:[#allocation2 + $0x9c] sm:$0xf] %vm900, 0
        %938 = vst.msk [vmem:[#allocation2 + $0xb0] sm:$0xf] %vm900, 0
        %939 = vst.msk [vmem:[#allocation2 + $0xc4] sm:$0xf] %vm900, 0
        %940 = vst.msk [vmem:[#allocation2 + $0xd8] sm:$0xf] %vm900, 0
        %941 = vst.msk [vmem:[#allocation2 + $0xec] sm:$0xf] %vm900, 0
        %942 = vst.msk [vmem:[#allocation2 + $0x100] sm:$0xf] %vm900, 0
        %943 = vst.msk [vmem:[#allocation2 + $0x114] sm:$0xf] %vm900, 0
        %944 = vst.msk [vmem:[#allocation2 + $0x128] sm:$0xf] %vm900, 0
        %945 = vst.msk [vmem:[#allocation2 + $0x13c] sm:$0xf] %vm900, 0
        %946 = vst.msk [vmem:[#allocation2 + $0x150] sm:$0xf] %vm900, 0
        %947 = vst.msk [vmem:[#allocation2 + $0x164] sm:$0xf] %vm900, 0
        %v948 = vpack.c.bf16 %v869, %v868
        %v949 = vpack.c.bf16 %v871, %v870
        %v950 = vpack.c.bf16 %v873, %v872
        %v951 = vpack.c.bf16 %v875, %v874
        %v952 = vpack.c.bf16 %v877, %v876
        %v953 = vpack.c.bf16 %v879, %v878
        %v954 = vpack.c.bf16 %v881, %v880
        %v955 = vpack.c.bf16 %v883, %v882
        %v956 = vpack.c.bf16 %v885, %v884
        %v957 = vpack.c.bf16 %v887, %v886
        %v958 = vpack.c.bf16 %v889, %v888
        %v959 = vpack.c.bf16 %v891, %v890
        %v960 = vpack.c.bf16 %v893, %v892
        %v961 = vpack.c.bf16 %v895, %v894
        %v962 = vpack.c.bf16 %v897, %v896
        %v963 = vpack.c.bf16 %v899, %v898
        %v980 = vunpack.c.l.b16 %v948
        %v981 = vunpack.c.h.b16 %v948
        %v982 = vunpack.c.l.b16 %v949
        %v983 = vunpack.c.h.b16 %v949
        %v984 = vunpack.c.l.b16 %v950
        %v985 = vunpack.c.h.b16 %v950
        %v986 = vunpack.c.l.b16 %v951
        %v987 = vunpack.c.h.b16 %v951
        %v988 = vunpack.c.l.b16 %v952
        %v989 = vunpack.c.h.b16 %v952
        %v990 = vunpack.c.l.b16 %v953
        %v991 = vunpack.c.h.b16 %v953
        %v992 = vunpack.c.l.b16 %v954
        %v993 = vunpack.c.h.b16 %v954
        %v994 = vunpack.c.l.b16 %v955
        %v995 = vunpack.c.h.b16 %v955
        %v996 = vunpack.c.l.b16 %v956
        %v997 = vunpack.c.h.b16 %v956
        %v998 = vunpack.c.l.b16 %v957
        %v999 = vunpack.c.h.b16 %v957
        %v1000 = vunpack.c.l.b16 %v958
        %v1001 = vunpack.c.h.b16 %v958
        %v1002 = vunpack.c.l.b16 %v959
        %v1003 = vunpack.c.h.b16 %v959
        %v1004 = vunpack.c.l.b16 %v960
        %v1005 = vunpack.c.h.b16 %v960
        %v1006 = vunpack.c.l.b16 %v961
        %v1007 = vunpack.c.h.b16 %v961
        %v1008 = vunpack.c.l.b16 %v962
        %v1009 = vunpack.c.h.b16 %v962
        %v1010 = vunpack.c.l.b16 %v963
        %v1011 = vunpack.c.h.b16 %v963
        %v1012 = vpack.c.b16 %v980, %v980
        %v1013 = vpack.c.b16 %v981, %v981
        %v1014 = vpack.c.b16 %v982, %v982
        %v1015 = vpack.c.b16 %v983, %v983
        %v1016 = vpack.c.b16 %v984, %v984
        %v1017 = vpack.c.b16 %v985, %v985
        %v1018 = vpack.c.b16 %v986, %v986
        %v1019 = vpack.c.b16 %v987, %v987
        %v1020 = vpack.c.b16 %v988, %v988
        %v1021 = vpack.c.b16 %v989, %v989
        %v1022 = vpack.c.b16 %v990, %v990
        %v1023 = vpack.c.b16 %v991, %v991
        %v1024 = vpack.c.b16 %v992, %v992
        %v1025 = vpack.c.b16 %v993, %v993
        %v1026 = vpack.c.b16 %v994, %v994
        %v1027 = vpack.c.b16 %v995, %v995
        %v1028 = vpack.c.b16 %v996, %v996
        %v1029 = vpack.c.b16 %v997, %v997
        %v1030 = vpack.c.b16 %v998, %v998
        %v1031 = vpack.c.b16 %v999, %v999
        %v1032 = vpack.c.b16 %v1000, %v1000
        %v1033 = vpack.c.b16 %v1001, %v1001
        %v1034 = vpack.c.b16 %v1002, %v1002
        %v1035 = vpack.c.b16 %v1003, %v1003
        %v1036 = vpack.c.b16 %v1004, %v1004
        %v1037 = vpack.c.b16 %v1005, %v1005
        %v1038 = vpack.c.b16 %v1006, %v1006
        %v1039 = vpack.c.b16 %v1007, %v1007
        %v1040 = vpack.c.b16 %v1008, %v1008
        %v1041 = vpack.c.b16 %v1009, %v1009
        %v1042 = vpack.c.b16 %v1010, %v1010
        %v1043 = vpack.c.b16 %v1011, %v1011
        %s1076 = scalar_lea.vmem [#allocation2], 20
        %1077 = vst.msk [vmem:[%s1076 + $0x8] sm:$0xf] %vm900, %v1012
        %1078 = vst.msk [vmem:[%s1076 + $0xc] sm:$0xf] %vm900, %v1013
        %1079 = vst.msk [vmem:[%s1076 + $0x1c] sm:$0xf] %vm900, %v1014
        %1080 = vst.msk [vmem:[%s1076 + $0x20] sm:$0xf] %vm900, %v1015
        %1081 = vst.msk [vmem:[%s1076 + $0x30] sm:$0xf] %vm900, %v1016
        %1082 = vst.msk [vmem:[%s1076 + $0x34] sm:$0xf] %vm900, %v1017
        %1083 = vst.msk [vmem:[%s1076 + $0x44] sm:$0xf] %vm900, %v1018
        %1084 = vst.msk [vmem:[%s1076 + $0x48] sm:$0xf] %vm900, %v1019
        %1085 = vst.msk [vmem:[%s1076 + $0x58] sm:$0xf] %vm900, %v1020
        %1086 = vst.msk [vmem:[%s1076 + $0x5c] sm:$0xf] %vm900, %v1021
        %1087 = vst.msk [vmem:[%s1076 + $0x6c] sm:$0xf] %vm900, %v1022
        %1088 = vst.msk [vmem:[%s1076 + $0x70] sm:$0xf] %vm900, %v1023
        %1089 = vst.msk [vmem:[%s1076 + $0x80] sm:$0xf] %vm900, %v1024
        %1090 = vst.msk [vmem:[%s1076 + $0x84] sm:$0xf] %vm900, %v1025
        %1091 = vst.msk [vmem:[%s1076 + $0x94] sm:$0xf] %vm900, %v1026
        %1092 = vst.msk [vmem:[%s1076 + $0x98] sm:$0xf] %vm900, %v1027
        %1093 = vst.msk [vmem:[%s1076 + $0xa8] sm:$0xf] %vm900, %v1028
        %1094 = vst.msk [vmem:[%s1076 + $0xac] sm:$0xf] %vm900, %v1029
        %1095 = vst.msk [vmem:[%s1076 + $0xbc] sm:$0xf] %vm900, %v1030
        %1096 = vst.msk [vmem:[%s1076 + $0xc0] sm:$0xf] %vm900, %v1031
        %1097 = vst.msk [vmem:[%s1076 + $0xd0] sm:$0xf] %vm900, %v1032
        %1098 = vst.msk [vmem:[%s1076 + $0xd4] sm:$0xf] %vm900, %v1033
        %1099 = vst.msk [vmem:[%s1076 + $0xe4] sm:$0xf] %vm900, %v1034
        %1100 = vst.msk [vmem:[%s1076 + $0xe8] sm:$0xf] %vm900, %v1035
        %1101 = vst.msk [vmem:[%s1076 + $0xf8] sm:$0xf] %vm900, %v1036
        %1102 = vst.msk [vmem:[%s1076 + $0xfc] sm:$0xf] %vm900, %v1037
        %1103 = vst.msk [vmem:[%s1076 + $0x10c] sm:$0xf] %vm900, %v1038
        %1104 = vst.msk [vmem:[%s1076 + $0x110] sm:$0xf] %vm900, %v1039
        %1105 = vst.msk [vmem:[%s1076 + $0x120] sm:$0xf] %vm900, %v1040
        %1106 = vst.msk [vmem:[%s1076 + $0x124] sm:$0xf] %vm900, %v1041
        %1107 = vst.msk [vmem:[%s1076 + $0x134] sm:$0xf] %vm900, %v1042
        %1108 = vst.msk [vmem:[%s1076 + $0x138] sm:$0xf] %vm900, %v1043
        %v1109 = vld [vmem:[#allocation2 + $0x4] sm:$0x8]
        %v1110 = vld [vmem:[#allocation2 + $0x8] sm:$0xf]
        %v1111 = vld [vmem:[#allocation2 + $0xc] sm:$0xf]
        %v1112 = vld [vmem:[#allocation2 + $0x18] sm:$0x8]
        %v1113 = vld [vmem:[#allocation2 + $0x1c] sm:$0xf]
        %v1114 = vld [vmem:[#allocation2 + $0x20] sm:$0xf]
        %v1115 = vld [vmem:[#allocation2 + $0x2c] sm:$0x8]
        %v1116 = vld [vmem:[#allocation2 + $0x30] sm:$0xf]
        %v1117 = vld [vmem:[#allocation2 + $0x34] sm:$0xf]
        %v1118 = vld [vmem:[#allocation2 + $0x40] sm:$0x8]
        %v1119 = vld [vmem:[#allocation2 + $0x44] sm:$0xf]
        %v1120 = vld [vmem:[#allocation2 + $0x48] sm:$0xf]
        %v1121 = vld [vmem:[#allocation2 + $0x54] sm:$0x8]
        %v1122 = vld [vmem:[#allocation2 + $0x58] sm:$0xf]
        %v1123 = vld [vmem:[#allocation2 + $0x5c] sm:$0xf]
        %v1124 = vld [vmem:[#allocation2 + $0x68] sm:$0x8]
        %v1125 = vld [vmem:[#allocation2 + $0x6c] sm:$0xf]
        %v1126 = vld [vmem:[#allocation2 + $0x70] sm:$0xf]
        %v1127 = vld [vmem:[#allocation2 + $0x7c] sm:$0x8]
        %v1128 = vld [vmem:[#allocation2 + $0x80] sm:$0xf]
        %v1129 = vld [vmem:[#allocation2 + $0x84] sm:$0xf]
        %v1130 = vld [vmem:[#allocation2 + $0x90] sm:$0x8]
        %v1131 = vld [vmem:[#allocation2 + $0x94] sm:$0xf]
        %v1132 = vld [vmem:[#allocation2 + $0x98] sm:$0xf]
        %v1133 = vld [vmem:[#allocation2 + $0xa4] sm:$0x8]
        %v1134 = vld [vmem:[#allocation2 + $0xa8] sm:$0xf]
        %v1135 = vld [vmem:[#allocation2 + $0xac] sm:$0xf]
        %v1136 = vld [vmem:[#allocation2 + $0xb8] sm:$0x8]
        %v1137 = vld [vmem:[#allocation2 + $0xbc] sm:$0xf]
        %v1138 = vld [vmem:[#allocation2 + $0xc0] sm:$0xf]
        %v1139 = vld [vmem:[#allocation2 + $0xcc] sm:$0x8]
        %v1140 = vld [vmem:[#allocation2 + $0xd0] sm:$0xf]
        %v1141 = vld [vmem:[#allocation2 + $0xd4] sm:$0xf]
        %v1142 = vld [vmem:[#allocation2 + $0xe0] sm:$0x8]
        %v1143 = vld [vmem:[#allocation2 + $0xe4] sm:$0xf]
        %v1144 = vld [vmem:[#allocation2 + $0xe8] sm:$0xf]
        %v1145 = vld [vmem:[#allocation2 + $0xf4] sm:$0x8]
        %v1146 = vld [vmem:[#allocation2 + $0xf8] sm:$0xf]
        %v1147 = vld [vmem:[#allocation2 + $0xfc] sm:$0xf]
        %v1148 = vld [vmem:[#allocation2 + $0x108] sm:$0x8]
        %v1149 = vld [vmem:[#allocation2 + $0x10c] sm:$0xf]
        %v1150 = vld [vmem:[#allocation2 + $0x110] sm:$0xf]
        %v1151 = vld [vmem:[#allocation2 + $0x11c] sm:$0x8]
        %v1152 = vld [vmem:[#allocation2 + $0x120] sm:$0xf]
        %v1153 = vld [vmem:[#allocation2 + $0x124] sm:$0xf]
        %v1154 = vld [vmem:[#allocation2 + $0x130] sm:$0x8]
        %v1155 = vld [vmem:[#allocation2 + $0x134] sm:$0xf]
        %v1156 = vld [vmem:[#allocation2 + $0x138] sm:$0xf]
        %v1157 = vld [vmem:[#allocation2 + $0x10] sm:$0x1]
        %v1158 = vld [vmem:[#allocation2 + $0x24] sm:$0x1]
        %v1159 = vld [vmem:[#allocation2 + $0x38] sm:$0x1]
        %v1160 = vld [vmem:[#allocation2 + $0x4c] sm:$0x1]
        %v1161 = vld [vmem:[#allocation2 + $0x60] sm:$0x1]
        %v1162 = vld [vmem:[#allocation2 + $0x74] sm:$0x1]
        %v1163 = vld [vmem:[#allocation2 + $0x88] sm:$0x1]
        %v1164 = vld [vmem:[#allocation2 + $0x9c] sm:$0x1]
        %v1165 = vld [vmem:[#allocation2 + $0xb0] sm:$0x1]
        %v1166 = vld [vmem:[#allocation2 + $0xc4] sm:$0x1]
        %v1167 = vld [vmem:[#allocation2 + $0xd8] sm:$0x1]
        %v1168 = vld [vmem:[#allocation2 + $0xec] sm:$0x1]
        %v1169 = vld [vmem:[#allocation2 + $0x100] sm:$0x1]
        %v1170 = vld [vmem:[#allocation2 + $0x114] sm:$0x1]
        %v1171 = vld [vmem:[#allocation2 + $0x128] sm:$0x1]
        %v1172 = vld [vmem:[#allocation2 + $0x13c] sm:$0x1]
        %v1221 = vunpack.c.l.b16 %v1109
        %v1222 = vunpack.c.l.b16 %v1110
        %v1223 = vunpack.c.l.b16 %v1111
        %v1224 = vunpack.c.l.b16 %v1112
        %v1225 = vunpack.c.l.b16 %v1113
        %v1226 = vunpack.c.l.b16 %v1114
        %v1227 = vunpack.c.l.b16 %v1115
        %v1228 = vunpack.c.l.b16 %v1116
        %v1229 = vunpack.c.l.b16 %v1117
        %v1230 = vunpack.c.l.b16 %v1118
        %v1231 = vunpack.c.l.b16 %v1119
        %v1232 = vunpack.c.l.b16 %v1120
        %v1233 = vunpack.c.l.b16 %v1121
        %v1234 = vunpack.c.l.b16 %v1122
        %v1235 = vunpack.c.l.b16 %v1123
        %v1236 = vunpack.c.l.b16 %v1124
        %v1237 = vunpack.c.l.b16 %v1125
        %v1238 = vunpack.c.l.b16 %v1126
        %v1239 = vunpack.c.l.b16 %v1127
        %v1240 = vunpack.c.l.b16 %v1128
        %v1241 = vunpack.c.l.b16 %v1129
        %v1242 = vunpack.c.l.b16 %v1130
        %v1243 = vunpack.c.l.b16 %v1131
        %v1244 = vunpack.c.l.b16 %v1132
        %v1245 = vunpack.c.l.b16 %v1133
        %v1246 = vunpack.c.l.b16 %v1134
        %v1247 = vunpack.c.l.b16 %v1135
        %v1248 = vunpack.c.l.b16 %v1136
        %v1249 = vunpack.c.l.b16 %v1137
        %v1250 = vunpack.c.l.b16 %v1138
        %v1251 = vunpack.c.l.b16 %v1139
        %v1252 = vunpack.c.l.b16 %v1140
        %v1253 = vunpack.c.l.b16 %v1141
        %v1254 = vunpack.c.l.b16 %v1142
        %v1255 = vunpack.c.l.b16 %v1143
        %v1256 = vunpack.c.l.b16 %v1144
        %v1257 = vunpack.c.l.b16 %v1145
        %v1258 = vunpack.c.l.b16 %v1146
        %v1259 = vunpack.c.l.b16 %v1147
        %v1260 = vunpack.c.l.b16 %v1148
        %v1261 = vunpack.c.l.b16 %v1149
        %v1262 = vunpack.c.l.b16 %v1150
        %v1263 = vunpack.c.l.b16 %v1151
        %v1264 = vunpack.c.l.b16 %v1152
        %v1265 = vunpack.c.l.b16 %v1153
        %v1266 = vunpack.c.l.b16 %v1154
        %v1267 = vunpack.c.l.b16 %v1155
        %v1268 = vunpack.c.l.b16 %v1156
        %v1269 = vpack.c.b16 %v1222, %v1221
        %v1270 = vpack.c.b16 %v1223, %v1223
        %v1271 = vpack.c.b16 %v1225, %v1224
        %v1272 = vpack.c.b16 %v1226, %v1226
        %v1273 = vpack.c.b16 %v1228, %v1227
        %v1274 = vpack.c.b16 %v1229, %v1229
        %v1275 = vpack.c.b16 %v1231, %v1230
        %v1276 = vpack.c.b16 %v1232, %v1232
        %v1277 = vpack.c.b16 %v1234, %v1233
        %v1278 = vpack.c.b16 %v1235, %v1235
        %v1279 = vpack.c.b16 %v1237, %v1236
        %v1280 = vpack.c.b16 %v1238, %v1238
        %v1281 = vpack.c.b16 %v1240, %v1239
        %v1282 = vpack.c.b16 %v1241, %v1241
        %v1283 = vpack.c.b16 %v1243, %v1242
        %v1284 = vpack.c.b16 %v1244, %v1244
        %v1285 = vpack.c.b16 %v1246, %v1245
        %v1286 = vpack.c.b16 %v1247, %v1247
        %v1287 = vpack.c.b16 %v1249, %v1248
        %v1288 = vpack.c.b16 %v1250, %v1250
        %v1289 = vpack.c.b16 %v1252, %v1251
        %v1290 = vpack.c.b16 %v1253, %v1253
        %v1291 = vpack.c.b16 %v1255, %v1254
        %v1292 = vpack.c.b16 %v1256, %v1256
        %v1293 = vpack.c.b16 %v1258, %v1257
        %v1294 = vpack.c.b16 %v1259, %v1259
        %v1295 = vpack.c.b16 %v1261, %v1260
        %v1296 = vpack.c.b16 %v1262, %v1262
        %v1297 = vpack.c.b16 %v1264, %v1263
        %v1298 = vpack.c.b16 %v1265, %v1265
        %v1299 = vpack.c.b16 %v1267, %v1266
        %v1300 = vpack.c.b16 %v1268, %v1268
        %v1301 = vpack.c.b16 %v1223, %v1222
        %v1302 = vpack.c.b16 %v1226, %v1225
        %v1303 = vpack.c.b16 %v1229, %v1228
        %v1304 = vpack.c.b16 %v1232, %v1231
        %v1305 = vpack.c.b16 %v1235, %v1234
        %v1306 = vpack.c.b16 %v1238, %v1237
        %v1307 = vpack.c.b16 %v1241, %v1240
        %v1308 = vpack.c.b16 %v1244, %v1243
        %v1309 = vpack.c.b16 %v1247, %v1246
        %v1310 = vpack.c.b16 %v1250, %v1249
        %v1311 = vpack.c.b16 %v1253, %v1252
        %v1312 = vpack.c.b16 %v1256, %v1255
        %v1313 = vpack.c.b16 %v1259, %v1258
        %v1314 = vpack.c.b16 %v1262, %v1261
        %v1315 = vpack.c.b16 %v1265, %v1264
        %v1316 = vpack.c.b16 %v1268, %v1267
        %v1318 = vshrl.u32 %v1301, 16
        %v1320 = vrot.slane %v1318, 4
        %v1321 = vshll.u32 %v1301, 16
        %v1323 = vrot.slane %v1321, 5
        %v1324 = vor.u32 %v1320, %v1323
        %v1326 = vshrl.u32 %v1302, 16
        %v1328 = vrot.slane %v1326, 4
        %v1329 = vshll.u32 %v1302, 16
        %v1331 = vrot.slane %v1329, 5
        %v1332 = vor.u32 %v1328, %v1331
        %v1334 = vshrl.u32 %v1303, 16
        %v1336 = vrot.slane %v1334, 4
        %v1337 = vshll.u32 %v1303, 16
        %v1339 = vrot.slane %v1337, 5
        %v1340 = vor.u32 %v1336, %v1339
        %v1342 = vshrl.u32 %v1304, 16
        %v1344 = vrot.slane %v1342, 4
        %v1345 = vshll.u32 %v1304, 16
        %v1347 = vrot.slane %v1345, 5
        %v1348 = vor.u32 %v1344, %v1347
        %v1350 = vshrl.u32 %v1305, 16
        %v1352 = vrot.slane %v1350, 4
        %v1353 = vshll.u32 %v1305, 16
        %v1355 = vrot.slane %v1353, 5
        %v1356 = vor.u32 %v1352, %v1355
        %v1358 = vshrl.u32 %v1306, 16
        %v1360 = vrot.slane %v1358, 4
        %v1361 = vshll.u32 %v1306, 16
        %v1363 = vrot.slane %v1361, 5
        %v1364 = vor.u32 %v1360, %v1363
        %v1366 = vshrl.u32 %v1307, 16
        %v1368 = vrot.slane %v1366, 4
        %v1369 = vshll.u32 %v1307, 16
        %v1371 = vrot.slane %v1369, 5
        %v1372 = vor.u32 %v1368, %v1371
        %v1374 = vshrl.u32 %v1308, 16
        %v1376 = vrot.slane %v1374, 4
        %v1377 = vshll.u32 %v1308, 16
        %v1379 = vrot.slane %v1377, 5
        %v1380 = vor.u32 %v1376, %v1379
        %v1382 = vshrl.u32 %v1309, 16
        %v1384 = vrot.slane %v1382, 4
        %v1385 = vshll.u32 %v1309, 16
        %v1387 = vrot.slane %v1385, 5
        %v1388 = vor.u32 %v1384, %v1387
        %v1390 = vshrl.u32 %v1310, 16
        %v1392 = vrot.slane %v1390, 4
        %v1393 = vshll.u32 %v1310, 16
        %v1395 = vrot.slane %v1393, 5
        %v1396 = vor.u32 %v1392, %v1395
        %v1398 = vshrl.u32 %v1311, 16
        %v1400 = vrot.slane %v1398, 4
        %v1401 = vshll.u32 %v1311, 16
        %v1403 = vrot.slane %v1401, 5
        %v1404 = vor.u32 %v1400, %v1403
        %v1406 = vshrl.u32 %v1312, 16
        %v1408 = vrot.slane %v1406, 4
        %v1409 = vshll.u32 %v1312, 16
        %v1411 = vrot.slane %v1409, 5
        %v1412 = vor.u32 %v1408, %v1411
        %v1414 = vshrl.u32 %v1313, 16
        %v1416 = vrot.slane %v1414, 4
        %v1417 = vshll.u32 %v1313, 16
        %v1419 = vrot.slane %v1417, 5
        %v1420 = vor.u32 %v1416, %v1419
        %v1422 = vshrl.u32 %v1314, 16
        %v1424 = vrot.slane %v1422, 4
        %v1425 = vshll.u32 %v1314, 16
        %v1427 = vrot.slane %v1425, 5
        %v1428 = vor.u32 %v1424, %v1427
        %v1430 = vshrl.u32 %v1315, 16
        %v1432 = vrot.slane %v1430, 4
        %v1433 = vshll.u32 %v1315, 16
        %v1435 = vrot.slane %v1433, 5
        %v1436 = vor.u32 %v1432, %v1435
        %v1438 = vshrl.u32 %v1316, 16
        %v1440 = vrot.slane %v1438, 4
        %v1441 = vshll.u32 %v1316, 16
        %v1443 = vrot.slane %v1441, 5
        %v1444 = vor.u32 %v1440, %v1443
        %1445 = vrot.lane.b32.xlu0 %v1324, 16
        %v1446 = vpop.permute.xlu0 %1445
        %1447 = vrot.lane.b32.xlu0 %v1332, 16
        %v1448 = vpop.permute.xlu0 %1447
        %1449 = vrot.lane.b32.xlu0 %v1340, 16
        %v1450 = vpop.permute.xlu0 %1449
        %1451 = vrot.lane.b32.xlu0 %v1348, 16
        %v1452 = vpop.permute.xlu0 %1451
        %1453 = vrot.lane.b32.xlu0 %v1356, 16
        %v1454 = vpop.permute.xlu0 %1453
        %1455 = vrot.lane.b32.xlu0 %v1364, 16
        %v1456 = vpop.permute.xlu0 %1455
        %1457 = vrot.lane.b32.xlu0 %v1372, 16
        %v1458 = vpop.permute.xlu0 %1457
        %1459 = vrot.lane.b32.xlu0 %v1380, 16
        %v1460 = vpop.permute.xlu0 %1459
        %1461 = vrot.lane.b32.xlu0 %v1388, 16
        %v1462 = vpop.permute.xlu0 %1461
        %1463 = vrot.lane.b32.xlu0 %v1396, 16
        %v1464 = vpop.permute.xlu0 %1463
        %1465 = vrot.lane.b32.xlu0 %v1404, 16
        %v1466 = vpop.permute.xlu0 %1465
        %1467 = vrot.lane.b32.xlu0 %v1412, 16
        %v1468 = vpop.permute.xlu0 %1467
        %1469 = vrot.lane.b32.xlu0 %v1420, 16
        %v1470 = vpop.permute.xlu0 %1469
        %1471 = vrot.lane.b32.xlu0 %v1428, 16
        %v1472 = vpop.permute.xlu0 %1471
        %1473 = vrot.lane.b32.xlu0 %v1436, 16
        %v1474 = vpop.permute.xlu0 %1473
        %1475 = vrot.lane.b32.xlu0 %v1444, 16
        %v1476 = vpop.permute.xlu0 %1475
        %v1493 = vunpack.c.l.b16 %v1157
        %v1494 = vunpack.c.l.b16 %v1158
        %v1495 = vunpack.c.l.b16 %v1159
        %v1496 = vunpack.c.l.b16 %v1160
        %v1497 = vunpack.c.l.b16 %v1161
        %v1498 = vunpack.c.l.b16 %v1162
        %v1499 = vunpack.c.l.b16 %v1163
        %v1500 = vunpack.c.l.b16 %v1164
        %v1501 = vunpack.c.l.b16 %v1165
        %v1502 = vunpack.c.l.b16 %v1166
        %v1503 = vunpack.c.l.b16 %v1167
        %v1504 = vunpack.c.l.b16 %v1168
        %v1505 = vunpack.c.l.b16 %v1169
        %v1506 = vunpack.c.l.b16 %v1170
        %v1507 = vunpack.c.l.b16 %v1171
        %v1508 = vunpack.c.l.b16 %v1172
        %v1509 = vpack.c.b16 %v1493, %v1493
        %v1510 = vpack.c.b16 %v1494, %v1494
        %v1511 = vpack.c.b16 %v1495, %v1495
        %v1512 = vpack.c.b16 %v1496, %v1496
        %v1513 = vpack.c.b16 %v1497, %v1497
        %v1514 = vpack.c.b16 %v1498, %v1498
        %v1515 = vpack.c.b16 %v1499, %v1499
        %v1516 = vpack.c.b16 %v1500, %v1500
        %v1517 = vpack.c.b16 %v1501, %v1501
        %v1518 = vpack.c.b16 %v1502, %v1502
        %v1519 = vpack.c.b16 %v1503, %v1503
        %v1520 = vpack.c.b16 %v1504, %v1504
        %v1521 = vpack.c.b16 %v1505, %v1505
        %v1522 = vpack.c.b16 %v1506, %v1506
        %v1523 = vpack.c.b16 %v1507, %v1507
        %v1524 = vpack.c.b16 %v1508, %v1508
        %vm1525 = vcmask 1042432
        %v1526 = vrot.slane %v1301, 5
        %v1527 = vrot.slane %v1509, 5
        %v1528 = vsel %vm1525, %v1526, %v1527
        %v1529 = vrot.slane %v1302, 5
        %v1530 = vrot.slane %v1510, 5
        %v1531 = vsel %vm1525, %v1529, %v1530
        %v1532 = vrot.slane %v1303, 5
        %v1533 = vrot.slane %v1511, 5
        %v1534 = vsel %vm1525, %v1532, %v1533
        %v1535 = vrot.slane %v1304, 5
        %v1536 = vrot.slane %v1512, 5
        %v1537 = vsel %vm1525, %v1535, %v1536
        %v1538 = vrot.slane %v1305, 5
        %v1539 = vrot.slane %v1513, 5
        %v1540 = vsel %vm1525, %v1538, %v1539
        %v1541 = vrot.slane %v1306, 5
        %v1542 = vrot.slane %v1514, 5
        %v1543 = vsel %vm1525, %v1541, %v1542
        %v1544 = vrot.slane %v1307, 5
        %v1545 = vrot.slane %v1515, 5
        %v1546 = vsel %vm1525, %v1544, %v1545
        %v1547 = vrot.slane %v1308, 5
        %v1548 = vrot.slane %v1516, 5
        %v1549 = vsel %vm1525, %v1547, %v1548
        %v1550 = vrot.slane %v1309, 5
        %v1551 = vrot.slane %v1517, 5
        %v1552 = vsel %vm1525, %v1550, %v1551
        %v1553 = vrot.slane %v1310, 5
        %v1554 = vrot.slane %v1518, 5
        %v1555 = vsel %vm1525, %v1553, %v1554
        %v1556 = vrot.slane %v1311, 5
        %v1557 = vrot.slane %v1519, 5
        %v1558 = vsel %vm1525, %v1556, %v1557
        %v1559 = vrot.slane %v1312, 5
        %v1560 = vrot.slane %v1520, 5
        %v1561 = vsel %vm1525, %v1559, %v1560
        %v1562 = vrot.slane %v1313, 5
        %v1563 = vrot.slane %v1521, 5
        %v1564 = vsel %vm1525, %v1562, %v1563
        %v1565 = vrot.slane %v1314, 5
        %v1566 = vrot.slane %v1522, 5
        %v1567 = vsel %vm1525, %v1565, %v1566
        %v1568 = vrot.slane %v1315, 5
        %v1569 = vrot.slane %v1523, 5
        %v1570 = vsel %vm1525, %v1568, %v1569
        %v1571 = vrot.slane %v1316, 5
        %v1572 = vrot.slane %v1524, 5
        %v1573 = vsel %vm1525, %v1571, %v1572
        %1574 = vrot.lane.b32.xlu0 %v1526, 32
        %v1575 = vpop.permute.xlu0 %1574
        %1576 = vrot.lane.b32.xlu0 %v1528, 32
        %v1577 = vpop.permute.xlu0 %1576
        %1578 = vrot.lane.b32.xlu0 %v1529, 32
        %v1579 = vpop.permute.xlu0 %1578
        %1580 = vrot.lane.b32.xlu0 %v1531, 32
        %v1581 = vpop.permute.xlu0 %1580
        %1582 = vrot.lane.b32.xlu0 %v1532, 32
        %v1583 = vpop.permute.xlu0 %1582
        %1584 = vrot.lane.b32.xlu0 %v1534, 32
        %v1585 = vpop.permute.xlu0 %1584
        %1586 = vrot.lane.b32.xlu0 %v1535, 32
        %v1587 = vpop.permute.xlu0 %1586
        %1588 = vrot.lane.b32.xlu0 %v1537, 32
        %v1589 = vpop.permute.xlu0 %1588
        %1590 = vrot.lane.b32.xlu0 %v1538, 32
        %v1591 = vpop.permute.xlu0 %1590
        %1592 = vrot.lane.b32.xlu0 %v1540, 32
        %v1593 = vpop.permute.xlu0 %1592
        %1594 = vrot.lane.b32.xlu0 %v1541, 32
        %v1595 = vpop.permute.xlu0 %1594
        %1596 = vrot.lane.b32.xlu0 %v1543, 32
        %v1597 = vpop.permute.xlu0 %1596
        %1598 = vrot.lane.b32.xlu0 %v1544, 32
        %v1599 = vpop.permute.xlu0 %1598
        %1600 = vrot.lane.b32.xlu0 %v1546, 32
        %v1601 = vpop.permute.xlu0 %1600
        %1602 = vrot.lane.b32.xlu0 %v1547, 32
        %v1603 = vpop.permute.xlu0 %1602
        %1604 = vrot.lane.b32.xlu0 %v1549, 32
        %v1605 = vpop.permute.xlu0 %1604
        %1606 = vrot.lane.b32.xlu0 %v1550, 32
        %v1607 = vpop.permute.xlu0 %1606
        %1608 = vrot.lane.b32.xlu0 %v1552, 32
        %v1609 = vpop.permute.xlu0 %1608
        %1610 = vrot.lane.b32.xlu0 %v1553, 32
        %v1611 = vpop.permute.xlu0 %1610
        %1612 = vrot.lane.b32.xlu0 %v1555, 32
        %v1613 = vpop.permute.xlu0 %1612
        %1614 = vrot.lane.b32.xlu0 %v1556, 32
        %v1615 = vpop.permute.xlu0 %1614
        %1616 = vrot.lane.b32.xlu0 %v1558, 32
        %v1617 = vpop.permute.xlu0 %1616
        %1618 = vrot.lane.b32.xlu0 %v1559, 32
        %v1619 = vpop.permute.xlu0 %1618
        %1620 = vrot.lane.b32.xlu0 %v1561, 32
        %v1621 = vpop.permute.xlu0 %1620
        %1622 = vrot.lane.b32.xlu0 %v1562, 32
        %v1623 = vpop.permute.xlu0 %1622
        %1624 = vrot.lane.b32.xlu0 %v1564, 32
        %v1625 = vpop.permute.xlu0 %1624
        %1626 = vrot.lane.b32.xlu0 %v1565, 32
        %v1627 = vpop.permute.xlu0 %1626
        %1628 = vrot.lane.b32.xlu0 %v1567, 32
        %v1629 = vpop.permute.xlu0 %1628
        %1630 = vrot.lane.b32.xlu0 %v1568, 32
        %v1631 = vpop.permute.xlu0 %1630
        %1632 = vrot.lane.b32.xlu0 %v1570, 32
        %v1633 = vpop.permute.xlu0 %1632
        %1634 = vrot.lane.b32.xlu0 %v1571, 32
        %v1635 = vpop.permute.xlu0 %1634
        %1636 = vrot.lane.b32.xlu0 %v1573, 32
        %v1637 = vpop.permute.xlu0 %1636
        %v1640 = vsel %vm580, %v1269, %v1446
        %v1642 = vsel %vm580, %v1270, %v1446
        %v1645 = vsel %vm580, %v1271, %v1448
        %v1647 = vsel %vm580, %v1272, %v1448
        %v1650 = vsel %vm580, %v1273, %v1450
        %v1652 = vsel %vm580, %v1274, %v1450
        %v1655 = vsel %vm580, %v1275, %v1452
        %v1657 = vsel %vm580, %v1276, %v1452
        %v1660 = vsel %vm580, %v1277, %v1454
        %v1662 = vsel %vm580, %v1278, %v1454
        %v1665 = vsel %vm580, %v1279, %v1456
        %v1667 = vsel %vm580, %v1280, %v1456
        %v1670 = vsel %vm580, %v1281, %v1458
        %v1672 = vsel %vm580, %v1282, %v1458
        %v1675 = vsel %vm580, %v1283, %v1460
        %v1677 = vsel %vm580, %v1284, %v1460
        %v1680 = vsel %vm580, %v1285, %v1462
        %v1682 = vsel %vm580, %v1286, %v1462
        %v1685 = vsel %vm580, %v1287, %v1464
        %v1687 = vsel %vm580, %v1288, %v1464
        %v1690 = vsel %vm580, %v1289, %v1466
        %v1692 = vsel %vm580, %v1290, %v1466
        %v1695 = vsel %vm580, %v1291, %v1468
        %v1697 = vsel %vm580, %v1292, %v1468
        %v1700 = vsel %vm580, %v1293, %v1470
        %v1702 = vsel %vm580, %v1294, %v1470
        %v1705 = vsel %vm580, %v1295, %v1472
        %v1707 = vsel %vm580, %v1296, %v1472
        %v1710 = vsel %vm580, %v1297, %v1474
        %v1712 = vsel %vm580, %v1298, %v1474
        %v1715 = vsel %vm580, %v1299, %v1476
        %v1717 = vsel %vm580, %v1300, %v1476
        %vm1718 = vcmask 261120
        %v1720 = vsel %vm1718, %v1640, %v1575
        %v1722 = vsel %vm1718, %v1642, %v1577
        %v1724 = vsel %vm1718, %v1645, %v1579
        %v1726 = vsel %vm1718, %v1647, %v1581
        %v1728 = vsel %vm1718, %v1650, %v1583
        %v1730 = vsel %vm1718, %v1652, %v1585
        %v1732 = vsel %vm1718, %v1655, %v1587
        %v1734 = vsel %vm1718, %v1657, %v1589
        %v1736 = vsel %vm1718, %v1660, %v1591
        %v1738 = vsel %vm1718, %v1662, %v1593
        %v1740 = vsel %vm1718, %v1665, %v1595
        %v1742 = vsel %vm1718, %v1667, %v1597
        %v1744 = vsel %vm1718, %v1670, %v1599
        %v1746 = vsel %vm1718, %v1672, %v1601
        %v1748 = vsel %vm1718, %v1675, %v1603
        %v1750 = vsel %vm1718, %v1677, %v1605
        %v1752 = vsel %vm1718, %v1680, %v1607
        %v1754 = vsel %vm1718, %v1682, %v1609
        %v1756 = vsel %vm1718, %v1685, %v1611
        %v1758 = vsel %vm1718, %v1687, %v1613
        %v1760 = vsel %vm1718, %v1690, %v1615
        %v1762 = vsel %vm1718, %v1692, %v1617
        %v1764 = vsel %vm1718, %v1695, %v1619
        %v1766 = vsel %vm1718, %v1697, %v1621
        %v1768 = vsel %vm1718, %v1700, %v1623
        %v1770 = vsel %vm1718, %v1702, %v1625
        %v1772 = vsel %vm1718, %v1705, %v1627
        %v1774 = vsel %vm1718, %v1707, %v1629
        %v1776 = vsel %vm1718, %v1710, %v1631
        %v1778 = vsel %vm1718, %v1712, %v1633
        %v1780 = vsel %vm1718, %v1715, %v1635
        %v1782 = vsel %vm1718, %v1717, %v1637
        %vm1783 = vsmask.f32 4352
        %v1784 = vshrl.u32 %v1720, 16
        %v1786 = vrot.slane %v1784, 3
        %v1787 = vshll.u32 %v1720, 16
        %v1789 = vrot.slane %v1787, 4
        %v1790 = vor.u32 %v1786, %v1789
        %v1791 = vshrl.u32 %v1722, 16
        %v1793 = vrot.slane %v1791, 3
        %v1794 = vshll.u32 %v1722, 16
        %v1796 = vrot.slane %v1794, 4
        %v1797 = vor.u32 %v1793, %v1796
        %v1798 = vsel %vm1783, %v1790, %v1797
        %v1799 = vshrl.u32 %v1724, 16
        %v1801 = vrot.slane %v1799, 3
        %v1802 = vshll.u32 %v1724, 16
        %v1804 = vrot.slane %v1802, 4
        %v1805 = vor.u32 %v1801, %v1804
        %v1806 = vshrl.u32 %v1726, 16
        %v1808 = vrot.slane %v1806, 3
        %v1809 = vshll.u32 %v1726, 16
        %v1811 = vrot.slane %v1809, 4
        %v1812 = vor.u32 %v1808, %v1811
        %v1813 = vsel %vm1783, %v1805, %v1812
        %v1814 = vshrl.u32 %v1728, 16
        %v1816 = vrot.slane %v1814, 3
        %v1817 = vshll.u32 %v1728, 16
        %v1819 = vrot.slane %v1817, 4
        %v1820 = vor.u32 %v1816, %v1819
        %v1821 = vshrl.u32 %v1730, 16
        %v1823 = vrot.slane %v1821, 3
        %v1824 = vshll.u32 %v1730, 16
        %v1826 = vrot.slane %v1824, 4
        %v1827 = vor.u32 %v1823, %v1826
        %v1828 = vsel %vm1783, %v1820, %v1827
        %v1829 = vshrl.u32 %v1732, 16
        %v1831 = vrot.slane %v1829, 3
        %v1832 = vshll.u32 %v1732, 16
        %v1834 = vrot.slane %v1832, 4
        %v1835 = vor.u32 %v1831, %v1834
        %v1836 = vshrl.u32 %v1734, 16
        %v1838 = vrot.slane %v1836, 3
        %v1839 = vshll.u32 %v1734, 16
        %v1841 = vrot.slane %v1839, 4
        %v1842 = vor.u32 %v1838, %v1841
        %v1843 = vsel %vm1783, %v1835, %v1842
        %v1844 = vshrl.u32 %v1736, 16
        %v1846 = vrot.slane %v1844, 3
        %v1847 = vshll.u32 %v1736, 16
        %v1849 = vrot.slane %v1847, 4
        %v1850 = vor.u32 %v1846, %v1849
        %v1851 = vshrl.u32 %v1738, 16
        %v1853 = vrot.slane %v1851, 3
        %v1854 = vshll.u32 %v1738, 16
        %v1856 = vrot.slane %v1854, 4
        %v1857 = vor.u32 %v1853, %v1856
        %v1858 = vsel %vm1783, %v1850, %v1857
        %v1859 = vshrl.u32 %v1740, 16
        %v1861 = vrot.slane %v1859, 3
        %v1862 = vshll.u32 %v1740, 16
        %v1864 = vrot.slane %v1862, 4
        %v1865 = vor.u32 %v1861, %v1864
        %v1866 = vshrl.u32 %v1742, 16
        %v1868 = vrot.slane %v1866, 3
        %v1869 = vshll.u32 %v1742, 16
        %v1871 = vrot.slane %v1869, 4
        %v1872 = vor.u32 %v1868, %v1871
        %v1873 = vsel %vm1783, %v1865, %v1872
        %v1874 = vshrl.u32 %v1744, 16
        %v1876 = vrot.slane %v1874, 3
        %v1877 = vshll.u32 %v1744, 16
        %v1879 = vrot.slane %v1877, 4
        %v1880 = vor.u32 %v1876, %v1879
        %v1881 = vshrl.u32 %v1746, 16
        %v1883 = vrot.slane %v1881, 3
        %v1884 = vshll.u32 %v1746, 16
        %v1886 = vrot.slane %v1884, 4
        %v1887 = vor.u32 %v1883, %v1886
        %v1888 = vsel %vm1783, %v1880, %v1887
        %v1889 = vshrl.u32 %v1748, 16
        %v1891 = vrot.slane %v1889, 3
        %v1892 = vshll.u32 %v1748, 16
        %v1894 = vrot.slane %v1892, 4
        %v1895 = vor.u32 %v1891, %v1894
        %v1896 = vshrl.u32 %v1750, 16
        %v1898 = vrot.slane %v1896, 3
        %v1899 = vshll.u32 %v1750, 16
        %v1901 = vrot.slane %v1899, 4
        %v1902 = vor.u32 %v1898, %v1901
        %v1903 = vsel %vm1783, %v1895, %v1902
        %v1904 = vshrl.u32 %v1752, 16
        %v1906 = vrot.slane %v1904, 3
        %v1907 = vshll.u32 %v1752, 16
        %v1909 = vrot.slane %v1907, 4
        %v1910 = vor.u32 %v1906, %v1909
        %v1911 = vshrl.u32 %v1754, 16
        %v1913 = vrot.slane %v1911, 3
        %v1914 = vshll.u32 %v1754, 16
        %v1916 = vrot.slane %v1914, 4
        %v1917 = vor.u32 %v1913, %v1916
        %v1918 = vsel %vm1783, %v1910, %v1917
        %v1919 = vshrl.u32 %v1756, 16
        %v1921 = vrot.slane %v1919, 3
        %v1922 = vshll.u32 %v1756, 16
        %v1924 = vrot.slane %v1922, 4
        %v1925 = vor.u32 %v1921, %v1924
        %v1926 = vshrl.u32 %v1758, 16
        %v1928 = vrot.slane %v1926, 3
        %v1929 = vshll.u32 %v1758, 16
        %v1931 = vrot.slane %v1929, 4
        %v1932 = vor.u32 %v1928, %v1931
        %v1933 = vsel %vm1783, %v1925, %v1932
        %v1934 = vshrl.u32 %v1760, 16
        %v1936 = vrot.slane %v1934, 3
        %v1937 = vshll.u32 %v1760, 16
        %v1939 = vrot.slane %v1937, 4
        %v1940 = vor.u32 %v1936, %v1939
        %v1941 = vshrl.u32 %v1762, 16
        %v1943 = vrot.slane %v1941, 3
        %v1944 = vshll.u32 %v1762, 16
        %v1946 = vrot.slane %v1944, 4
        %v1947 = vor.u32 %v1943, %v1946
        %v1948 = vsel %vm1783, %v1940, %v1947
        %v1949 = vshrl.u32 %v1764, 16
        %v1951 = vrot.slane %v1949, 3
        %v1952 = vshll.u32 %v1764, 16
        %v1954 = vrot.slane %v1952, 4
        %v1955 = vor.u32 %v1951, %v1954
        %v1956 = vshrl.u32 %v1766, 16
        %v1958 = vrot.slane %v1956, 3
        %v1959 = vshll.u32 %v1766, 16
        %v1961 = vrot.slane %v1959, 4
        %v1962 = vor.u32 %v1958, %v1961
        %v1963 = vsel %vm1783, %v1955, %v1962
        %v1964 = vshrl.u32 %v1768, 16
        %v1966 = vrot.slane %v1964, 3
        %v1967 = vshll.u32 %v1768, 16
        %v1969 = vrot.slane %v1967, 4
        %v1970 = vor.u32 %v1966, %v1969
        %v1971 = vshrl.u32 %v1770, 16
        %v1973 = vrot.slane %v1971, 3
        %v1974 = vshll.u32 %v1770, 16
        %v1976 = vrot.slane %v1974, 4
        %v1977 = vor.u32 %v1973, %v1976
        %v1978 = vsel %vm1783, %v1970, %v1977
        %v1979 = vshrl.u32 %v1772, 16
        %v1981 = vrot.slane %v1979, 3
        %v1982 = vshll.u32 %v1772, 16
        %v1984 = vrot.slane %v1982, 4
        %v1985 = vor.u32 %v1981, %v1984
        %v1986 = vshrl.u32 %v1774, 16
        %v1988 = vrot.slane %v1986, 3
        %v1989 = vshll.u32 %v1774, 16
        %v1991 = vrot.slane %v1989, 4
        %v1992 = vor.u32 %v1988, %v1991
        %v1993 = vsel %vm1783, %v1985, %v1992
        %v1994 = vshrl.u32 %v1776, 16
        %v1996 = vrot.slane %v1994, 3
        %v1997 = vshll.u32 %v1776, 16
        %v1999 = vrot.slane %v1997, 4
        %v2000 = vor.u32 %v1996, %v1999
        %v2001 = vshrl.u32 %v1778, 16
        %v2003 = vrot.slane %v2001, 3
        %v2004 = vshll.u32 %v1778, 16
        %v2006 = vrot.slane %v2004, 4
        %v2007 = vor.u32 %v2003, %v2006
        %v2008 = vsel %vm1783, %v2000, %v2007
        %v2009 = vshrl.u32 %v1780, 16
        %v2011 = vrot.slane %v2009, 3
        %v2012 = vshll.u32 %v1780, 16
        %v2014 = vrot.slane %v2012, 4
        %v2015 = vor.u32 %v2011, %v2014
        %v2016 = vshrl.u32 %v1782, 16
        %v2018 = vrot.slane %v2016, 3
        %v2019 = vshll.u32 %v1782, 16
        %v2021 = vrot.slane %v2019, 4
        %v2022 = vor.u32 %v2018, %v2021
        %v2023 = vsel %vm1783, %v2015, %v2022
        %v2024 = vld [vmem:[%s4] sm:$0xf]
        %v2025 = vld [vmem:[%s4 + $0x4] sm:$0xf]
        %v2026 = vld [vmem:[%s4 + $0x8] sm:$0xf]
        %v2027 = vld [vmem:[%s4 + $0xc] sm:$0xf]
        %v2028 = vld [vmem:[%s4 + $0x10] sm:$0xf]
        %v2029 = vld [vmem:[%s4 + $0x14] sm:$0xf]
        %v2030 = vld [vmem:[%s1076 + $0x4] sm:$0x8]
        %v2031 = vld [vmem:[%s1076 + $0x8] sm:$0xf]
        %v2032 = vld [vmem:[%s1076 + $0xc] sm:$0xf]
        %v2033 = vld [vmem:[%s1076 + $0x18] sm:$0x8]
        %v2034 = vld [vmem:[%s1076 + $0x1c] sm:$0xf]
        %v2035 = vld [vmem:[%s1076 + $0x20] sm:$0xf]
        %v2036 = vld [vmem:[%s1076 + $0x2c] sm:$0x8]
        %v2037 = vld [vmem:[%s1076 + $0x30] sm:$0xf]
        %v2038 = vld [vmem:[%s1076 + $0x34] sm:$0xf]
        %v2039 = vld [vmem:[%s1076 + $0x40] sm:$0x8]
        %v2040 = vld [vmem:[%s1076 + $0x44] sm:$0xf]
        %v2041 = vld [vmem:[%s1076 + $0x48] sm:$0xf]
        %v2042 = vld [vmem:[%s1076 + $0x54] sm:$0x8]
        %v2043 = vld [vmem:[%s1076 + $0x58] sm:$0xf]
        %v2044 = vld [vmem:[%s1076 + $0x5c] sm:$0xf]
        %v2045 = vld [vmem:[%s1076 + $0x68] sm:$0x8]
        %v2046 = vld [vmem:[%s1076 + $0x6c] sm:$0xf]
        %v2047 = vld [vmem:[%s1076 + $0x70] sm:$0xf]
        %v2048 = vld [vmem:[%s1076 + $0x7c] sm:$0x8]
        %v2049 = vld [vmem:[%s1076 + $0x80] sm:$0xf]
        %v2050 = vld [vmem:[%s1076 + $0x84] sm:$0xf]
        %v2051 = vld [vmem:[%s1076 + $0x90] sm:$0x8]
        %v2052 = vld [vmem:[%s1076 + $0x94] sm:$0xf]
        %v2053 = vld [vmem:[%s1076 + $0x98] sm:$0xf]
        %v2054 = vld [vmem:[%s1076 + $0xa4] sm:$0x8]
        %v2055 = vld [vmem:[%s1076 + $0xa8] sm:$0xf]
        %v2056 = vld [vmem:[%s1076 + $0xac] sm:$0xf]
        %v2057 = vld [vmem:[%s1076 + $0xb8] sm:$0x8]
        %v2058 = vld [vmem:[%s1076 + $0xbc] sm:$0xf]
        %v2059 = vld [vmem:[%s1076 + $0xc0] sm:$0xf]
        %v2060 = vld [vmem:[%s1076 + $0xcc] sm:$0x8]
        %v2061 = vld [vmem:[%s1076 + $0xd0] sm:$0xf]
        %v2062 = vld [vmem:[%s1076 + $0xd4] sm:$0xf]
        %v2063 = vld [vmem:[%s1076 + $0xe0] sm:$0x8]
        %v2064 = vld [vmem:[%s1076 + $0xe4] sm:$0xf]
        %v2065 = vld [vmem:[%s1076 + $0xe8] sm:$0xf]
        %v2066 = vld [vmem:[%s1076 + $0xf4] sm:$0x8]
        %v2067 = vld [vmem:[%s1076 + $0xf8] sm:$0xf]
        %v2068 = vld [vmem:[%s1076 + $0xfc] sm:$0xf]
        %v2069 = vld [vmem:[%s1076 + $0x108] sm:$0x8]
        %v2070 = vld [vmem:[%s1076 + $0x10c] sm:$0xf]
        %v2071 = vld [vmem:[%s1076 + $0x110] sm:$0xf]
        %v2072 = vld [vmem:[%s1076 + $0x11c] sm:$0x8]
        %v2073 = vld [vmem:[%s1076 + $0x120] sm:$0xf]
        %v2074 = vld [vmem:[%s1076 + $0x124] sm:$0xf]
        %v2075 = vld [vmem:[%s1076 + $0x130] sm:$0x8]
        %v2076 = vld [vmem:[%s1076 + $0x134] sm:$0xf]
        %v2077 = vld [vmem:[%s1076 + $0x138] sm:$0xf]
        %v2078 = vld [vmem:[%s1076 + $0x10] sm:$0x1]
        %v2079 = vld [vmem:[%s1076 + $0x24] sm:$0x1]
        %v2080 = vld [vmem:[%s1076 + $0x38] sm:$0x1]
        %v2081 = vld [vmem:[%s1076 + $0x4c] sm:$0x1]
        %v2082 = vld [vmem:[%s1076 + $0x60] sm:$0x1]
        %v2083 = vld [vmem:[%s1076 + $0x74] sm:$0x1]
        %v2084 = vld [vmem:[%s1076 + $0x88] sm:$0x1]
        %v2085 = vld [vmem:[%s1076 + $0x9c] sm:$0x1]
        %v2086 = vld [vmem:[%s1076 + $0xb0] sm:$0x1]
        %v2087 = vld [vmem:[%s1076 + $0xc4] sm:$0x1]
        %v2088 = vld [vmem:[%s1076 + $0xd8] sm:$0x1]
        %v2089 = vld [vmem:[%s1076 + $0xec] sm:$0x1]
        %v2090 = vld [vmem:[%s1076 + $0x100] sm:$0x1]
        %v2091 = vld [vmem:[%s1076 + $0x114] sm:$0x1]
        %v2092 = vld [vmem:[%s1076 + $0x128] sm:$0x1]
        %v2093 = vld [vmem:[%s1076 + $0x13c] sm:$0x1]
        %v2142 = vunpack.c.l.b16 %v2030
        %v2143 = vunpack.c.l.b16 %v2031
        %v2144 = vunpack.c.l.b16 %v2032
        %v2145 = vunpack.c.l.b16 %v2033
        %v2146 = vunpack.c.l.b16 %v2034
        %v2147 = vunpack.c.l.b16 %v2035
        %v2148 = vunpack.c.l.b16 %v2036
        %v2149 = vunpack.c.l.b16 %v2037
        %v2150 = vunpack.c.l.b16 %v2038
        %v2151 = vunpack.c.l.b16 %v2039
        %v2152 = vunpack.c.l.b16 %v2040
        %v2153 = vunpack.c.l.b16 %v2041
        %v2154 = vunpack.c.l.b16 %v2042
        %v2155 = vunpack.c.l.b16 %v2043
        %v2156 = vunpack.c.l.b16 %v2044
        %v2157 = vunpack.c.l.b16 %v2045
        %v2158 = vunpack.c.l.b16 %v2046
        %v2159 = vunpack.c.l.b16 %v2047
        %v2160 = vunpack.c.l.b16 %v2048
        %v2161 = vunpack.c.l.b16 %v2049
        %v2162 = vunpack.c.l.b16 %v2050
        %v2163 = vunpack.c.l.b16 %v2051
        %v2164 = vunpack.c.l.b16 %v2052
        %v2165 = vunpack.c.l.b16 %v2053
        %v2166 = vunpack.c.l.b16 %v2054
        %v2167 = vunpack.c.l.b16 %v2055
        %v2168 = vunpack.c.l.b16 %v2056
        %v2169 = vunpack.c.l.b16 %v2057
        %v2170 = vunpack.c.l.b16 %v2058
        %v2171 = vunpack.c.l.b16 %v2059
        %v2172 = vunpack.c.l.b16 %v2060
        %v2173 = vunpack.c.l.b16 %v2061
        %v2174 = vunpack.c.l.b16 %v2062
        %v2175 = vunpack.c.l.b16 %v2063
        %v2176 = vunpack.c.l.b16 %v2064
        %v2177 = vunpack.c.l.b16 %v2065
        %v2178 = vunpack.c.l.b16 %v2066
        %v2179 = vunpack.c.l.b16 %v2067
        %v2180 = vunpack.c.l.b16 %v2068
        %v2181 = vunpack.c.l.b16 %v2069
        %v2182 = vunpack.c.l.b16 %v2070
        %v2183 = vunpack.c.l.b16 %v2071
        %v2184 = vunpack.c.l.b16 %v2072
        %v2185 = vunpack.c.l.b16 %v2073
        %v2186 = vunpack.c.l.b16 %v2074
        %v2187 = vunpack.c.l.b16 %v2075
        %v2188 = vunpack.c.l.b16 %v2076
        %v2189 = vunpack.c.l.b16 %v2077
        %v2190 = vpack.c.b16 %v2143, %v2142
        %v2191 = vpack.c.b16 %v2144, %v2144
        %v2192 = vpack.c.b16 %v2146, %v2145
        %v2193 = vpack.c.b16 %v2147, %v2147
        %v2194 = vpack.c.b16 %v2149, %v2148
        %v2195 = vpack.c.b16 %v2150, %v2150
        %v2196 = vpack.c.b16 %v2152, %v2151
        %v2197 = vpack.c.b16 %v2153, %v2153
        %v2198 = vpack.c.b16 %v2155, %v2154
        %v2199 = vpack.c.b16 %v2156, %v2156
        %v2200 = vpack.c.b16 %v2158, %v2157
        %v2201 = vpack.c.b16 %v2159, %v2159
        %v2202 = vpack.c.b16 %v2161, %v2160
        %v2203 = vpack.c.b16 %v2162, %v2162
        %v2204 = vpack.c.b16 %v2164, %v2163
        %v2205 = vpack.c.b16 %v2165, %v2165
        %v2206 = vpack.c.b16 %v2167, %v2166
        %v2207 = vpack.c.b16 %v2168, %v2168
        %v2208 = vpack.c.b16 %v2170, %v2169
        %v2209 = vpack.c.b16 %v2171, %v2171
        %v2210 = vpack.c.b16 %v2173, %v2172
        %v2211 = vpack.c.b16 %v2174, %v2174
        %v2212 = vpack.c.b16 %v2176, %v2175
        %v2213 = vpack.c.b16 %v2177, %v2177
        %v2214 = vpack.c.b16 %v2179, %v2178
        %v2215 = vpack.c.b16 %v2180, %v2180
        %v2216 = vpack.c.b16 %v2182, %v2181
        %v2217 = vpack.c.b16 %v2183, %v2183
        %v2218 = vpack.c.b16 %v2185, %v2184
        %v2219 = vpack.c.b16 %v2186, %v2186
        %v2220 = vpack.c.b16 %v2188, %v2187
        %v2221 = vpack.c.b16 %v2189, %v2189
        %v2222 = vpack.c.b16 %v2144, %v2143
        %v2223 = vpack.c.b16 %v2147, %v2146
        %v2224 = vpack.c.b16 %v2150, %v2149
        %v2225 = vpack.c.b16 %v2153, %v2152
        %v2226 = vpack.c.b16 %v2156, %v2155
        %v2227 = vpack.c.b16 %v2159, %v2158
        %v2228 = vpack.c.b16 %v2162, %v2161
        %v2229 = vpack.c.b16 %v2165, %v2164
        %v2230 = vpack.c.b16 %v2168, %v2167
        %v2231 = vpack.c.b16 %v2171, %v2170
        %v2232 = vpack.c.b16 %v2174, %v2173
        %v2233 = vpack.c.b16 %v2177, %v2176
        %v2234 = vpack.c.b16 %v2180, %v2179
        %v2235 = vpack.c.b16 %v2183, %v2182
        %v2236 = vpack.c.b16 %v2186, %v2185
        %v2237 = vpack.c.b16 %v2189, %v2188
        %v2239 = vshrl.u32 %v2222, 16
        %v2241 = vrot.slane %v2239, 4
        %v2242 = vshll.u32 %v2222, 16
        %v2244 = vrot.slane %v2242, 5
        %v2245 = vor.u32 %v2241, %v2244
        %v2247 = vshrl.u32 %v2223, 16
        %v2249 = vrot.slane %v2247, 4
        %v2250 = vshll.u32 %v2223, 16
        %v2252 = vrot.slane %v2250, 5
        %v2253 = vor.u32 %v2249, %v2252
        %v2255 = vshrl.u32 %v2224, 16
        %v2257 = vrot.slane %v2255, 4
        %v2258 = vshll.u32 %v2224, 16
        %v2260 = vrot.slane %v2258, 5
        %v2261 = vor.u32 %v2257, %v2260
        %v2263 = vshrl.u32 %v2225, 16
        %v2265 = vrot.slane %v2263, 4
        %v2266 = vshll.u32 %v2225, 16
        %v2268 = vrot.slane %v2266, 5
        %v2269 = vor.u32 %v2265, %v2268
        %v2271 = vshrl.u32 %v2226, 16
        %v2273 = vrot.slane %v2271, 4
        %v2274 = vshll.u32 %v2226, 16
        %v2276 = vrot.slane %v2274, 5
        %v2277 = vor.u32 %v2273, %v2276
        %v2279 = vshrl.u32 %v2227, 16
        %v2281 = vrot.slane %v2279, 4
        %v2282 = vshll.u32 %v2227, 16
        %v2284 = vrot.slane %v2282, 5
        %v2285 = vor.u32 %v2281, %v2284
        %v2287 = vshrl.u32 %v2228, 16
        %v2289 = vrot.slane %v2287, 4
        %v2290 = vshll.u32 %v2228, 16
        %v2292 = vrot.slane %v2290, 5
        %v2293 = vor.u32 %v2289, %v2292
        %v2295 = vshrl.u32 %v2229, 16
        %v2297 = vrot.slane %v2295, 4
        %v2298 = vshll.u32 %v2229, 16
        %v2300 = vrot.slane %v2298, 5
        %v2301 = vor.u32 %v2297, %v2300
        %v2303 = vshrl.u32 %v2230, 16
        %v2305 = vrot.slane %v2303, 4
        %v2306 = vshll.u32 %v2230, 16
        %v2308 = vrot.slane %v2306, 5
        %v2309 = vor.u32 %v2305, %v2308
        %v2311 = vshrl.u32 %v2231, 16
        %v2313 = vrot.slane %v2311, 4
        %v2314 = vshll.u32 %v2231, 16
        %v2316 = vrot.slane %v2314, 5
        %v2317 = vor.u32 %v2313, %v2316
        %v2319 = vshrl.u32 %v2232, 16
        %v2321 = vrot.slane %v2319, 4
        %v2322 = vshll.u32 %v2232, 16
        %v2324 = vrot.slane %v2322, 5
        %v2325 = vor.u32 %v2321, %v2324
        %v2327 = vshrl.u32 %v2233, 16
        %v2329 = vrot.slane %v2327, 4
        %v2330 = vshll.u32 %v2233, 16
        %v2332 = vrot.slane %v2330, 5
        %v2333 = vor.u32 %v2329, %v2332
        %v2335 = vshrl.u32 %v2234, 16
        %v2337 = vrot.slane %v2335, 4
        %v2338 = vshll.u32 %v2234, 16
        %v2340 = vrot.slane %v2338, 5
        %v2341 = vor.u32 %v2337, %v2340
        %v2343 = vshrl.u32 %v2235, 16
        %v2345 = vrot.slane %v2343, 4
        %v2346 = vshll.u32 %v2235, 16
        %v2348 = vrot.slane %v2346, 5
        %v2349 = vor.u32 %v2345, %v2348
        %v2351 = vshrl.u32 %v2236, 16
        %v2353 = vrot.slane %v2351, 4
        %v2354 = vshll.u32 %v2236, 16
        %v2356 = vrot.slane %v2354, 5
        %v2357 = vor.u32 %v2353, %v2356
        %v2359 = vshrl.u32 %v2237, 16
        %v2361 = vrot.slane %v2359, 4
        %v2362 = vshll.u32 %v2237, 16
        %v2364 = vrot.slane %v2362, 5
        %v2365 = vor.u32 %v2361, %v2364
        %2366 = vrot.lane.b32.xlu0 %v2245, 16
        %v2367 = vpop.permute.xlu0 %2366
        %2368 = vrot.lane.b32.xlu0 %v2253, 16
        %v2369 = vpop.permute.xlu0 %2368
        %2370 = vrot.lane.b32.xlu0 %v2261, 16
        %v2371 = vpop.permute.xlu0 %2370
        %2372 = vrot.lane.b32.xlu0 %v2269, 16
        %v2373 = vpop.permute.xlu0 %2372
        %2374 = vrot.lane.b32.xlu0 %v2277, 16
        %v2375 = vpop.permute.xlu0 %2374
        %2376 = vrot.lane.b32.xlu0 %v2285, 16
        %v2377 = vpop.permute.xlu0 %2376
        %2378 = vrot.lane.b32.xlu0 %v2293, 16
        %v2379 = vpop.permute.xlu0 %2378
        %2380 = vrot.lane.b32.xlu0 %v2301, 16
        %v2381 = vpop.permute.xlu0 %2380
        %2382 = vrot.lane.b32.xlu0 %v2309, 16
        %v2383 = vpop.permute.xlu0 %2382
        %2384 = vrot.lane.b32.xlu0 %v2317, 16
        %v2385 = vpop.permute.xlu0 %2384
        %2386 = vrot.lane.b32.xlu0 %v2325, 16
        %v2387 = vpop.permute.xlu0 %2386
        %2388 = vrot.lane.b32.xlu0 %v2333, 16
        %v2389 = vpop.permute.xlu0 %2388
        %2390 = vrot.lane.b32.xlu0 %v2341, 16
        %v2391 = vpop.permute.xlu0 %2390
        %2392 = vrot.lane.b32.xlu0 %v2349, 16
        %v2393 = vpop.permute.xlu0 %2392
        %2394 = vrot.lane.b32.xlu0 %v2357, 16
        %v2395 = vpop.permute.xlu0 %2394
        %2396 = vrot.lane.b32.xlu0 %v2365, 16
        %v2397 = vpop.permute.xlu0 %2396
        %v2414 = vunpack.c.l.b16 %v2078
        %v2415 = vunpack.c.l.b16 %v2079
        %v2416 = vunpack.c.l.b16 %v2080
        %v2417 = vunpack.c.l.b16 %v2081
        %v2418 = vunpack.c.l.b16 %v2082
        %v2419 = vunpack.c.l.b16 %v2083
        %v2420 = vunpack.c.l.b16 %v2084
        %v2421 = vunpack.c.l.b16 %v2085
        %v2422 = vunpack.c.l.b16 %v2086
        %v2423 = vunpack.c.l.b16 %v2087
        %v2424 = vunpack.c.l.b16 %v2088
        %v2425 = vunpack.c.l.b16 %v2089
        %v2426 = vunpack.c.l.b16 %v2090
        %v2427 = vunpack.c.l.b16 %v2091
        %v2428 = vunpack.c.l.b16 %v2092
        %v2429 = vunpack.c.l.b16 %v2093
        %v2430 = vpack.c.b16 %v2414, %v2414
        %v2431 = vpack.c.b16 %v2415, %v2415
        %v2432 = vpack.c.b16 %v2416, %v2416
        %v2433 = vpack.c.b16 %v2417, %v2417
        %v2434 = vpack.c.b16 %v2418, %v2418
        %v2435 = vpack.c.b16 %v2419, %v2419
        %v2436 = vpack.c.b16 %v2420, %v2420
        %v2437 = vpack.c.b16 %v2421, %v2421
        %v2438 = vpack.c.b16 %v2422, %v2422
        %v2439 = vpack.c.b16 %v2423, %v2423
        %v2440 = vpack.c.b16 %v2424, %v2424
        %v2441 = vpack.c.b16 %v2425, %v2425
        %v2442 = vpack.c.b16 %v2426, %v2426
        %v2443 = vpack.c.b16 %v2427, %v2427
        %v2444 = vpack.c.b16 %v2428, %v2428
        %v2445 = vpack.c.b16 %v2429, %v2429
        %v2446 = vrot.slane %v2222, 5
        %v2447 = vrot.slane %v2430, 5
        %v2448 = vsel %vm1525, %v2446, %v2447
        %v2449 = vrot.slane %v2223, 5
        %v2450 = vrot.slane %v2431, 5
        %v2451 = vsel %vm1525, %v2449, %v2450
        %v2452 = vrot.slane %v2224, 5
        %v2453 = vrot.slane %v2432, 5
        %v2454 = vsel %vm1525, %v2452, %v2453
        %v2455 = vrot.slane %v2225, 5
        %v2456 = vrot.slane %v2433, 5
        %v2457 = vsel %vm1525, %v2455, %v2456
        %v2458 = vrot.slane %v2226, 5
        %v2459 = vrot.slane %v2434, 5
        %v2460 = vsel %vm1525, %v2458, %v2459
        %v2461 = vrot.slane %v2227, 5
        %v2462 = vrot.slane %v2435, 5
        %v2463 = vsel %vm1525, %v2461, %v2462
        %v2464 = vrot.slane %v2228, 5
        %v2465 = vrot.slane %v2436, 5
        %v2466 = vsel %vm1525, %v2464, %v2465
        %v2467 = vrot.slane %v2229, 5
        %v2468 = vrot.slane %v2437, 5
        %v2469 = vsel %vm1525, %v2467, %v2468
        %v2470 = vrot.slane %v2230, 5
        %v2471 = vrot.slane %v2438, 5
        %v2472 = vsel %vm1525, %v2470, %v2471
        %v2473 = vrot.slane %v2231, 5
        %v2474 = vrot.slane %v2439, 5
        %v2475 = vsel %vm1525, %v2473, %v2474
        %v2476 = vrot.slane %v2232, 5
        %v2477 = vrot.slane %v2440, 5
        %v2478 = vsel %vm1525, %v2476, %v2477
        %v2479 = vrot.slane %v2233, 5
        %v2480 = vrot.slane %v2441, 5
        %v2481 = vsel %vm1525, %v2479, %v2480
        %v2482 = vrot.slane %v2234, 5
        %v2483 = vrot.slane %v2442, 5
        %v2484 = vsel %vm1525, %v2482, %v2483
        %v2485 = vrot.slane %v2235, 5
        %v2486 = vrot.slane %v2443, 5
        %v2487 = vsel %vm1525, %v2485, %v2486
        %v2488 = vrot.slane %v2236, 5
        %v2489 = vrot.slane %v2444, 5
        %v2490 = vsel %vm1525, %v2488, %v2489
        %v2491 = vrot.slane %v2237, 5
        %v2492 = vrot.slane %v2445, 5
        %v2493 = vsel %vm1525, %v2491, %v2492
        %2494 = vrot.lane.b32.xlu0 %v2446, 32
        %v2495 = vpop.permute.xlu0 %2494
        %2496 = vrot.lane.b32.xlu0 %v2448, 32
        %v2497 = vpop.permute.xlu0 %2496
        %2498 = vrot.lane.b32.xlu0 %v2449, 32
        %v2499 = vpop.permute.xlu0 %2498
        %2500 = vrot.lane.b32.xlu0 %v2451, 32
        %v2501 = vpop.permute.xlu0 %2500
        %2502 = vrot.lane.b32.xlu0 %v2452, 32
        %v2503 = vpop.permute.xlu0 %2502
        %2504 = vrot.lane.b32.xlu0 %v2454, 32
        %v2505 = vpop.permute.xlu0 %2504
        %2506 = vrot.lane.b32.xlu0 %v2455, 32
        %v2507 = vpop.permute.xlu0 %2506
        %2508 = vrot.lane.b32.xlu0 %v2457, 32
        %v2509 = vpop.permute.xlu0 %2508
        %2510 = vrot.lane.b32.xlu0 %v2458, 32
        %v2511 = vpop.permute.xlu0 %2510
        %2512 = vrot.lane.b32.xlu0 %v2460, 32
        %v2513 = vpop.permute.xlu0 %2512
        %2514 = vrot.lane.b32.xlu0 %v2461, 32
        %v2515 = vpop.permute.xlu0 %2514
        %2516 = vrot.lane.b32.xlu0 %v2463, 32
        %v2517 = vpop.permute.xlu0 %2516
        %2518 = vrot.lane.b32.xlu0 %v2464, 32
        %v2519 = vpop.permute.xlu0 %2518
        %2520 = vrot.lane.b32.xlu0 %v2466, 32
        %v2521 = vpop.permute.xlu0 %2520
        %2522 = vrot.lane.b32.xlu0 %v2467, 32
        %v2523 = vpop.permute.xlu0 %2522
        %2524 = vrot.lane.b32.xlu0 %v2469, 32
        %v2525 = vpop.permute.xlu0 %2524
        %2526 = vrot.lane.b32.xlu0 %v2470, 32
        %v2527 = vpop.permute.xlu0 %2526
        %2528 = vrot.lane.b32.xlu0 %v2472, 32
        %v2529 = vpop.permute.xlu0 %2528
        %2530 = vrot.lane.b32.xlu0 %v2473, 32
        %v2531 = vpop.permute.xlu0 %2530
        %2532 = vrot.lane.b32.xlu0 %v2475, 32
        %v2533 = vpop.permute.xlu0 %2532
        %2534 = vrot.lane.b32.xlu0 %v2476, 32
        %v2535 = vpop.permute.xlu0 %2534
        %2536 = vrot.lane.b32.xlu0 %v2478, 32
        %v2537 = vpop.permute.xlu0 %2536
        %2538 = vrot.lane.b32.xlu0 %v2479, 32
        %v2539 = vpop.permute.xlu0 %2538
        %2540 = vrot.lane.b32.xlu0 %v2481, 32
        %v2541 = vpop.permute.xlu0 %2540
        %2542 = vrot.lane.b32.xlu0 %v2482, 32
        %v2543 = vpop.permute.xlu0 %2542
        %2544 = vrot.lane.b32.xlu0 %v2484, 32
        %v2545 = vpop.permute.xlu0 %2544
        %2546 = vrot.lane.b32.xlu0 %v2485, 32
        %v2547 = vpop.permute.xlu0 %2546
        %2548 = vrot.lane.b32.xlu0 %v2487, 32
        %v2549 = vpop.permute.xlu0 %2548
        %2550 = vrot.lane.b32.xlu0 %v2488, 32
        %v2551 = vpop.permute.xlu0 %2550
        %2552 = vrot.lane.b32.xlu0 %v2490, 32
        %v2553 = vpop.permute.xlu0 %2552
        %2554 = vrot.lane.b32.xlu0 %v2491, 32
        %v2555 = vpop.permute.xlu0 %2554
        %2556 = vrot.lane.b32.xlu0 %v2493, 32
        %v2557 = vpop.permute.xlu0 %2556
        %v2560 = vsel %vm580, %v2190, %v2367
        %v2562 = vsel %vm580, %v2191, %v2367
        %v2565 = vsel %vm580, %v2192, %v2369
        %v2567 = vsel %vm580, %v2193, %v2369
        %v2570 = vsel %vm580, %v2194, %v2371
        %v2572 = vsel %vm580, %v2195, %v2371
        %v2575 = vsel %vm580, %v2196, %v2373
        %v2577 = vsel %vm580, %v2197, %v2373
        %v2580 = vsel %vm580, %v2198, %v2375
        %v2582 = vsel %vm580, %v2199, %v2375
        %v2585 = vsel %vm580, %v2200, %v2377
        %v2587 = vsel %vm580, %v2201, %v2377
        %v2590 = vsel %vm580, %v2202, %v2379
        %v2592 = vsel %vm580, %v2203, %v2379
        %v2595 = vsel %vm580, %v2204, %v2381
        %v2597 = vsel %vm580, %v2205, %v2381
        %v2600 = vsel %vm580, %v2206, %v2383
        %v2602 = vsel %vm580, %v2207, %v2383
        %v2605 = vsel %vm580, %v2208, %v2385
        %v2607 = vsel %vm580, %v2209, %v2385
        %v2610 = vsel %vm580, %v2210, %v2387
        %v2612 = vsel %vm580, %v2211, %v2387
        %v2615 = vsel %vm580, %v2212, %v2389
        %v2617 = vsel %vm580, %v2213, %v2389
        %v2620 = vsel %vm580, %v2214, %v2391
        %v2622 = vsel %vm580, %v2215, %v2391
        %v2625 = vsel %vm580, %v2216, %v2393
        %v2627 = vsel %vm580, %v2217, %v2393
        %v2630 = vsel %vm580, %v2218, %v2395
        %v2632 = vsel %vm580, %v2219, %v2395
        %v2635 = vsel %vm580, %v2220, %v2397
        %v2637 = vsel %vm580, %v2221, %v2397
        %v2639 = vsel %vm1718, %v2560, %v2495
        %v2641 = vsel %vm1718, %v2562, %v2497
        %v2643 = vsel %vm1718, %v2565, %v2499
        %v2645 = vsel %vm1718, %v2567, %v2501
        %v2647 = vsel %vm1718, %v2570, %v2503
        %v2649 = vsel %vm1718, %v2572, %v2505
        %v2651 = vsel %vm1718, %v2575, %v2507
        %v2653 = vsel %vm1718, %v2577, %v2509
        %v2655 = vsel %vm1718, %v2580, %v2511
        %v2657 = vsel %vm1718, %v2582, %v2513
        %v2659 = vsel %vm1718, %v2585, %v2515
        %v2661 = vsel %vm1718, %v2587, %v2517
        %v2663 = vsel %vm1718, %v2590, %v2519
        %v2665 = vsel %vm1718, %v2592, %v2521
        %v2667 = vsel %vm1718, %v2595, %v2523
        %v2669 = vsel %vm1718, %v2597, %v2525
        %v2671 = vsel %vm1718, %v2600, %v2527
        %v2673 = vsel %vm1718, %v2602, %v2529
        %v2675 = vsel %vm1718, %v2605, %v2531
        %v2677 = vsel %vm1718, %v2607, %v2533
        %v2679 = vsel %vm1718, %v2610, %v2535
        %v2681 = vsel %vm1718, %v2612, %v2537
        %v2683 = vsel %vm1718, %v2615, %v2539
        %v2685 = vsel %vm1718, %v2617, %v2541
        %v2687 = vsel %vm1718, %v2620, %v2543
        %v2689 = vsel %vm1718, %v2622, %v2545
        %v2691 = vsel %vm1718, %v2625, %v2547
        %v2693 = vsel %vm1718, %v2627, %v2549
        %v2695 = vsel %vm1718, %v2630, %v2551
        %v2697 = vsel %vm1718, %v2632, %v2553
        %v2699 = vsel %vm1718, %v2635, %v2555
        %v2701 = vsel %vm1718, %v2637, %v2557
        %v2702 = vshrl.u32 %v2639, 16
        %v2704 = vrot.slane %v2702, 3
        %v2705 = vshll.u32 %v2639, 16
        %v2707 = vrot.slane %v2705, 4
        %v2708 = vor.u32 %v2704, %v2707
        %v2709 = vshrl.u32 %v2641, 16
        %v2711 = vrot.slane %v2709, 3
        %v2712 = vshll.u32 %v2641, 16
        %v2714 = vrot.slane %v2712, 4
        %v2715 = vor.u32 %v2711, %v2714
        %v2716 = vsel %vm1783, %v2708, %v2715
        %v2717 = vshrl.u32 %v2643, 16
        %v2719 = vrot.slane %v2717, 3
        %v2720 = vshll.u32 %v2643, 16
        %v2722 = vrot.slane %v2720, 4
        %v2723 = vor.u32 %v2719, %v2722
        %v2724 = vshrl.u32 %v2645, 16
        %v2726 = vrot.slane %v2724, 3
        %v2727 = vshll.u32 %v2645, 16
        %v2729 = vrot.slane %v2727, 4
        %v2730 = vor.u32 %v2726, %v2729
        %v2731 = vsel %vm1783, %v2723, %v2730
        %v2732 = vshrl.u32 %v2647, 16
        %v2734 = vrot.slane %v2732, 3
        %v2735 = vshll.u32 %v2647, 16
        %v2737 = vrot.slane %v2735, 4
        %v2738 = vor.u32 %v2734, %v2737
        %v2739 = vshrl.u32 %v2649, 16
        %v2741 = vrot.slane %v2739, 3
        %v2742 = vshll.u32 %v2649, 16
        %v2744 = vrot.slane %v2742, 4
        %v2745 = vor.u32 %v2741, %v2744
        %v2746 = vsel %vm1783, %v2738, %v2745
        %v2747 = vshrl.u32 %v2651, 16
        %v2749 = vrot.slane %v2747, 3
        %v2750 = vshll.u32 %v2651, 16
        %v2752 = vrot.slane %v2750, 4
        %v2753 = vor.u32 %v2749, %v2752
        %v2754 = vshrl.u32 %v2653, 16
        %v2756 = vrot.slane %v2754, 3
        %v2757 = vshll.u32 %v2653, 16
        %v2759 = vrot.slane %v2757, 4
        %v2760 = vor.u32 %v2756, %v2759
        %v2761 = vsel %vm1783, %v2753, %v2760
        %v2762 = vshrl.u32 %v2655, 16
        %v2764 = vrot.slane %v2762, 3
        %v2765 = vshll.u32 %v2655, 16
        %v2767 = vrot.slane %v2765, 4
        %v2768 = vor.u32 %v2764, %v2767
        %v2769 = vshrl.u32 %v2657, 16
        %v2771 = vrot.slane %v2769, 3
        %v2772 = vshll.u32 %v2657, 16
        %v2774 = vrot.slane %v2772, 4
        %v2775 = vor.u32 %v2771, %v2774
        %v2776 = vsel %vm1783, %v2768, %v2775
        %v2777 = vshrl.u32 %v2659, 16
        %v2779 = vrot.slane %v2777, 3
        %v2780 = vshll.u32 %v2659, 16
        %v2782 = vrot.slane %v2780, 4
        %v2783 = vor.u32 %v2779, %v2782
        %v2784 = vshrl.u32 %v2661, 16
        %v2786 = vrot.slane %v2784, 3
        %v2787 = vshll.u32 %v2661, 16
        %v2789 = vrot.slane %v2787, 4
        %v2790 = vor.u32 %v2786, %v2789
        %v2791 = vsel %vm1783, %v2783, %v2790
        %v2792 = vshrl.u32 %v2663, 16
        %v2794 = vrot.slane %v2792, 3
        %v2795 = vshll.u32 %v2663, 16
        %v2797 = vrot.slane %v2795, 4
        %v2798 = vor.u32 %v2794, %v2797
        %v2799 = vshrl.u32 %v2665, 16
        %v2801 = vrot.slane %v2799, 3
        %v2802 = vshll.u32 %v2665, 16
        %v2804 = vrot.slane %v2802, 4
        %v2805 = vor.u32 %v2801, %v2804
        %v2806 = vsel %vm1783, %v2798, %v2805
        %v2807 = vshrl.u32 %v2667, 16
        %v2809 = vrot.slane %v2807, 3
        %v2810 = vshll.u32 %v2667, 16
        %v2812 = vrot.slane %v2810, 4
        %v2813 = vor.u32 %v2809, %v2812
        %v2814 = vshrl.u32 %v2669, 16
        %v2816 = vrot.slane %v2814, 3
        %v2817 = vshll.u32 %v2669, 16
        %v2819 = vrot.slane %v2817, 4
        %v2820 = vor.u32 %v2816, %v2819
        %v2821 = vsel %vm1783, %v2813, %v2820
        %v2822 = vshrl.u32 %v2671, 16
        %v2824 = vrot.slane %v2822, 3
        %v2825 = vshll.u32 %v2671, 16
        %v2827 = vrot.slane %v2825, 4
        %v2828 = vor.u32 %v2824, %v2827
        %v2829 = vshrl.u32 %v2673, 16
        %v2831 = vrot.slane %v2829, 3
        %v2832 = vshll.u32 %v2673, 16
        %v2834 = vrot.slane %v2832, 4
        %v2835 = vor.u32 %v2831, %v2834
        %v2836 = vsel %vm1783, %v2828, %v2835
        %v2837 = vshrl.u32 %v2675, 16
        %v2839 = vrot.slane %v2837, 3
        %v2840 = vshll.u32 %v2675, 16
        %v2842 = vrot.slane %v2840, 4
        %v2843 = vor.u32 %v2839, %v2842
        %v2844 = vshrl.u32 %v2677, 16
        %v2846 = vrot.slane %v2844, 3
        %v2847 = vshll.u32 %v2677, 16
        %v2849 = vrot.slane %v2847, 4
        %v2850 = vor.u32 %v2846, %v2849
        %v2851 = vsel %vm1783, %v2843, %v2850
        %v2852 = vshrl.u32 %v2679, 16
        %v2854 = vrot.slane %v2852, 3
        %v2855 = vshll.u32 %v2679, 16
        %v2857 = vrot.slane %v2855, 4
        %v2858 = vor.u32 %v2854, %v2857
        %v2859 = vshrl.u32 %v2681, 16
        %v2861 = vrot.slane %v2859, 3
        %v2862 = vshll.u32 %v2681, 16
        %v2864 = vrot.slane %v2862, 4
        %v2865 = vor.u32 %v2861, %v2864
        %v2866 = vsel %vm1783, %v2858, %v2865
        %v2867 = vshrl.u32 %v2683, 16
        %v2869 = vrot.slane %v2867, 3
        %v2870 = vshll.u32 %v2683, 16
        %v2872 = vrot.slane %v2870, 4
        %v2873 = vor.u32 %v2869, %v2872
        %v2874 = vshrl.u32 %v2685, 16
        %v2876 = vrot.slane %v2874, 3
        %v2877 = vshll.u32 %v2685, 16
        %v2879 = vrot.slane %v2877, 4
        %v2880 = vor.u32 %v2876, %v2879
        %v2881 = vsel %vm1783, %v2873, %v2880
        %v2882 = vshrl.u32 %v2687, 16
        %v2884 = vrot.slane %v2882, 3
        %v2885 = vshll.u32 %v2687, 16
        %v2887 = vrot.slane %v2885, 4
        %v2888 = vor.u32 %v2884, %v2887
        %v2889 = vshrl.u32 %v2689, 16
        %v2891 = vrot.slane %v2889, 3
        %v2892 = vshll.u32 %v2689, 16
        %v2894 = vrot.slane %v2892, 4
        %v2895 = vor.u32 %v2891, %v2894
        %v2896 = vsel %vm1783, %v2888, %v2895
        %v2897 = vshrl.u32 %v2691, 16
        %v2899 = vrot.slane %v2897, 3
        %v2900 = vshll.u32 %v2691, 16
        %v2902 = vrot.slane %v2900, 4
        %v2903 = vor.u32 %v2899, %v2902
        %v2904 = vshrl.u32 %v2693, 16
        %v2906 = vrot.slane %v2904, 3
        %v2907 = vshll.u32 %v2693, 16
        %v2909 = vrot.slane %v2907, 4
        %v2910 = vor.u32 %v2906, %v2909
        %v2911 = vsel %vm1783, %v2903, %v2910
        %v2912 = vshrl.u32 %v2695, 16
        %v2914 = vrot.slane %v2912, 3
        %v2915 = vshll.u32 %v2695, 16
        %v2917 = vrot.slane %v2915, 4
        %v2918 = vor.u32 %v2914, %v2917
        %v2919 = vshrl.u32 %v2697, 16
        %v2921 = vrot.slane %v2919, 3
        %v2922 = vshll.u32 %v2697, 16
        %v2924 = vrot.slane %v2922, 4
        %v2925 = vor.u32 %v2921, %v2924
        %v2926 = vsel %vm1783, %v2918, %v2925
        %v2927 = vshrl.u32 %v2699, 16
        %v2929 = vrot.slane %v2927, 3
        %v2930 = vshll.u32 %v2699, 16
        %v2932 = vrot.slane %v2930, 4
        %v2933 = vor.u32 %v2929, %v2932
        %v2934 = vshrl.u32 %v2701, 16
        %v2936 = vrot.slane %v2934, 3
        %v2937 = vshll.u32 %v2701, 16
        %v2939 = vrot.slane %v2937, 4
        %v2940 = vor.u32 %v2936, %v2939
        %v2941 = vsel %vm1783, %v2933, %v2940
        %s2942 = scalar_lea.vmem %s4, 24
        %v2943 = vld [vmem:[%s2942] sm:$0xf]
        %v2944 = vld [vmem:[%s2942 + $0x4] sm:$0xf]
        %v2945 = vld [vmem:[%s2942 + $0x8] sm:$0xf]
        %v2946 = vld [vmem:[%s2942 + $0xc] sm:$0xf]
        %v2947 = vld [vmem:[%s2942 + $0x10] sm:$0xf]
        %v2948 = vld [vmem:[%s2942 + $0x14] sm:$0xf]
        %v2955 = vunpack.c.l.b16 %v2943
        %v2956 = vunpack.c.l.b16 %v2944
        %v2957 = vunpack.c.l.b16 %v2945
        %v2958 = vunpack.c.l.b16 %v2946
        %v2959 = vunpack.c.l.b16 %v2947
        %v2960 = vunpack.c.l.b16 %v2948
        %v2961 = vpack.c.b16 %v2956, %v2955
        %v2962 = vpack.c.b16 %v2958, %v2957
        %v2963 = vpack.c.b16 %v2960, %v2959
        %vm2967 = vcmask 392192
        %v2969 = vsel %vm2967, %v2716, 0
        %v2972 = vsel %vm2967, %v2731, 0
        %v2975 = vsel %vm2967, %v2746, 0
        %v2978 = vsel %vm2967, %v2761, 0
        %v2981 = vsel %vm2967, %v2776, 0
        %v2984 = vsel %vm2967, %v2791, 0
        %v2987 = vsel %vm2967, %v2806, 0
        %v2990 = vsel %vm2967, %v2821, 0
        %v2993 = vsel %vm2967, %v2836, 0
        %v2996 = vsel %vm2967, %v2851, 0
        %v2999 = vsel %vm2967, %v2866, 0
        %v3002 = vsel %vm2967, %v2881, 0
        %v3005 = vsel %vm2967, %v2896, 0
        %v3008 = vsel %vm2967, %v2911, 0
        %v3011 = vsel %vm2967, %v2926, 0
        %v3014 = vsel %vm2967, %v2941, 0
        %3016 = vmatprep.subr.bf16.mxu0 0
        %3017 = vmatpush1.bf16.msra.mxu0 0
        %3018 = vmatprep.subr.bf16.mxu0 0
        %3019 = vmatpush1.bf16.msra.mxu0 0
        %3020 = vmatprep.subr.bf16.mxu0 0
        %3021 = vmatpush1.bf16.msra.mxu0 0
        %3022 = vmatprep.subr.bf16.mxu0 0
        %3023 = vmatpush1.bf16.msra.mxu0 0
        %3024 = vmatprep.subr.bf16.mxu0 0
        %3025 = vmatpush1.bf16.msra.mxu0 0
        %3026 = vmatprep.subr.bf16.mxu0 0
        %3027 = vmatpush1.bf16.msra.mxu0 %v2963
        %3028 = vmatprep.subr.bf16.mxu0 0
        %3029 = vmatpush1.bf16.msra.mxu0 %v2962
        %3030 = vmatprep.subr.bf16.mxu0 0
        %3031 = vmatpush1.bf16.msra.mxu0 %v2961
        %3032 = vmatprep.subr.bf16.mxu0 0
        %3033 = vmatpush2.bf16.msra.mxu0 0
        %3034 = vmatprep.subr.bf16.mxu0 0
        %3035 = vmatpush2.bf16.msra.mxu0 0
        %3036 = vmatprep.subr.bf16.mxu0 0
        %3037 = vmatpush2.bf16.msra.mxu0 0
        %3038 = vmatprep.subr.bf16.mxu0 0
        %3039 = vmatpush2.bf16.msra.mxu0 0
        %3040 = vmatprep.subr.bf16.mxu0 0
        %3041 = vmatpush2.bf16.msra.mxu0 0
        %3042 = vmatprep.subr.bf16.mxu0 0
        %3043 = vmatpush2.bf16.msra.mxu0 0
        %3044 = vmatprep.subr.bf16.mxu0 0
        %3045 = vmatpush2.bf16.msra.mxu0 0
        %3046 = vmatprep.subr.bf16.mxu0 0
        %3047 = vmatpush2.bf16.msra.mxu0 0
        %3048 = vmatprep.mubr.bf16.mxu0 0
        %3049 = vmatmul.mubr.bf16.gmra.mxu0 %v2969
        %v3050 = vpop.f32.mrf.mxu0
        %v3051 = vadd.f32 0.0, %v3050
        %v3052 = vpop.f32.mrf.mxu0
        %v3053 = vpop.f32.mrf.mxu0
        %v3054 = vadd.f32 0.0, %v3053
        %v3055 = vpop.f32.mrf.mxu0
        %3056 = vmatprep.mubr.bf16.mxu0 0
        %3057 = vmatmul.mubr.bf16.gmra.mxu0 %v2972
        %v3058 = vpop.f32.mrf.mxu0
        %v3059 = vadd.f32 0.0, %v3058
        %v3060 = vpop.f32.mrf.mxu0
        %v3061 = vpop.f32.mrf.mxu0
        %v3062 = vadd.f32 0.0, %v3061
        %v3063 = vpop.f32.mrf.mxu0
        %3064 = vmatprep.mubr.bf16.mxu0 0
        %3065 = vmatmul.mubr.bf16.gmra.mxu0 %v2975
        %v3066 = vpop.f32.mrf.mxu0
        %v3067 = vadd.f32 0.0, %v3066
        %v3068 = vpop.f32.mrf.mxu0
        %v3069 = vpop.f32.mrf.mxu0
        %v3070 = vadd.f32 0.0, %v3069
        %v3071 = vpop.f32.mrf.mxu0
        %3072 = vmatprep.mubr.bf16.mxu0 0
        %3073 = vmatmul.mubr.bf16.gmra.mxu0 %v2978
        %v3074 = vpop.f32.mrf.mxu0
        %v3075 = vadd.f32 0.0, %v3074
        %v3076 = vpop.f32.mrf.mxu0
        %v3077 = vpop.f32.mrf.mxu0
        %v3078 = vadd.f32 0.0, %v3077
        %v3079 = vpop.f32.mrf.mxu0
        %3080 = vmatprep.mubr.bf16.mxu0 0
        %3081 = vmatmul.mubr.bf16.gmra.mxu0 %v2981
        %v3082 = vpop.f32.mrf.mxu0
        %v3083 = vadd.f32 0.0, %v3082
        %v3084 = vpop.f32.mrf.mxu0
        %v3085 = vpop.f32.mrf.mxu0
        %v3086 = vadd.f32 0.0, %v3085
        %v3087 = vpop.f32.mrf.mxu0
        %3088 = vmatprep.mubr.bf16.mxu0 0
        %3089 = vmatmul.mubr.bf16.gmra.mxu0 %v2984
        %v3090 = vpop.f32.mrf.mxu0
        %v3091 = vadd.f32 0.0, %v3090
        %v3092 = vpop.f32.mrf.mxu0
        %v3093 = vpop.f32.mrf.mxu0
        %v3094 = vadd.f32 0.0, %v3093
        %v3095 = vpop.f32.mrf.mxu0
        %3096 = vmatprep.mubr.bf16.mxu0 0
        %3097 = vmatmul.mubr.bf16.gmra.mxu0 %v2987
        %v3098 = vpop.f32.mrf.mxu0
        %v3099 = vadd.f32 0.0, %v3098
        %v3100 = vpop.f32.mrf.mxu0
        %v3101 = vpop.f32.mrf.mxu0
        %v3102 = vadd.f32 0.0, %v3101
        %v3103 = vpop.f32.mrf.mxu0
        %3104 = vmatprep.mubr.bf16.mxu0 0
        %3105 = vmatmul.mubr.bf16.gmra.mxu0 %v2990
        %v3106 = vpop.f32.mrf.mxu0
        %v3107 = vadd.f32 0.0, %v3106
        %v3108 = vpop.f32.mrf.mxu0
        %v3109 = vpop.f32.mrf.mxu0
        %v3110 = vadd.f32 0.0, %v3109
        %v3111 = vpop.f32.mrf.mxu0
        %3112 = vmatprep.mubr.bf16.mxu0 0
        %3113 = vmatmul.mubr.bf16.gmra.mxu0 %v2993
        %v3114 = vpop.f32.mrf.mxu0
        %v3115 = vadd.f32 0.0, %v3114
        %v3116 = vpop.f32.mrf.mxu0
        %v3117 = vpop.f32.mrf.mxu0
        %v3118 = vadd.f32 0.0, %v3117
        %v3119 = vpop.f32.mrf.mxu0
        %3120 = vmatprep.mubr.bf16.mxu0 0
        %3121 = vmatmul.mubr.bf16.gmra.mxu0 %v2996
        %v3122 = vpop.f32.mrf.mxu0
        %v3123 = vadd.f32 0.0, %v3122
        %v3124 = vpop.f32.mrf.mxu0
        %v3125 = vpop.f32.mrf.mxu0
        %v3126 = vadd.f32 0.0, %v3125
        %v3127 = vpop.f32.mrf.mxu0
        %3128 = vmatprep.mubr.bf16.mxu0 0
        %3129 = vmatmul.mubr.bf16.gmra.mxu0 %v2999
        %v3130 = vpop.f32.mrf.mxu0
        %v3131 = vadd.f32 0.0, %v3130
        %v3132 = vpop.f32.mrf.mxu0
        %v3133 = vpop.f32.mrf.mxu0
        %v3134 = vadd.f32 0.0, %v3133
        %v3135 = vpop.f32.mrf.mxu0
        %3136 = vmatprep.mubr.bf16.mxu0 0
        %3137 = vmatmul.mubr.bf16.gmra.mxu0 %v3002
        %v3138 = vpop.f32.mrf.mxu0
        %v3139 = vadd.f32 0.0, %v3138
        %v3140 = vpop.f32.mrf.mxu0
        %v3141 = vpop.f32.mrf.mxu0
        %v3142 = vadd.f32 0.0, %v3141
        %v3143 = vpop.f32.mrf.mxu0
        %3144 = vmatprep.mubr.bf16.mxu0 0
        %3145 = vmatmul.mubr.bf16.gmra.mxu0 %v3005
        %v3146 = vpop.f32.mrf.mxu0
        %v3147 = vadd.f32 0.0, %v3146
        %v3148 = vpop.f32.mrf.mxu0
        %v3149 = vpop.f32.mrf.mxu0
        %v3150 = vadd.f32 0.0, %v3149
        %v3151 = vpop.f32.mrf.mxu0
        %3152 = vmatprep.mubr.bf16.mxu0 0
        %3153 = vmatmul.mubr.bf16.gmra.mxu0 %v3008
        %v3154 = vpop.f32.mrf.mxu0
        %v3155 = vadd.f32 0.0, %v3154
        %v3156 = vpop.f32.mrf.mxu0
        %v3157 = vpop.f32.mrf.mxu0
        %v3158 = vadd.f32 0.0, %v3157
        %v3159 = vpop.f32.mrf.mxu0
        %3160 = vmatprep.mubr.bf16.mxu0 0
        %3161 = vmatmul.mubr.bf16.gmra.mxu0 %v3011
        %v3162 = vpop.f32.mrf.mxu0
        %v3163 = vadd.f32 0.0, %v3162
        %v3164 = vpop.f32.mrf.mxu0
        %v3165 = vpop.f32.mrf.mxu0
        %v3166 = vadd.f32 0.0, %v3165
        %v3167 = vpop.f32.mrf.mxu0
        %3168 = vmatprep.mubr.bf16.mxu0 0
        %3169 = vmatmul.mubr.bf16.gmra.mxu0 %v3014
        %v3170 = vpop.f32.mrf.mxu0
        %v3171 = vadd.f32 0.0, %v3170
        %v3172 = vpop.f32.mrf.mxu0
        %v3173 = vpop.f32.mrf.mxu0
        %v3174 = vadd.f32 0.0, %v3173
        %v3175 = vpop.f32.mrf.mxu0
        %3176 = vdwg.mxu0
        %v3183 = vunpack.c.l.b16 %v2024
        %v3184 = vunpack.c.l.b16 %v2025
        %v3185 = vunpack.c.l.b16 %v2026
        %v3186 = vunpack.c.l.b16 %v2027
        %v3187 = vunpack.c.l.b16 %v2028
        %v3188 = vunpack.c.l.b16 %v2029
        %v3189 = vpack.c.b16 %v3184, %v3183
        %v3190 = vpack.c.b16 %v3186, %v3185
        %v3191 = vpack.c.b16 %v3188, %v3187
        %v3196 = vsel %vm2967, %v1798, 0
        %v3199 = vsel %vm2967, %v1813, 0
        %v3202 = vsel %vm2967, %v1828, 0
        %v3205 = vsel %vm2967, %v1843, 0
        %v3208 = vsel %vm2967, %v1858, 0
        %v3211 = vsel %vm2967, %v1873, 0
        %v3214 = vsel %vm2967, %v1888, 0
        %v3217 = vsel %vm2967, %v1903, 0
        %v3220 = vsel %vm2967, %v1918, 0
        %v3223 = vsel %vm2967, %v1933, 0
        %v3226 = vsel %vm2967, %v1948, 0
        %v3229 = vsel %vm2967, %v1963, 0
        %v3232 = vsel %vm2967, %v1978, 0
        %v3235 = vsel %vm2967, %v1993, 0
        %v3238 = vsel %vm2967, %v2008, 0
        %v3241 = vsel %vm2967, %v2023, 0
        %3243 = vmatprep.subr.bf16.mxu0 0
        %3244 = vmatpush1.bf16.msra.mxu0 0
        %3245 = vmatprep.subr.bf16.mxu0 0
        %3246 = vmatpush1.bf16.msra.mxu0 0
        %3247 = vmatprep.subr.bf16.mxu0 0
        %3248 = vmatpush1.bf16.msra.mxu0 0
        %3249 = vmatprep.subr.bf16.mxu0 0
        %3250 = vmatpush1.bf16.msra.mxu0 0
        %3251 = vmatprep.subr.bf16.mxu0 0
        %3252 = vmatpush1.bf16.msra.mxu0 0
        %3253 = vmatprep.subr.bf16.mxu0 0
        %3254 = vmatpush1.bf16.msra.mxu0 %v3191
        %3255 = vmatprep.subr.bf16.mxu0 0
        %3256 = vmatpush1.bf16.msra.mxu0 %v3190
        %3257 = vmatprep.subr.bf16.mxu0 0
        %3258 = vmatpush1.bf16.msra.mxu0 %v3189
        %3259 = vmatprep.subr.bf16.mxu0 0
        %3260 = vmatpush2.bf16.msra.mxu0 0
        %3261 = vmatprep.subr.bf16.mxu0 0
        %3262 = vmatpush2.bf16.msra.mxu0 0
        %3263 = vmatprep.subr.bf16.mxu0 0
        %3264 = vmatpush2.bf16.msra.mxu0 0
        %3265 = vmatprep.subr.bf16.mxu0 0
        %3266 = vmatpush2.bf16.msra.mxu0 0
        %3267 = vmatprep.subr.bf16.mxu0 0
        %3268 = vmatpush2.bf16.msra.mxu0 0
        %3269 = vmatprep.subr.bf16.mxu0 0
        %3270 = vmatpush2.bf16.msra.mxu0 0
        %3271 = vmatprep.subr.bf16.mxu0 0
        %3272 = vmatpush2.bf16.msra.mxu0 0
        %3273 = vmatprep.subr.bf16.mxu0 0
        %3274 = vmatpush2.bf16.msra.mxu0 0
        %3275 = vmatprep.mubr.bf16.mxu0 0
        %3276 = vmatmul.mubr.bf16.gmra.mxu0 %v3196
        %v3277 = vpop.f32.mrf.mxu0
        %v3278 = vadd.f32 %v3051, %v3277
        %v3279 = vpop.f32.mrf.mxu0
        %v3280 = vpop.f32.mrf.mxu0
        %v3281 = vadd.f32 %v3054, %v3280
        %v3282 = vpop.f32.mrf.mxu0
        %3283 = vmatprep.mubr.bf16.mxu0 0
        %3284 = vmatmul.mubr.bf16.gmra.mxu0 %v3199
        %v3285 = vpop.f32.mrf.mxu0
        %v3286 = vadd.f32 %v3059, %v3285
        %v3287 = vpop.f32.mrf.mxu0
        %v3288 = vpop.f32.mrf.mxu0
        %v3289 = vadd.f32 %v3062, %v3288
        %v3290 = vpop.f32.mrf.mxu0
        %3291 = vmatprep.mubr.bf16.mxu0 0
        %3292 = vmatmul.mubr.bf16.gmra.mxu0 %v3202
        %v3293 = vpop.f32.mrf.mxu0
        %v3294 = vadd.f32 %v3067, %v3293
        %v3295 = vpop.f32.mrf.mxu0
        %v3296 = vpop.f32.mrf.mxu0
        %v3297 = vadd.f32 %v3070, %v3296
        %v3298 = vpop.f32.mrf.mxu0
        %3299 = vmatprep.mubr.bf16.mxu0 0
        %3300 = vmatmul.mubr.bf16.gmra.mxu0 %v3205
        %v3301 = vpop.f32.mrf.mxu0
        %v3302 = vadd.f32 %v3075, %v3301
        %v3303 = vpop.f32.mrf.mxu0
        %v3304 = vpop.f32.mrf.mxu0
        %v3305 = vadd.f32 %v3078, %v3304
        %v3306 = vpop.f32.mrf.mxu0
        %3307 = vmatprep.mubr.bf16.mxu0 0
        %3308 = vmatmul.mubr.bf16.gmra.mxu0 %v3208
        %v3309 = vpop.f32.mrf.mxu0
        %v3310 = vadd.f32 %v3083, %v3309
        %v3311 = vpop.f32.mrf.mxu0
        %v3312 = vpop.f32.mrf.mxu0
        %v3313 = vadd.f32 %v3086, %v3312
        %v3314 = vpop.f32.mrf.mxu0
        %3315 = vmatprep.mubr.bf16.mxu0 0
        %3316 = vmatmul.mubr.bf16.gmra.mxu0 %v3211
        %v3317 = vpop.f32.mrf.mxu0
        %v3318 = vadd.f32 %v3091, %v3317
        %v3319 = vpop.f32.mrf.mxu0
        %v3320 = vpop.f32.mrf.mxu0
        %v3321 = vadd.f32 %v3094, %v3320
        %v3322 = vpop.f32.mrf.mxu0
        %3323 = vmatprep.mubr.bf16.mxu0 0
        %3324 = vmatmul.mubr.bf16.gmra.mxu0 %v3214
        %v3325 = vpop.f32.mrf.mxu0
        %v3326 = vadd.f32 %v3099, %v3325
        %v3327 = vpop.f32.mrf.mxu0
        %v3328 = vpop.f32.mrf.mxu0
        %v3329 = vadd.f32 %v3102, %v3328
        %v3330 = vpop.f32.mrf.mxu0
        %3331 = vmatprep.mubr.bf16.mxu0 0
        %3332 = vmatmul.mubr.bf16.gmra.mxu0 %v3217
        %v3333 = vpop.f32.mrf.mxu0
        %v3334 = vadd.f32 %v3107, %v3333
        %v3335 = vpop.f32.mrf.mxu0
        %v3336 = vpop.f32.mrf.mxu0
        %v3337 = vadd.f32 %v3110, %v3336
        %v3338 = vpop.f32.mrf.mxu0
        %3339 = vmatprep.mubr.bf16.mxu0 0
        %3340 = vmatmul.mubr.bf16.gmra.mxu0 %v3220
        %v3341 = vpop.f32.mrf.mxu0
        %v3342 = vadd.f32 %v3115, %v3341
        %v3343 = vpop.f32.mrf.mxu0
        %v3344 = vpop.f32.mrf.mxu0
        %v3345 = vadd.f32 %v3118, %v3344
        %v3346 = vpop.f32.mrf.mxu0
        %3347 = vmatprep.mubr.bf16.mxu0 0
        %3348 = vmatmul.mubr.bf16.gmra.mxu0 %v3223
        %v3349 = vpop.f32.mrf.mxu0
        %v3350 = vadd.f32 %v3123, %v3349
        %v3351 = vpop.f32.mrf.mxu0
        %v3352 = vpop.f32.mrf.mxu0
        %v3353 = vadd.f32 %v3126, %v3352
        %v3354 = vpop.f32.mrf.mxu0
        %3355 = vmatprep.mubr.bf16.mxu0 0
        %3356 = vmatmul.mubr.bf16.gmra.mxu0 %v3226
        %v3357 = vpop.f32.mrf.mxu0
        %v3358 = vadd.f32 %v3131, %v3357
        %v3359 = vpop.f32.mrf.mxu0
        %v3360 = vpop.f32.mrf.mxu0
        %v3361 = vadd.f32 %v3134, %v3360
        %v3362 = vpop.f32.mrf.mxu0
        %3363 = vmatprep.mubr.bf16.mxu0 0
        %3364 = vmatmul.mubr.bf16.gmra.mxu0 %v3229
        %v3365 = vpop.f32.mrf.mxu0
        %v3366 = vadd.f32 %v3139, %v3365
        %v3367 = vpop.f32.mrf.mxu0
        %v3368 = vpop.f32.mrf.mxu0
        %v3369 = vadd.f32 %v3142, %v3368
        %v3370 = vpop.f32.mrf.mxu0
        %3371 = vmatprep.mubr.bf16.mxu0 0
        %3372 = vmatmul.mubr.bf16.gmra.mxu0 %v3232
        %v3373 = vpop.f32.mrf.mxu0
        %v3374 = vadd.f32 %v3147, %v3373
        %v3375 = vpop.f32.mrf.mxu0
        %v3376 = vpop.f32.mrf.mxu0
        %v3377 = vadd.f32 %v3150, %v3376
        %v3378 = vpop.f32.mrf.mxu0
        %3379 = vmatprep.mubr.bf16.mxu0 0
        %3380 = vmatmul.mubr.bf16.gmra.mxu0 %v3235
        %v3381 = vpop.f32.mrf.mxu0
        %v3382 = vadd.f32 %v3155, %v3381
        %v3383 = vpop.f32.mrf.mxu0
        %v3384 = vpop.f32.mrf.mxu0
        %v3385 = vadd.f32 %v3158, %v3384
        %v3386 = vpop.f32.mrf.mxu0
        %3387 = vmatprep.mubr.bf16.mxu0 0
        %3388 = vmatmul.mubr.bf16.gmra.mxu0 %v3238
        %v3389 = vpop.f32.mrf.mxu0
        %v3390 = vadd.f32 %v3163, %v3389
        %v3391 = vpop.f32.mrf.mxu0
        %v3392 = vpop.f32.mrf.mxu0
        %v3393 = vadd.f32 %v3166, %v3392
        %v3394 = vpop.f32.mrf.mxu0
        %3395 = vmatprep.mubr.bf16.mxu0 0
        %3396 = vmatmul.mubr.bf16.gmra.mxu0 %v3241
        %v3397 = vpop.f32.mrf.mxu0
        %v3398 = vadd.f32 %v3171, %v3397
        %v3399 = vpop.f32.mrf.mxu0
        %v3400 = vpop.f32.mrf.mxu0
        %v3401 = vadd.f32 %v3174, %v3400
        %v3402 = vpop.f32.mrf.mxu0
        %3403 = vdwg.mxu0
        %s3404 = scalar_lea.vmem [#allocation2], 40
        %v3405 = vld [vmem:[%s3404 + $0x4] sm:$0x8]
        %v3406 = vld [vmem:[%s3404 + $0x8] sm:$0xf]
        %v3407 = vld [vmem:[%s3404 + $0xc] sm:$0xf]
        %v3408 = vld [vmem:[%s3404 + $0x18] sm:$0x8]
        %v3409 = vld [vmem:[%s3404 + $0x1c] sm:$0xf]
        %v3410 = vld [vmem:[%s3404 + $0x20] sm:$0xf]
        %v3411 = vld [vmem:[%s3404 + $0x2c] sm:$0x8]
        %v3412 = vld [vmem:[%s3404 + $0x30] sm:$0xf]
        %v3413 = vld [vmem:[%s3404 + $0x34] sm:$0xf]
        %v3414 = vld [vmem:[%s3404 + $0x40] sm:$0x8]
        %v3415 = vld [vmem:[%s3404 + $0x44] sm:$0xf]
        %v3416 = vld [vmem:[%s3404 + $0x48] sm:$0xf]
        %v3417 = vld [vmem:[%s3404 + $0x54] sm:$0x8]
        %v3418 = vld [vmem:[%s3404 + $0x58] sm:$0xf]
        %v3419 = vld [vmem:[%s3404 + $0x5c] sm:$0xf]
        %v3420 = vld [vmem:[%s3404 + $0x68] sm:$0x8]
        %v3421 = vld [vmem:[%s3404 + $0x6c] sm:$0xf]
        %v3422 = vld [vmem:[%s3404 + $0x70] sm:$0xf]
        %v3423 = vld [vmem:[%s3404 + $0x7c] sm:$0x8]
        %v3424 = vld [vmem:[%s3404 + $0x80] sm:$0xf]
        %v3425 = vld [vmem:[%s3404 + $0x84] sm:$0xf]
        %v3426 = vld [vmem:[%s3404 + $0x90] sm:$0x8]
        %v3427 = vld [vmem:[%s3404 + $0x94] sm:$0xf]
        %v3428 = vld [vmem:[%s3404 + $0x98] sm:$0xf]
        %v3429 = vld [vmem:[%s3404 + $0xa4] sm:$0x8]
        %v3430 = vld [vmem:[%s3404 + $0xa8] sm:$0xf]
        %v3431 = vld [vmem:[%s3404 + $0xac] sm:$0xf]
        %v3432 = vld [vmem:[%s3404 + $0xb8] sm:$0x8]
        %v3433 = vld [vmem:[%s3404 + $0xbc] sm:$0xf]
        %v3434 = vld [vmem:[%s3404 + $0xc0] sm:$0xf]
        %v3435 = vld [vmem:[%s3404 + $0xcc] sm:$0x8]
        %v3436 = vld [vmem:[%s3404 + $0xd0] sm:$0xf]
        %v3437 = vld [vmem:[%s3404 + $0xd4] sm:$0xf]
        %v3438 = vld [vmem:[%s3404 + $0xe0] sm:$0x8]
        %v3439 = vld [vmem:[%s3404 + $0xe4] sm:$0xf]
        %v3440 = vld [vmem:[%s3404 + $0xe8] sm:$0xf]
        %v3441 = vld [vmem:[%s3404 + $0xf4] sm:$0x8]
        %v3442 = vld [vmem:[%s3404 + $0xf8] sm:$0xf]
        %v3443 = vld [vmem:[%s3404 + $0xfc] sm:$0xf]
        %v3444 = vld [vmem:[%s3404 + $0x108] sm:$0x8]
        %v3445 = vld [vmem:[%s3404 + $0x10c] sm:$0xf]
        %v3446 = vld [vmem:[%s3404 + $0x110] sm:$0xf]
        %v3447 = vld [vmem:[%s3404 + $0x11c] sm:$0x8]
        %v3448 = vld [vmem:[%s3404 + $0x120] sm:$0xf]
        %v3449 = vld [vmem:[%s3404 + $0x124] sm:$0xf]
        %v3450 = vld [vmem:[%s3404 + $0x130] sm:$0x8]
        %v3451 = vld [vmem:[%s3404 + $0x134] sm:$0xf]
        %v3452 = vld [vmem:[%s3404 + $0x138] sm:$0xf]
        %v3453 = vld [vmem:[%s3404 + $0x10] sm:$0x1]
        %v3454 = vld [vmem:[%s3404 + $0x24] sm:$0x1]
        %v3455 = vld [vmem:[%s3404 + $0x38] sm:$0x1]
        %v3456 = vld [vmem:[%s3404 + $0x4c] sm:$0x1]
        %v3457 = vld [vmem:[%s3404 + $0x60] sm:$0x1]
        %v3458 = vld [vmem:[%s3404 + $0x74] sm:$0x1]
        %v3459 = vld [vmem:[%s3404 + $0x88] sm:$0x1]
        %v3460 = vld [vmem:[%s3404 + $0x9c] sm:$0x1]
        %v3461 = vld [vmem:[%s3404 + $0xb0] sm:$0x1]
        %v3462 = vld [vmem:[%s3404 + $0xc4] sm:$0x1]
        %v3463 = vld [vmem:[%s3404 + $0xd8] sm:$0x1]
        %v3464 = vld [vmem:[%s3404 + $0xec] sm:$0x1]
        %v3465 = vld [vmem:[%s3404 + $0x100] sm:$0x1]
        %v3466 = vld [vmem:[%s3404 + $0x114] sm:$0x1]
        %v3467 = vld [vmem:[%s3404 + $0x128] sm:$0x1]
        %v3468 = vld [vmem:[%s3404 + $0x13c] sm:$0x1]
        %v3517 = vunpack.c.l.b16 %v3405
        %v3518 = vunpack.c.l.b16 %v3406
        %v3519 = vunpack.c.l.b16 %v3407
        %v3520 = vunpack.c.l.b16 %v3408
        %v3521 = vunpack.c.l.b16 %v3409
        %v3522 = vunpack.c.l.b16 %v3410
        %v3523 = vunpack.c.l.b16 %v3411
        %v3524 = vunpack.c.l.b16 %v3412
        %v3525 = vunpack.c.l.b16 %v3413
        %v3526 = vunpack.c.l.b16 %v3414
        %v3527 = vunpack.c.l.b16 %v3415
        %v3528 = vunpack.c.l.b16 %v3416
        %v3529 = vunpack.c.l.b16 %v3417
        %v3530 = vunpack.c.l.b16 %v3418
        %v3531 = vunpack.c.l.b16 %v3419
        %v3532 = vunpack.c.l.b16 %v3420
        %v3533 = vunpack.c.l.b16 %v3421
        %v3534 = vunpack.c.l.b16 %v3422
        %v3535 = vunpack.c.l.b16 %v3423
        %v3536 = vunpack.c.l.b16 %v3424
        %v3537 = vunpack.c.l.b16 %v3425
        %v3538 = vunpack.c.l.b16 %v3426
        %v3539 = vunpack.c.l.b16 %v3427
        %v3540 = vunpack.c.l.b16 %v3428
        %v3541 = vunpack.c.l.b16 %v3429
        %v3542 = vunpack.c.l.b16 %v3430
        %v3543 = vunpack.c.l.b16 %v3431
        %v3544 = vunpack.c.l.b16 %v3432
        %v3545 = vunpack.c.l.b16 %v3433
        %v3546 = vunpack.c.l.b16 %v3434
        %v3547 = vunpack.c.l.b16 %v3435
        %v3548 = vunpack.c.l.b16 %v3436
        %v3549 = vunpack.c.l.b16 %v3437
        %v3550 = vunpack.c.l.b16 %v3438
        %v3551 = vunpack.c.l.b16 %v3439
        %v3552 = vunpack.c.l.b16 %v3440
        %v3553 = vunpack.c.l.b16 %v3441
        %v3554 = vunpack.c.l.b16 %v3442
        %v3555 = vunpack.c.l.b16 %v3443
        %v3556 = vunpack.c.l.b16 %v3444
        %v3557 = vunpack.c.l.b16 %v3445
        %v3558 = vunpack.c.l.b16 %v3446
        %v3559 = vunpack.c.l.b16 %v3447
        %v3560 = vunpack.c.l.b16 %v3448
        %v3561 = vunpack.c.l.b16 %v3449
        %v3562 = vunpack.c.l.b16 %v3450
        %v3563 = vunpack.c.l.b16 %v3451
        %v3564 = vunpack.c.l.b16 %v3452
        %v3565 = vpack.c.b16 %v3518, %v3517
        %v3566 = vpack.c.b16 %v3519, %v3519
        %v3567 = vpack.c.b16 %v3521, %v3520
        %v3568 = vpack.c.b16 %v3522, %v3522
        %v3569 = vpack.c.b16 %v3524, %v3523
        %v3570 = vpack.c.b16 %v3525, %v3525
        %v3571 = vpack.c.b16 %v3527, %v3526
        %v3572 = vpack.c.b16 %v3528, %v3528
        %v3573 = vpack.c.b16 %v3530, %v3529
        %v3574 = vpack.c.b16 %v3531, %v3531
        %v3575 = vpack.c.b16 %v3533, %v3532
        %v3576 = vpack.c.b16 %v3534, %v3534
        %v3577 = vpack.c.b16 %v3536, %v3535
        %v3578 = vpack.c.b16 %v3537, %v3537
        %v3579 = vpack.c.b16 %v3539, %v3538
        %v3580 = vpack.c.b16 %v3540, %v3540
        %v3581 = vpack.c.b16 %v3542, %v3541
        %v3582 = vpack.c.b16 %v3543, %v3543
        %v3583 = vpack.c.b16 %v3545, %v3544
        %v3584 = vpack.c.b16 %v3546, %v3546
        %v3585 = vpack.c.b16 %v3548, %v3547
        %v3586 = vpack.c.b16 %v3549, %v3549
        %v3587 = vpack.c.b16 %v3551, %v3550
        %v3588 = vpack.c.b16 %v3552, %v3552
        %v3589 = vpack.c.b16 %v3554, %v3553
        %v3590 = vpack.c.b16 %v3555, %v3555
        %v3591 = vpack.c.b16 %v3557, %v3556
        %v3592 = vpack.c.b16 %v3558, %v3558
        %v3593 = vpack.c.b16 %v3560, %v3559
        %v3594 = vpack.c.b16 %v3561, %v3561
        %v3595 = vpack.c.b16 %v3563, %v3562
        %v3596 = vpack.c.b16 %v3564, %v3564
        %v3597 = vpack.c.b16 %v3519, %v3518
        %v3598 = vpack.c.b16 %v3522, %v3521
        %v3599 = vpack.c.b16 %v3525, %v3524
        %v3600 = vpack.c.b16 %v3528, %v3527
        %v3601 = vpack.c.b16 %v3531, %v3530
        %v3602 = vpack.c.b16 %v3534, %v3533
        %v3603 = vpack.c.b16 %v3537, %v3536
        %v3604 = vpack.c.b16 %v3540, %v3539
        %v3605 = vpack.c.b16 %v3543, %v3542
        %v3606 = vpack.c.b16 %v3546, %v3545
        %v3607 = vpack.c.b16 %v3549, %v3548
        %v3608 = vpack.c.b16 %v3552, %v3551
        %v3609 = vpack.c.b16 %v3555, %v3554
        %v3610 = vpack.c.b16 %v3558, %v3557
        %v3611 = vpack.c.b16 %v3561, %v3560
        %v3612 = vpack.c.b16 %v3564, %v3563
        %v3614 = vshrl.u32 %v3597, 16
        %v3616 = vrot.slane %v3614, 4
        %v3617 = vshll.u32 %v3597, 16
        %v3619 = vrot.slane %v3617, 5
        %v3620 = vor.u32 %v3616, %v3619
        %v3622 = vshrl.u32 %v3598, 16
        %v3624 = vrot.slane %v3622, 4
        %v3625 = vshll.u32 %v3598, 16
        %v3627 = vrot.slane %v3625, 5
        %v3628 = vor.u32 %v3624, %v3627
        %v3630 = vshrl.u32 %v3599, 16
        %v3632 = vrot.slane %v3630, 4
        %v3633 = vshll.u32 %v3599, 16
        %v3635 = vrot.slane %v3633, 5
        %v3636 = vor.u32 %v3632, %v3635
        %v3638 = vshrl.u32 %v3600, 16
        %v3640 = vrot.slane %v3638, 4
        %v3641 = vshll.u32 %v3600, 16
        %v3643 = vrot.slane %v3641, 5
        %v3644 = vor.u32 %v3640, %v3643
        %v3646 = vshrl.u32 %v3601, 16
        %v3648 = vrot.slane %v3646, 4
        %v3649 = vshll.u32 %v3601, 16
        %v3651 = vrot.slane %v3649, 5
        %v3652 = vor.u32 %v3648, %v3651
        %v3654 = vshrl.u32 %v3602, 16
        %v3656 = vrot.slane %v3654, 4
        %v3657 = vshll.u32 %v3602, 16
        %v3659 = vrot.slane %v3657, 5
        %v3660 = vor.u32 %v3656, %v3659
        %v3662 = vshrl.u32 %v3603, 16
        %v3664 = vrot.slane %v3662, 4
        %v3665 = vshll.u32 %v3603, 16
        %v3667 = vrot.slane %v3665, 5
        %v3668 = vor.u32 %v3664, %v3667
        %v3670 = vshrl.u32 %v3604, 16
        %v3672 = vrot.slane %v3670, 4
        %v3673 = vshll.u32 %v3604, 16
        %v3675 = vrot.slane %v3673, 5
        %v3676 = vor.u32 %v3672, %v3675
        %v3678 = vshrl.u32 %v3605, 16
        %v3680 = vrot.slane %v3678, 4
        %v3681 = vshll.u32 %v3605, 16
        %v3683 = vrot.slane %v3681, 5
        %v3684 = vor.u32 %v3680, %v3683
        %v3686 = vshrl.u32 %v3606, 16
        %v3688 = vrot.slane %v3686, 4
        %v3689 = vshll.u32 %v3606, 16
        %v3691 = vrot.slane %v3689, 5
        %v3692 = vor.u32 %v3688, %v3691
        %v3694 = vshrl.u32 %v3607, 16
        %v3696 = vrot.slane %v3694, 4
        %v3697 = vshll.u32 %v3607, 16
        %v3699 = vrot.slane %v3697, 5
        %v3700 = vor.u32 %v3696, %v3699
        %v3702 = vshrl.u32 %v3608, 16
        %v3704 = vrot.slane %v3702, 4
        %v3705 = vshll.u32 %v3608, 16
        %v3707 = vrot.slane %v3705, 5
        %v3708 = vor.u32 %v3704, %v3707
        %v3710 = vshrl.u32 %v3609, 16
        %v3712 = vrot.slane %v3710, 4
        %v3713 = vshll.u32 %v3609, 16
        %v3715 = vrot.slane %v3713, 5
        %v3716 = vor.u32 %v3712, %v3715
        %v3718 = vshrl.u32 %v3610, 16
        %v3720 = vrot.slane %v3718, 4
        %v3721 = vshll.u32 %v3610, 16
        %v3723 = vrot.slane %v3721, 5
        %v3724 = vor.u32 %v3720, %v3723
        %v3726 = vshrl.u32 %v3611, 16
        %v3728 = vrot.slane %v3726, 4
        %v3729 = vshll.u32 %v3611, 16
        %v3731 = vrot.slane %v3729, 5
        %v3732 = vor.u32 %v3728, %v3731
        %v3734 = vshrl.u32 %v3612, 16
        %v3736 = vrot.slane %v3734, 4
        %v3737 = vshll.u32 %v3612, 16
        %v3739 = vrot.slane %v3737, 5
        %v3740 = vor.u32 %v3736, %v3739
        %3741 = vrot.lane.b32.xlu0 %v3620, 16
        %v3742 = vpop.permute.xlu0 %3741
        %3743 = vrot.lane.b32.xlu0 %v3628, 16
        %v3744 = vpop.permute.xlu0 %3743
        %3745 = vrot.lane.b32.xlu0 %v3636, 16
        %v3746 = vpop.permute.xlu0 %3745
        %3747 = vrot.lane.b32.xlu0 %v3644, 16
        %v3748 = vpop.permute.xlu0 %3747
        %3749 = vrot.lane.b32.xlu0 %v3652, 16
        %v3750 = vpop.permute.xlu0 %3749
        %3751 = vrot.lane.b32.xlu0 %v3660, 16
        %v3752 = vpop.permute.xlu0 %3751
        %3753 = vrot.lane.b32.xlu0 %v3668, 16
        %v3754 = vpop.permute.xlu0 %3753
        %3755 = vrot.lane.b32.xlu0 %v3676, 16
        %v3756 = vpop.permute.xlu0 %3755
        %3757 = vrot.lane.b32.xlu0 %v3684, 16
        %v3758 = vpop.permute.xlu0 %3757
        %3759 = vrot.lane.b32.xlu0 %v3692, 16
        %v3760 = vpop.permute.xlu0 %3759
        %3761 = vrot.lane.b32.xlu0 %v3700, 16
        %v3762 = vpop.permute.xlu0 %3761
        %3763 = vrot.lane.b32.xlu0 %v3708, 16
        %v3764 = vpop.permute.xlu0 %3763
        %3765 = vrot.lane.b32.xlu0 %v3716, 16
        %v3766 = vpop.permute.xlu0 %3765
        %3767 = vrot.lane.b32.xlu0 %v3724, 16
        %v3768 = vpop.permute.xlu0 %3767
        %3769 = vrot.lane.b32.xlu0 %v3732, 16
        %v3770 = vpop.permute.xlu0 %3769
        %3771 = vrot.lane.b32.xlu0 %v3740, 16
        %v3772 = vpop.permute.xlu0 %3771
        %v3789 = vunpack.c.l.b16 %v3453
        %v3790 = vunpack.c.l.b16 %v3454
        %v3791 = vunpack.c.l.b16 %v3455
        %v3792 = vunpack.c.l.b16 %v3456
        %v3793 = vunpack.c.l.b16 %v3457
        %v3794 = vunpack.c.l.b16 %v3458
        %v3795 = vunpack.c.l.b16 %v3459
        %v3796 = vunpack.c.l.b16 %v3460
        %v3797 = vunpack.c.l.b16 %v3461
        %v3798 = vunpack.c.l.b16 %v3462
        %v3799 = vunpack.c.l.b16 %v3463
        %v3800 = vunpack.c.l.b16 %v3464
        %v3801 = vunpack.c.l.b16 %v3465
        %v3802 = vunpack.c.l.b16 %v3466
        %v3803 = vunpack.c.l.b16 %v3467
        %v3804 = vunpack.c.l.b16 %v3468
        %v3805 = vpack.c.b16 %v3789, %v3789
        %v3806 = vpack.c.b16 %v3790, %v3790
        %v3807 = vpack.c.b16 %v3791, %v3791
        %v3808 = vpack.c.b16 %v3792, %v3792
        %v3809 = vpack.c.b16 %v3793, %v3793
        %v3810 = vpack.c.b16 %v3794, %v3794
        %v3811 = vpack.c.b16 %v3795, %v3795
        %v3812 = vpack.c.b16 %v3796, %v3796
        %v3813 = vpack.c.b16 %v3797, %v3797
        %v3814 = vpack.c.b16 %v3798, %v3798
        %v3815 = vpack.c.b16 %v3799, %v3799
        %v3816 = vpack.c.b16 %v3800, %v3800
        %v3817 = vpack.c.b16 %v3801, %v3801
        %v3818 = vpack.c.b16 %v3802, %v3802
        %v3819 = vpack.c.b16 %v3803, %v3803
        %v3820 = vpack.c.b16 %v3804, %v3804
        %v3821 = vrot.slane %v3597, 5
        %v3822 = vrot.slane %v3805, 5
        %v3823 = vsel %vm1525, %v3821, %v3822
        %v3824 = vrot.slane %v3598, 5
        %v3825 = vrot.slane %v3806, 5
        %v3826 = vsel %vm1525, %v3824, %v3825
        %v3827 = vrot.slane %v3599, 5
        %v3828 = vrot.slane %v3807, 5
        %v3829 = vsel %vm1525, %v3827, %v3828
        %v3830 = vrot.slane %v3600, 5
        %v3831 = vrot.slane %v3808, 5
        %v3832 = vsel %vm1525, %v3830, %v3831
        %v3833 = vrot.slane %v3601, 5
        %v3834 = vrot.slane %v3809, 5
        %v3835 = vsel %vm1525, %v3833, %v3834
        %v3836 = vrot.slane %v3602, 5
        %v3837 = vrot.slane %v3810, 5
        %v3838 = vsel %vm1525, %v3836, %v3837
        %v3839 = vrot.slane %v3603, 5
        %v3840 = vrot.slane %v3811, 5
        %v3841 = vsel %vm1525, %v3839, %v3840
        %v3842 = vrot.slane %v3604, 5
        %v3843 = vrot.slane %v3812, 5
        %v3844 = vsel %vm1525, %v3842, %v3843
        %v3845 = vrot.slane %v3605, 5
        %v3846 = vrot.slane %v3813, 5
        %v3847 = vsel %vm1525, %v3845, %v3846
        %v3848 = vrot.slane %v3606, 5
        %v3849 = vrot.slane %v3814, 5
        %v3850 = vsel %vm1525, %v3848, %v3849
        %v3851 = vrot.slane %v3607, 5
        %v3852 = vrot.slane %v3815, 5
        %v3853 = vsel %vm1525, %v3851, %v3852
        %v3854 = vrot.slane %v3608, 5
        %v3855 = vrot.slane %v3816, 5
        %v3856 = vsel %vm1525, %v3854, %v3855
        %v3857 = vrot.slane %v3609, 5
        %v3858 = vrot.slane %v3817, 5
        %v3859 = vsel %vm1525, %v3857, %v3858
        %v3860 = vrot.slane %v3610, 5
        %v3861 = vrot.slane %v3818, 5
        %v3862 = vsel %vm1525, %v3860, %v3861
        %v3863 = vrot.slane %v3611, 5
        %v3864 = vrot.slane %v3819, 5
        %v3865 = vsel %vm1525, %v3863, %v3864
        %v3866 = vrot.slane %v3612, 5
        %v3867 = vrot.slane %v3820, 5
        %v3868 = vsel %vm1525, %v3866, %v3867
        %3869 = vrot.lane.b32.xlu0 %v3821, 32
        %v3870 = vpop.permute.xlu0 %3869
        %3871 = vrot.lane.b32.xlu0 %v3823, 32
        %v3872 = vpop.permute.xlu0 %3871
        %3873 = vrot.lane.b32.xlu0 %v3824, 32
        %v3874 = vpop.permute.xlu0 %3873
        %3875 = vrot.lane.b32.xlu0 %v3826, 32
        %v3876 = vpop.permute.xlu0 %3875
        %3877 = vrot.lane.b32.xlu0 %v3827, 32
        %v3878 = vpop.permute.xlu0 %3877
        %3879 = vrot.lane.b32.xlu0 %v3829, 32
        %v3880 = vpop.permute.xlu0 %3879
        %3881 = vrot.lane.b32.xlu0 %v3830, 32
        %v3882 = vpop.permute.xlu0 %3881
        %3883 = vrot.lane.b32.xlu0 %v3832, 32
        %v3884 = vpop.permute.xlu0 %3883
        %3885 = vrot.lane.b32.xlu0 %v3833, 32
        %v3886 = vpop.permute.xlu0 %3885
        %3887 = vrot.lane.b32.xlu0 %v3835, 32
        %v3888 = vpop.permute.xlu0 %3887
        %3889 = vrot.lane.b32.xlu0 %v3836, 32
        %v3890 = vpop.permute.xlu0 %3889
        %3891 = vrot.lane.b32.xlu0 %v3838, 32
        %v3892 = vpop.permute.xlu0 %3891
        %3893 = vrot.lane.b32.xlu0 %v3839, 32
        %v3894 = vpop.permute.xlu0 %3893
        %3895 = vrot.lane.b32.xlu0 %v3841, 32
        %v3896 = vpop.permute.xlu0 %3895
        %3897 = vrot.lane.b32.xlu0 %v3842, 32
        %v3898 = vpop.permute.xlu0 %3897
        %3899 = vrot.lane.b32.xlu0 %v3844, 32
        %v3900 = vpop.permute.xlu0 %3899
        %3901 = vrot.lane.b32.xlu0 %v3845, 32
        %v3902 = vpop.permute.xlu0 %3901
        %3903 = vrot.lane.b32.xlu0 %v3847, 32
        %v3904 = vpop.permute.xlu0 %3903
        %3905 = vrot.lane.b32.xlu0 %v3848, 32
        %v3906 = vpop.permute.xlu0 %3905
        %3907 = vrot.lane.b32.xlu0 %v3850, 32
        %v3908 = vpop.permute.xlu0 %3907
        %3909 = vrot.lane.b32.xlu0 %v3851, 32
        %v3910 = vpop.permute.xlu0 %3909
        %3911 = vrot.lane.b32.xlu0 %v3853, 32
        %v3912 = vpop.permute.xlu0 %3911
        %3913 = vrot.lane.b32.xlu0 %v3854, 32
        %v3914 = vpop.permute.xlu0 %3913
        %3915 = vrot.lane.b32.xlu0 %v3856, 32
        %v3916 = vpop.permute.xlu0 %3915
        %3917 = vrot.lane.b32.xlu0 %v3857, 32
        %v3918 = vpop.permute.xlu0 %3917
        %3919 = vrot.lane.b32.xlu0 %v3859, 32
        %v3920 = vpop.permute.xlu0 %3919
        %3921 = vrot.lane.b32.xlu0 %v3860, 32
        %v3922 = vpop.permute.xlu0 %3921
        %3923 = vrot.lane.b32.xlu0 %v3862, 32
        %v3924 = vpop.permute.xlu0 %3923
        %3925 = vrot.lane.b32.xlu0 %v3863, 32
        %v3926 = vpop.permute.xlu0 %3925
        %3927 = vrot.lane.b32.xlu0 %v3865, 32
        %v3928 = vpop.permute.xlu0 %3927
        %3929 = vrot.lane.b32.xlu0 %v3866, 32
        %v3930 = vpop.permute.xlu0 %3929
        %3931 = vrot.lane.b32.xlu0 %v3868, 32
        %v3932 = vpop.permute.xlu0 %3931
        %v3935 = vsel %vm580, %v3565, %v3742
        %v3937 = vsel %vm580, %v3566, %v3742
        %v3940 = vsel %vm580, %v3567, %v3744
        %v3942 = vsel %vm580, %v3568, %v3744
        %v3945 = vsel %vm580, %v3569, %v3746
        %v3947 = vsel %vm580, %v3570, %v3746
        %v3950 = vsel %vm580, %v3571, %v3748
        %v3952 = vsel %vm580, %v3572, %v3748
        %v3955 = vsel %vm580, %v3573, %v3750
        %v3957 = vsel %vm580, %v3574, %v3750
        %v3960 = vsel %vm580, %v3575, %v3752
        %v3962 = vsel %vm580, %v3576, %v3752
        %v3965 = vsel %vm580, %v3577, %v3754
        %v3967 = vsel %vm580, %v3578, %v3754
        %v3970 = vsel %vm580, %v3579, %v3756
        %v3972 = vsel %vm580, %v3580, %v3756
        %v3975 = vsel %vm580, %v3581, %v3758
        %v3977 = vsel %vm580, %v3582, %v3758
        %v3980 = vsel %vm580, %v3583, %v3760
        %v3982 = vsel %vm580, %v3584, %v3760
        %v3985 = vsel %vm580, %v3585, %v3762
        %v3987 = vsel %vm580, %v3586, %v3762
        %v3990 = vsel %vm580, %v3587, %v3764
        %v3992 = vsel %vm580, %v3588, %v3764
        %v3995 = vsel %vm580, %v3589, %v3766
        %v3997 = vsel %vm580, %v3590, %v3766
        %v4000 = vsel %vm580, %v3591, %v3768
        %v4002 = vsel %vm580, %v3592, %v3768
        %v4005 = vsel %vm580, %v3593, %v3770
        %v4007 = vsel %vm580, %v3594, %v3770
        %v4010 = vsel %vm580, %v3595, %v3772
        %v4012 = vsel %vm580, %v3596, %v3772
        %v4014 = vsel %vm1718, %v3935, %v3870
        %v4016 = vsel %vm1718, %v3937, %v3872
        %v4018 = vsel %vm1718, %v3940, %v3874
        %v4020 = vsel %vm1718, %v3942, %v3876
        %v4022 = vsel %vm1718, %v3945, %v3878
        %v4024 = vsel %vm1718, %v3947, %v3880
        %v4026 = vsel %vm1718, %v3950, %v3882
        %v4028 = vsel %vm1718, %v3952, %v3884
        %v4030 = vsel %vm1718, %v3955, %v3886
        %v4032 = vsel %vm1718, %v3957, %v3888
        %v4034 = vsel %vm1718, %v3960, %v3890
        %v4036 = vsel %vm1718, %v3962, %v3892
        %v4038 = vsel %vm1718, %v3965, %v3894
        %v4040 = vsel %vm1718, %v3967, %v3896
        %v4042 = vsel %vm1718, %v3970, %v3898
        %v4044 = vsel %vm1718, %v3972, %v3900
        %v4046 = vsel %vm1718, %v3975, %v3902
        %v4048 = vsel %vm1718, %v3977, %v3904
        %v4050 = vsel %vm1718, %v3980, %v3906
        %v4052 = vsel %vm1718, %v3982, %v3908
        %v4054 = vsel %vm1718, %v3985, %v3910
        %v4056 = vsel %vm1718, %v3987, %v3912
        %v4058 = vsel %vm1718, %v3990, %v3914
        %v4060 = vsel %vm1718, %v3992, %v3916
        %v4062 = vsel %vm1718, %v3995, %v3918
        %v4064 = vsel %vm1718, %v3997, %v3920
        %v4066 = vsel %vm1718, %v4000, %v3922
        %v4068 = vsel %vm1718, %v4002, %v3924
        %v4070 = vsel %vm1718, %v4005, %v3926
        %v4072 = vsel %vm1718, %v4007, %v3928
        %v4074 = vsel %vm1718, %v4010, %v3930
        %v4076 = vsel %vm1718, %v4012, %v3932
        %v4077 = vshrl.u32 %v4014, 16
        %v4079 = vrot.slane %v4077, 3
        %v4080 = vshll.u32 %v4014, 16
        %v4082 = vrot.slane %v4080, 4
        %v4083 = vor.u32 %v4079, %v4082
        %v4084 = vshrl.u32 %v4016, 16
        %v4086 = vrot.slane %v4084, 3
        %v4087 = vshll.u32 %v4016, 16
        %v4089 = vrot.slane %v4087, 4
        %v4090 = vor.u32 %v4086, %v4089
        %v4091 = vsel %vm1783, %v4083, %v4090
        %v4092 = vshrl.u32 %v4018, 16
        %v4094 = vrot.slane %v4092, 3
        %v4095 = vshll.u32 %v4018, 16
        %v4097 = vrot.slane %v4095, 4
        %v4098 = vor.u32 %v4094, %v4097
        %v4099 = vshrl.u32 %v4020, 16
        %v4101 = vrot.slane %v4099, 3
        %v4102 = vshll.u32 %v4020, 16
        %v4104 = vrot.slane %v4102, 4
        %v4105 = vor.u32 %v4101, %v4104
        %v4106 = vsel %vm1783, %v4098, %v4105
        %v4107 = vshrl.u32 %v4022, 16
        %v4109 = vrot.slane %v4107, 3
        %v4110 = vshll.u32 %v4022, 16
        %v4112 = vrot.slane %v4110, 4
        %v4113 = vor.u32 %v4109, %v4112
        %v4114 = vshrl.u32 %v4024, 16
        %v4116 = vrot.slane %v4114, 3
        %v4117 = vshll.u32 %v4024, 16
        %v4119 = vrot.slane %v4117, 4
        %v4120 = vor.u32 %v4116, %v4119
        %v4121 = vsel %vm1783, %v4113, %v4120
        %v4122 = vshrl.u32 %v4026, 16
        %v4124 = vrot.slane %v4122, 3
        %v4125 = vshll.u32 %v4026, 16
        %v4127 = vrot.slane %v4125, 4
        %v4128 = vor.u32 %v4124, %v4127
        %v4129 = vshrl.u32 %v4028, 16
        %v4131 = vrot.slane %v4129, 3
        %v4132 = vshll.u32 %v4028, 16
        %v4134 = vrot.slane %v4132, 4
        %v4135 = vor.u32 %v4131, %v4134
        %v4136 = vsel %vm1783, %v4128, %v4135
        %v4137 = vshrl.u32 %v4030, 16
        %v4139 = vrot.slane %v4137, 3
        %v4140 = vshll.u32 %v4030, 16
        %v4142 = vrot.slane %v4140, 4
        %v4143 = vor.u32 %v4139, %v4142
        %v4144 = vshrl.u32 %v4032, 16
        %v4146 = vrot.slane %v4144, 3
        %v4147 = vshll.u32 %v4032, 16
        %v4149 = vrot.slane %v4147, 4
        %v4150 = vor.u32 %v4146, %v4149
        %v4151 = vsel %vm1783, %v4143, %v4150
        %v4152 = vshrl.u32 %v4034, 16
        %v4154 = vrot.slane %v4152, 3
        %v4155 = vshll.u32 %v4034, 16
        %v4157 = vrot.slane %v4155, 4
        %v4158 = vor.u32 %v4154, %v4157
        %v4159 = vshrl.u32 %v4036, 16
        %v4161 = vrot.slane %v4159, 3
        %v4162 = vshll.u32 %v4036, 16
        %v4164 = vrot.slane %v4162, 4
        %v4165 = vor.u32 %v4161, %v4164
        %v4166 = vsel %vm1783, %v4158, %v4165
        %v4167 = vshrl.u32 %v4038, 16
        %v4169 = vrot.slane %v4167, 3
        %v4170 = vshll.u32 %v4038, 16
        %v4172 = vrot.slane %v4170, 4
        %v4173 = vor.u32 %v4169, %v4172
        %v4174 = vshrl.u32 %v4040, 16
        %v4176 = vrot.slane %v4174, 3
        %v4177 = vshll.u32 %v4040, 16
        %v4179 = vrot.slane %v4177, 4
        %v4180 = vor.u32 %v4176, %v4179
        %v4181 = vsel %vm1783, %v4173, %v4180
        %v4182 = vshrl.u32 %v4042, 16
        %v4184 = vrot.slane %v4182, 3
        %v4185 = vshll.u32 %v4042, 16
        %v4187 = vrot.slane %v4185, 4
        %v4188 = vor.u32 %v4184, %v4187
        %v4189 = vshrl.u32 %v4044, 16
        %v4191 = vrot.slane %v4189, 3
        %v4192 = vshll.u32 %v4044, 16
        %v4194 = vrot.slane %v4192, 4
        %v4195 = vor.u32 %v4191, %v4194
        %v4196 = vsel %vm1783, %v4188, %v4195
        %v4197 = vshrl.u32 %v4046, 16
        %v4199 = vrot.slane %v4197, 3
        %v4200 = vshll.u32 %v4046, 16
        %v4202 = vrot.slane %v4200, 4
        %v4203 = vor.u32 %v4199, %v4202
        %v4204 = vshrl.u32 %v4048, 16
        %v4206 = vrot.slane %v4204, 3
        %v4207 = vshll.u32 %v4048, 16
        %v4209 = vrot.slane %v4207, 4
        %v4210 = vor.u32 %v4206, %v4209
        %v4211 = vsel %vm1783, %v4203, %v4210
        %v4212 = vshrl.u32 %v4050, 16
        %v4214 = vrot.slane %v4212, 3
        %v4215 = vshll.u32 %v4050, 16
        %v4217 = vrot.slane %v4215, 4
        %v4218 = vor.u32 %v4214, %v4217
        %v4219 = vshrl.u32 %v4052, 16
        %v4221 = vrot.slane %v4219, 3
        %v4222 = vshll.u32 %v4052, 16
        %v4224 = vrot.slane %v4222, 4
        %v4225 = vor.u32 %v4221, %v4224
        %v4226 = vsel %vm1783, %v4218, %v4225
        %v4227 = vshrl.u32 %v4054, 16
        %v4229 = vrot.slane %v4227, 3
        %v4230 = vshll.u32 %v4054, 16
        %v4232 = vrot.slane %v4230, 4
        %v4233 = vor.u32 %v4229, %v4232
        %v4234 = vshrl.u32 %v4056, 16
        %v4236 = vrot.slane %v4234, 3
        %v4237 = vshll.u32 %v4056, 16
        %v4239 = vrot.slane %v4237, 4
        %v4240 = vor.u32 %v4236, %v4239
        %v4241 = vsel %vm1783, %v4233, %v4240
        %v4242 = vshrl.u32 %v4058, 16
        %v4244 = vrot.slane %v4242, 3
        %v4245 = vshll.u32 %v4058, 16
        %v4247 = vrot.slane %v4245, 4
        %v4248 = vor.u32 %v4244, %v4247
        %v4249 = vshrl.u32 %v4060, 16
        %v4251 = vrot.slane %v4249, 3
        %v4252 = vshll.u32 %v4060, 16
        %v4254 = vrot.slane %v4252, 4
        %v4255 = vor.u32 %v4251, %v4254
        %v4256 = vsel %vm1783, %v4248, %v4255
        %v4257 = vshrl.u32 %v4062, 16
        %v4259 = vrot.slane %v4257, 3
        %v4260 = vshll.u32 %v4062, 16
        %v4262 = vrot.slane %v4260, 4
        %v4263 = vor.u32 %v4259, %v4262
        %v4264 = vshrl.u32 %v4064, 16
        %v4266 = vrot.slane %v4264, 3
        %v4267 = vshll.u32 %v4064, 16
        %v4269 = vrot.slane %v4267, 4
        %v4270 = vor.u32 %v4266, %v4269
        %v4271 = vsel %vm1783, %v4263, %v4270
        %v4272 = vshrl.u32 %v4066, 16
        %v4274 = vrot.slane %v4272, 3
        %v4275 = vshll.u32 %v4066, 16
        %v4277 = vrot.slane %v4275, 4
        %v4278 = vor.u32 %v4274, %v4277
        %v4279 = vshrl.u32 %v4068, 16
        %v4281 = vrot.slane %v4279, 3
        %v4282 = vshll.u32 %v4068, 16
        %v4284 = vrot.slane %v4282, 4
        %v4285 = vor.u32 %v4281, %v4284
        %v4286 = vsel %vm1783, %v4278, %v4285
        %v4287 = vshrl.u32 %v4070, 16
        %v4289 = vrot.slane %v4287, 3
        %v4290 = vshll.u32 %v4070, 16
        %v4292 = vrot.slane %v4290, 4
        %v4293 = vor.u32 %v4289, %v4292
        %v4294 = vshrl.u32 %v4072, 16
        %v4296 = vrot.slane %v4294, 3
        %v4297 = vshll.u32 %v4072, 16
        %v4299 = vrot.slane %v4297, 4
        %v4300 = vor.u32 %v4296, %v4299
        %v4301 = vsel %vm1783, %v4293, %v4300
        %v4302 = vshrl.u32 %v4074, 16
        %v4304 = vrot.slane %v4302, 3
        %v4305 = vshll.u32 %v4074, 16
        %v4307 = vrot.slane %v4305, 4
        %v4308 = vor.u32 %v4304, %v4307
        %v4309 = vshrl.u32 %v4076, 16
        %v4311 = vrot.slane %v4309, 3
        %v4312 = vshll.u32 %v4076, 16
        %v4314 = vrot.slane %v4312, 4
        %v4315 = vor.u32 %v4311, %v4314
        %v4316 = vsel %vm1783, %v4308, %v4315
        %s4317 = scalar_lea.vmem %s4, 48
        %v4318 = vld [vmem:[%s4317] sm:$0xf]
        %v4319 = vld [vmem:[%s4317 + $0x4] sm:$0xf]
        %v4320 = vld [vmem:[%s4317 + $0x8] sm:$0xf]
        %v4321 = vld [vmem:[%s4317 + $0xc] sm:$0xf]
        %v4322 = vld [vmem:[%s4317 + $0x10] sm:$0xf]
        %v4323 = vld [vmem:[%s4317 + $0x14] sm:$0xf]
        %v4330 = vunpack.c.l.b16 %v4318
        %v4331 = vunpack.c.l.b16 %v4319
        %v4332 = vunpack.c.l.b16 %v4320
        %v4333 = vunpack.c.l.b16 %v4321
        %v4334 = vunpack.c.l.b16 %v4322
        %v4335 = vunpack.c.l.b16 %v4323
        %v4336 = vpack.c.b16 %v4331, %v4330
        %v4337 = vpack.c.b16 %v4333, %v4332
        %v4338 = vpack.c.b16 %v4335, %v4334
        %v4343 = vsel %vm2967, %v4091, 0
        %v4346 = vsel %vm2967, %v4106, 0
        %v4349 = vsel %vm2967, %v4121, 0
        %v4352 = vsel %vm2967, %v4136, 0
        %v4355 = vsel %vm2967, %v4151, 0
        %v4358 = vsel %vm2967, %v4166, 0
        %v4361 = vsel %vm2967, %v4181, 0
        %v4364 = vsel %vm2967, %v4196, 0
        %v4367 = vsel %vm2967, %v4211, 0
        %v4370 = vsel %vm2967, %v4226, 0
        %v4373 = vsel %vm2967, %v4241, 0
        %v4376 = vsel %vm2967, %v4256, 0
        %v4379 = vsel %vm2967, %v4271, 0
        %v4382 = vsel %vm2967, %v4286, 0
        %v4385 = vsel %vm2967, %v4301, 0
        %v4388 = vsel %vm2967, %v4316, 0
        %4390 = vmatprep.subr.bf16.mxu0 0
        %4391 = vmatpush1.bf16.msra.mxu0 0
        %4392 = vmatprep.subr.bf16.mxu0 0
        %4393 = vmatpush1.bf16.msra.mxu0 0
        %4394 = vmatprep.subr.bf16.mxu0 0
        %4395 = vmatpush1.bf16.msra.mxu0 0
        %4396 = vmatprep.subr.bf16.mxu0 0
        %4397 = vmatpush1.bf16.msra.mxu0 0
        %4398 = vmatprep.subr.bf16.mxu0 0
        %4399 = vmatpush1.bf16.msra.mxu0 0
        %4400 = vmatprep.subr.bf16.mxu0 0
        %4401 = vmatpush1.bf16.msra.mxu0 %v4338
        %4402 = vmatprep.subr.bf16.mxu0 0
        %4403 = vmatpush1.bf16.msra.mxu0 %v4337
        %4404 = vmatprep.subr.bf16.mxu0 0
        %4405 = vmatpush1.bf16.msra.mxu0 %v4336
        %4406 = vmatprep.subr.bf16.mxu0 0
        %4407 = vmatpush2.bf16.msra.mxu0 0
        %4408 = vmatprep.subr.bf16.mxu0 0
        %4409 = vmatpush2.bf16.msra.mxu0 0
        %4410 = vmatprep.subr.bf16.mxu0 0
        %4411 = vmatpush2.bf16.msra.mxu0 0
        %4412 = vmatprep.subr.bf16.mxu0 0
        %4413 = vmatpush2.bf16.msra.mxu0 0
        %4414 = vmatprep.subr.bf16.mxu0 0
        %4415 = vmatpush2.bf16.msra.mxu0 0
        %4416 = vmatprep.subr.bf16.mxu0 0
        %4417 = vmatpush2.bf16.msra.mxu0 0
        %4418 = vmatprep.subr.bf16.mxu0 0
        %4419 = vmatpush2.bf16.msra.mxu0 0
        %4420 = vmatprep.subr.bf16.mxu0 0
        %4421 = vmatpush2.bf16.msra.mxu0 0
        %4422 = vmatprep.mubr.bf16.mxu0 0
        %4423 = vmatmul.mubr.bf16.gmra.mxu0 %v4343
        %v4424 = vpop.f32.mrf.mxu0
        %v4425 = vadd.f32 0.0, %v4424
        %v4426 = vpop.f32.mrf.mxu0
        %v4427 = vpop.f32.mrf.mxu0
        %v4428 = vadd.f32 0.0, %v4427
        %v4429 = vpop.f32.mrf.mxu0
        %4430 = vmatprep.mubr.bf16.mxu0 0
        %4431 = vmatmul.mubr.bf16.gmra.mxu0 %v4346
        %v4432 = vpop.f32.mrf.mxu0
        %v4433 = vadd.f32 0.0, %v4432
        %v4434 = vpop.f32.mrf.mxu0
        %v4435 = vpop.f32.mrf.mxu0
        %v4436 = vadd.f32 0.0, %v4435
        %v4437 = vpop.f32.mrf.mxu0
        %4438 = vmatprep.mubr.bf16.mxu0 0
        %4439 = vmatmul.mubr.bf16.gmra.mxu0 %v4349
        %v4440 = vpop.f32.mrf.mxu0
        %v4441 = vadd.f32 0.0, %v4440
        %v4442 = vpop.f32.mrf.mxu0
        %v4443 = vpop.f32.mrf.mxu0
        %v4444 = vadd.f32 0.0, %v4443
        %v4445 = vpop.f32.mrf.mxu0
        %4446 = vmatprep.mubr.bf16.mxu0 0
        %4447 = vmatmul.mubr.bf16.gmra.mxu0 %v4352
        %v4448 = vpop.f32.mrf.mxu0
        %v4449 = vadd.f32 0.0, %v4448
        %v4450 = vpop.f32.mrf.mxu0
        %v4451 = vpop.f32.mrf.mxu0
        %v4452 = vadd.f32 0.0, %v4451
        %v4453 = vpop.f32.mrf.mxu0
        %4454 = vmatprep.mubr.bf16.mxu0 0
        %4455 = vmatmul.mubr.bf16.gmra.mxu0 %v4355
        %v4456 = vpop.f32.mrf.mxu0
        %v4457 = vadd.f32 0.0, %v4456
        %v4458 = vpop.f32.mrf.mxu0
        %v4459 = vpop.f32.mrf.mxu0
        %v4460 = vadd.f32 0.0, %v4459
        %v4461 = vpop.f32.mrf.mxu0
        %4462 = vmatprep.mubr.bf16.mxu0 0
        %4463 = vmatmul.mubr.bf16.gmra.mxu0 %v4358
        %v4464 = vpop.f32.mrf.mxu0
        %v4465 = vadd.f32 0.0, %v4464
        %v4466 = vpop.f32.mrf.mxu0
        %v4467 = vpop.f32.mrf.mxu0
        %v4468 = vadd.f32 0.0, %v4467
        %v4469 = vpop.f32.mrf.mxu0
        %4470 = vmatprep.mubr.bf16.mxu0 0
        %4471 = vmatmul.mubr.bf16.gmra.mxu0 %v4361
        %v4472 = vpop.f32.mrf.mxu0
        %v4473 = vadd.f32 0.0, %v4472
        %v4474 = vpop.f32.mrf.mxu0
        %v4475 = vpop.f32.mrf.mxu0
        %v4476 = vadd.f32 0.0, %v4475
        %v4477 = vpop.f32.mrf.mxu0
        %4478 = vmatprep.mubr.bf16.mxu0 0
        %4479 = vmatmul.mubr.bf16.gmra.mxu0 %v4364
        %v4480 = vpop.f32.mrf.mxu0
        %v4481 = vadd.f32 0.0, %v4480
        %v4482 = vpop.f32.mrf.mxu0
        %v4483 = vpop.f32.mrf.mxu0
        %v4484 = vadd.f32 0.0, %v4483
        %v4485 = vpop.f32.mrf.mxu0
        %4486 = vmatprep.mubr.bf16.mxu0 0
        %4487 = vmatmul.mubr.bf16.gmra.mxu0 %v4367
        %v4488 = vpop.f32.mrf.mxu0
        %v4489 = vadd.f32 0.0, %v4488
        %v4490 = vpop.f32.mrf.mxu0
        %v4491 = vpop.f32.mrf.mxu0
        %v4492 = vadd.f32 0.0, %v4491
        %v4493 = vpop.f32.mrf.mxu0
        %4494 = vmatprep.mubr.bf16.mxu0 0
        %4495 = vmatmul.mubr.bf16.gmra.mxu0 %v4370
        %v4496 = vpop.f32.mrf.mxu0
        %v4497 = vadd.f32 0.0, %v4496
        %v4498 = vpop.f32.mrf.mxu0
        %v4499 = vpop.f32.mrf.mxu0
        %v4500 = vadd.f32 0.0, %v4499
        %v4501 = vpop.f32.mrf.mxu0
        %4502 = vmatprep.mubr.bf16.mxu0 0
        %4503 = vmatmul.mubr.bf16.gmra.mxu0 %v4373
        %v4504 = vpop.f32.mrf.mxu0
        %v4505 = vadd.f32 0.0, %v4504
        %v4506 = vpop.f32.mrf.mxu0
        %v4507 = vpop.f32.mrf.mxu0
        %v4508 = vadd.f32 0.0, %v4507
        %v4509 = vpop.f32.mrf.mxu0
        %4510 = vmatprep.mubr.bf16.mxu0 0
        %4511 = vmatmul.mubr.bf16.gmra.mxu0 %v4376
        %v4512 = vpop.f32.mrf.mxu0
        %v4513 = vadd.f32 0.0, %v4512
        %v4514 = vpop.f32.mrf.mxu0
        %v4515 = vpop.f32.mrf.mxu0
        %v4516 = vadd.f32 0.0, %v4515
        %v4517 = vpop.f32.mrf.mxu0
        %4518 = vmatprep.mubr.bf16.mxu0 0
        %4519 = vmatmul.mubr.bf16.gmra.mxu0 %v4379
        %v4520 = vpop.f32.mrf.mxu0
        %v4521 = vadd.f32 0.0, %v4520
        %v4522 = vpop.f32.mrf.mxu0
        %v4523 = vpop.f32.mrf.mxu0
        %v4524 = vadd.f32 0.0, %v4523
        %v4525 = vpop.f32.mrf.mxu0
        %4526 = vmatprep.mubr.bf16.mxu0 0
        %4527 = vmatmul.mubr.bf16.gmra.mxu0 %v4382
        %v4528 = vpop.f32.mrf.mxu0
        %v4529 = vadd.f32 0.0, %v4528
        %v4530 = vpop.f32.mrf.mxu0
        %v4531 = vpop.f32.mrf.mxu0
        %v4532 = vadd.f32 0.0, %v4531
        %v4533 = vpop.f32.mrf.mxu0
        %4534 = vmatprep.mubr.bf16.mxu0 0
        %4535 = vmatmul.mubr.bf16.gmra.mxu0 %v4385
        %v4536 = vpop.f32.mrf.mxu0
        %v4537 = vadd.f32 0.0, %v4536
        %v4538 = vpop.f32.mrf.mxu0
        %v4539 = vpop.f32.mrf.mxu0
        %v4540 = vadd.f32 0.0, %v4539
        %v4541 = vpop.f32.mrf.mxu0
        %4542 = vmatprep.mubr.bf16.mxu0 0
        %4543 = vmatmul.mubr.bf16.gmra.mxu0 %v4388
        %v4544 = vpop.f32.mrf.mxu0
        %v4545 = vadd.f32 0.0, %v4544
        %v4546 = vpop.f32.mrf.mxu0
        %v4547 = vpop.f32.mrf.mxu0
        %v4548 = vadd.f32 0.0, %v4547
        %v4549 = vpop.f32.mrf.mxu0
        %4550 = vdwg.mxu0
        %v4551 = vadd.f32 %v3278, %v4425
        %v4552 = vadd.f32 %v3281, %v4428
        %v4553 = vadd.f32 %v3286, %v4433
        %v4554 = vadd.f32 %v3289, %v4436
        %v4555 = vadd.f32 %v3294, %v4441
        %v4556 = vadd.f32 %v3297, %v4444
        %v4557 = vadd.f32 %v3302, %v4449
        %v4558 = vadd.f32 %v3305, %v4452
        %v4559 = vadd.f32 %v3310, %v4457
        %v4560 = vadd.f32 %v3313, %v4460
        %v4561 = vadd.f32 %v3318, %v4465
        %v4562 = vadd.f32 %v3321, %v4468
        %v4563 = vadd.f32 %v3326, %v4473
        %v4564 = vadd.f32 %v3329, %v4476
        %v4565 = vadd.f32 %v3334, %v4481
        %v4566 = vadd.f32 %v3337, %v4484
        %v4567 = vadd.f32 %v3342, %v4489
        %v4568 = vadd.f32 %v3345, %v4492
        %v4569 = vadd.f32 %v3350, %v4497
        %v4570 = vadd.f32 %v3353, %v4500
        %v4571 = vadd.f32 %v3358, %v4505
        %v4572 = vadd.f32 %v3361, %v4508
        %v4573 = vadd.f32 %v3366, %v4513
        %v4574 = vadd.f32 %v3369, %v4516
        %v4575 = vadd.f32 %v3374, %v4521
        %v4576 = vadd.f32 %v3377, %v4524
        %v4577 = vadd.f32 %v3382, %v4529
        %v4578 = vadd.f32 %v3385, %v4532
        %v4579 = vadd.f32 %v3390, %v4537
        %v4580 = vadd.f32 %v3393, %v4540
        %v4581 = vadd.f32 %v3398, %v4545
        %v4582 = vadd.f32 %v3401, %v4548
        %v4583 = vld [vmem:[%s5] sm:$0x1]
        %v4585 = vlaneseq
        %v4586 = vshrl.u32 %v4585, 7
        %v4587 = vsub.s32 0, %v4586
        %v4588 = vrot.slane %v4583, %v4587
        %v4590 = vmul.f32 %v4551, %v4588
        %v4591 = vmul.f32 %v4552, %v4588
        %v4592 = vmul.f32 %v4553, %v4588
        %v4593 = vmul.f32 %v4554, %v4588
        %v4594 = vmul.f32 %v4555, %v4588
        %v4595 = vmul.f32 %v4556, %v4588
        %v4596 = vmul.f32 %v4557, %v4588
        %v4597 = vmul.f32 %v4558, %v4588
        %v4598 = vmul.f32 %v4559, %v4588
        %v4599 = vmul.f32 %v4560, %v4588
        %v4600 = vmul.f32 %v4561, %v4588
        %v4601 = vmul.f32 %v4562, %v4588
        %v4602 = vmul.f32 %v4563, %v4588
        %v4603 = vmul.f32 %v4564, %v4588
        %v4604 = vmul.f32 %v4565, %v4588
        %v4605 = vmul.f32 %v4566, %v4588
        %v4606 = vmul.f32 %v4567, %v4588
        %v4607 = vmul.f32 %v4568, %v4588
        %v4608 = vmul.f32 %v4569, %v4588
        %v4609 = vmul.f32 %v4570, %v4588
        %v4610 = vmul.f32 %v4571, %v4588
        %v4611 = vmul.f32 %v4572, %v4588
        %v4612 = vmul.f32 %v4573, %v4588
        %v4613 = vmul.f32 %v4574, %v4588
        %v4614 = vmul.f32 %v4575, %v4588
        %v4615 = vmul.f32 %v4576, %v4588
        %v4616 = vmul.f32 %v4577, %v4588
        %v4617 = vmul.f32 %v4578, %v4588
        %v4618 = vmul.f32 %v4579, %v4588
        %v4619 = vmul.f32 %v4580, %v4588
        %v4620 = vmul.f32 %v4581, %v4588
        %v4621 = vmul.f32 %v4582, %v4588
        %v4622 = vld [vmem:[%s6] sm:$0x1]
        %v4624 = vlaneseq
        %v4625 = vshrl.u32 %v4624, 7
        %v4626 = vsub.s32 0, %v4625
        %v4627 = vrot.slane %v4622, %v4626
        %v4629 = vadd.f32 %v4590, %v4627
        %v4630 = vadd.f32 %v4591, %v4627
        %v4631 = vadd.f32 %v4592, %v4627
        %v4632 = vadd.f32 %v4593, %v4627
        %v4633 = vadd.f32 %v4594, %v4627
        %v4634 = vadd.f32 %v4595, %v4627
        %v4635 = vadd.f32 %v4596, %v4627
        %v4636 = vadd.f32 %v4597, %v4627
        %v4637 = vadd.f32 %v4598, %v4627
        %v4638 = vadd.f32 %v4599, %v4627
        %v4639 = vadd.f32 %v4600, %v4627
        %v4640 = vadd.f32 %v4601, %v4627
        %v4641 = vadd.f32 %v4602, %v4627
        %v4642 = vadd.f32 %v4603, %v4627
        %v4643 = vadd.f32 %v4604, %v4627
        %v4644 = vadd.f32 %v4605, %v4627
        %v4645 = vadd.f32 %v4606, %v4627
        %v4646 = vadd.f32 %v4607, %v4627
        %v4647 = vadd.f32 %v4608, %v4627
        %v4648 = vadd.f32 %v4609, %v4627
        %v4649 = vadd.f32 %v4610, %v4627
        %v4650 = vadd.f32 %v4611, %v4627
        %v4651 = vadd.f32 %v4612, %v4627
        %v4652 = vadd.f32 %v4613, %v4627
        %v4653 = vadd.f32 %v4614, %v4627
        %v4654 = vadd.f32 %v4615, %v4627
        %v4655 = vadd.f32 %v4616, %v4627
        %v4656 = vadd.f32 %v4617, %v4627
        %v4657 = vadd.f32 %v4618, %v4627
        %v4658 = vadd.f32 %v4619, %v4627
        %v4659 = vadd.f32 %v4620, %v4627
        %v4660 = vadd.f32 %v4621, %v4627
        %v4661 = vmax.f32 %v4629, 0.0
        %v4662 = vmax.f32 %v4630, 0.0
        %v4663 = vmax.f32 %v4631, 0.0
        %v4664 = vmax.f32 %v4632, 0.0
        %v4665 = vmax.f32 %v4633, 0.0
        %v4666 = vmax.f32 %v4634, 0.0
        %v4667 = vmax.f32 %v4635, 0.0
        %v4668 = vmax.f32 %v4636, 0.0
        %v4669 = vmax.f32 %v4637, 0.0
        %v4670 = vmax.f32 %v4638, 0.0
        %v4671 = vmax.f32 %v4639, 0.0
        %v4672 = vmax.f32 %v4640, 0.0
        %v4673 = vmax.f32 %v4641, 0.0
        %v4674 = vmax.f32 %v4642, 0.0
        %v4675 = vmax.f32 %v4643, 0.0
        %v4676 = vmax.f32 %v4644, 0.0
        %v4677 = vmax.f32 %v4645, 0.0
        %v4678 = vmax.f32 %v4646, 0.0
        %v4679 = vmax.f32 %v4647, 0.0
        %v4680 = vmax.f32 %v4648, 0.0
        %v4681 = vmax.f32 %v4649, 0.0
        %v4682 = vmax.f32 %v4650, 0.0
        %v4683 = vmax.f32 %v4651, 0.0
        %v4684 = vmax.f32 %v4652, 0.0
        %v4685 = vmax.f32 %v4653, 0.0
        %v4686 = vmax.f32 %v4654, 0.0
        %v4687 = vmax.f32 %v4655, 0.0
        %v4688 = vmax.f32 %v4656, 0.0
        %v4689 = vmax.f32 %v4657, 0.0
        %v4690 = vmax.f32 %v4658, 0.0
        %v4691 = vmax.f32 %v4659, 0.0
        %v4692 = vmax.f32 %v4660, 0.0
        %v4693 = vpack.c.bf16 %v4662, %v4661
        %v4694 = vpack.c.bf16 %v4664, %v4663
        %v4695 = vpack.c.bf16 %v4666, %v4665
        %v4696 = vpack.c.bf16 %v4668, %v4667
        %v4697 = vpack.c.bf16 %v4670, %v4669
        %v4698 = vpack.c.bf16 %v4672, %v4671
        %v4699 = vpack.c.bf16 %v4674, %v4673
        %v4700 = vpack.c.bf16 %v4676, %v4675
        %v4701 = vpack.c.bf16 %v4678, %v4677
        %v4702 = vpack.c.bf16 %v4680, %v4679
        %v4703 = vpack.c.bf16 %v4682, %v4681
        %v4704 = vpack.c.bf16 %v4684, %v4683
        %v4705 = vpack.c.bf16 %v4686, %v4685
        %v4706 = vpack.c.bf16 %v4688, %v4687
        %v4707 = vpack.c.bf16 %v4690, %v4689
        %v4708 = vpack.c.bf16 %v4692, %v4691
        %v4709 = vld [vmem:[%s7] sm:$0xf]
        %v4710 = vld [vmem:[%s7 + $0x4] sm:$0xf]
        %v4713 = vunpack.c.l.b16 %v4709
        %v4714 = vunpack.c.l.b16 %v4710
        %v4715 = vpack.c.b16 %v4714, %v4713
        %v4718 = vsel %vm580, %v4693, 0
        %v4721 = vsel %vm580, %v4694, 0
        %v4724 = vsel %vm580, %v4695, 0
        %v4727 = vsel %vm580, %v4696, 0
        %v4730 = vsel %vm580, %v4697, 0
        %v4733 = vsel %vm580, %v4698, 0
        %v4736 = vsel %vm580, %v4699, 0
        %v4739 = vsel %vm580, %v4700, 0
        %v4742 = vsel %vm580, %v4701, 0
        %v4745 = vsel %vm580, %v4702, 0
        %v4748 = vsel %vm580, %v4703, 0
        %v4751 = vsel %vm580, %v4704, 0
        %v4754 = vsel %vm580, %v4705, 0
        %v4757 = vsel %vm580, %v4706, 0
        %v4760 = vsel %vm580, %v4707, 0
        %v4763 = vsel %vm580, %v4708, 0
        %4765 = vmatprep.subr.bf16.mxu0 0
        %4766 = vmatpush1.bf16.msra.mxu0 0
        %4767 = vmatprep.subr.bf16.mxu0 0
        %4768 = vmatpush1.bf16.msra.mxu0 0
        %4769 = vmatprep.subr.bf16.mxu0 0
        %4770 = vmatpush1.bf16.msra.mxu0 0
        %4771 = vmatprep.subr.bf16.mxu0 0
        %4772 = vmatpush1.bf16.msra.mxu0 0
        %4773 = vmatprep.subr.bf16.mxu0 0
        %4774 = vmatpush1.bf16.msra.mxu0 0
        %4775 = vmatprep.subr.bf16.mxu0 0
        %4776 = vmatpush1.bf16.msra.mxu0 0
        %4777 = vmatprep.subr.bf16.mxu0 0
        %4778 = vmatpush1.bf16.msra.mxu0 0
        %4779 = vmatprep.subr.bf16.mxu0 0
        %4780 = vmatpush1.bf16.msra.mxu0 %v4715
        %4781 = vmatprep.subr.bf16.mxu0 0
        %4782 = vmatpush2.bf16.msra.mxu0 0
        %4783 = vmatprep.subr.bf16.mxu0 0
        %4784 = vmatpush2.bf16.msra.mxu0 0
        %4785 = vmatprep.subr.bf16.mxu0 0
        %4786 = vmatpush2.bf16.msra.mxu0 0
        %4787 = vmatprep.subr.bf16.mxu0 0
        %4788 = vmatpush2.bf16.msra.mxu0 0
        %4789 = vmatprep.subr.bf16.mxu0 0
        %4790 = vmatpush2.bf16.msra.mxu0 0
        %4791 = vmatprep.subr.bf16.mxu0 0
        %4792 = vmatpush2.bf16.msra.mxu0 0
        %4793 = vmatprep.subr.bf16.mxu0 0
        %4794 = vmatpush2.bf16.msra.mxu0 0
        %4795 = vmatprep.subr.bf16.mxu0 0
        %4796 = vmatpush2.bf16.msra.mxu0 0
        %4797 = vmatprep.mubr.bf16.mxu0 0
        %4798 = vmatmul.mubr.bf16.gmra.mxu0 %v4718
        %v4799 = vpop.f32.mrf.mxu0
        %v4800 = vadd.f32 0.0, %v4799
        %v4801 = vpop.f32.mrf.mxu0
        %v4802 = vpop.f32.mrf.mxu0
        %v4803 = vadd.f32 0.0, %v4802
        %v4804 = vpop.f32.mrf.mxu0
        %4805 = vmatprep.mubr.bf16.mxu0 0
        %4806 = vmatmul.mubr.bf16.gmra.mxu0 %v4721
        %v4807 = vpop.f32.mrf.mxu0
        %v4808 = vadd.f32 0.0, %v4807
        %v4809 = vpop.f32.mrf.mxu0
        %v4810 = vpop.f32.mrf.mxu0
        %v4811 = vadd.f32 0.0, %v4810
        %v4812 = vpop.f32.mrf.mxu0
        %4813 = vmatprep.mubr.bf16.mxu0 0
        %4814 = vmatmul.mubr.bf16.gmra.mxu0 %v4724
        %v4815 = vpop.f32.mrf.mxu0
        %v4816 = vadd.f32 0.0, %v4815
        %v4817 = vpop.f32.mrf.mxu0
        %v4818 = vpop.f32.mrf.mxu0
        %v4819 = vadd.f32 0.0, %v4818
        %v4820 = vpop.f32.mrf.mxu0
        %4821 = vmatprep.mubr.bf16.mxu0 0
        %4822 = vmatmul.mubr.bf16.gmra.mxu0 %v4727
        %v4823 = vpop.f32.mrf.mxu0
        %v4824 = vadd.f32 0.0, %v4823
        %v4825 = vpop.f32.mrf.mxu0
        %v4826 = vpop.f32.mrf.mxu0
        %v4827 = vadd.f32 0.0, %v4826
        %v4828 = vpop.f32.mrf.mxu0
        %4829 = vmatprep.mubr.bf16.mxu0 0
        %4830 = vmatmul.mubr.bf16.gmra.mxu0 %v4730
        %v4831 = vpop.f32.mrf.mxu0
        %v4832 = vadd.f32 0.0, %v4831
        %v4833 = vpop.f32.mrf.mxu0
        %v4834 = vpop.f32.mrf.mxu0
        %v4835 = vadd.f32 0.0, %v4834
        %v4836 = vpop.f32.mrf.mxu0
        %4837 = vmatprep.mubr.bf16.mxu0 0
        %4838 = vmatmul.mubr.bf16.gmra.mxu0 %v4733
        %v4839 = vpop.f32.mrf.mxu0
        %v4840 = vadd.f32 0.0, %v4839
        %v4841 = vpop.f32.mrf.mxu0
        %v4842 = vpop.f32.mrf.mxu0
        %v4843 = vadd.f32 0.0, %v4842
        %v4844 = vpop.f32.mrf.mxu0
        %4845 = vmatprep.mubr.bf16.mxu0 0
        %4846 = vmatmul.mubr.bf16.gmra.mxu0 %v4736
        %v4847 = vpop.f32.mrf.mxu0
        %v4848 = vadd.f32 0.0, %v4847
        %v4849 = vpop.f32.mrf.mxu0
        %v4850 = vpop.f32.mrf.mxu0
        %v4851 = vadd.f32 0.0, %v4850
        %v4852 = vpop.f32.mrf.mxu0
        %4853 = vmatprep.mubr.bf16.mxu0 0
        %4854 = vmatmul.mubr.bf16.gmra.mxu0 %v4739
        %v4855 = vpop.f32.mrf.mxu0
        %v4856 = vadd.f32 0.0, %v4855
        %v4857 = vpop.f32.mrf.mxu0
        %v4858 = vpop.f32.mrf.mxu0
        %v4859 = vadd.f32 0.0, %v4858
        %v4860 = vpop.f32.mrf.mxu0
        %4861 = vmatprep.mubr.bf16.mxu0 0
        %4862 = vmatmul.mubr.bf16.gmra.mxu0 %v4742
        %v4863 = vpop.f32.mrf.mxu0
        %v4864 = vadd.f32 0.0, %v4863
        %v4865 = vpop.f32.mrf.mxu0
        %v4866 = vpop.f32.mrf.mxu0
        %v4867 = vadd.f32 0.0, %v4866
        %v4868 = vpop.f32.mrf.mxu0
        %4869 = vmatprep.mubr.bf16.mxu0 0
        %4870 = vmatmul.mubr.bf16.gmra.mxu0 %v4745
        %v4871 = vpop.f32.mrf.mxu0
        %v4872 = vadd.f32 0.0, %v4871
        %v4873 = vpop.f32.mrf.mxu0
        %v4874 = vpop.f32.mrf.mxu0
        %v4875 = vadd.f32 0.0, %v4874
        %v4876 = vpop.f32.mrf.mxu0
        %4877 = vmatprep.mubr.bf16.mxu0 0
        %4878 = vmatmul.mubr.bf16.gmra.mxu0 %v4748
        %v4879 = vpop.f32.mrf.mxu0
        %v4880 = vadd.f32 0.0, %v4879
        %v4881 = vpop.f32.mrf.mxu0
        %v4882 = vpop.f32.mrf.mxu0
        %v4883 = vadd.f32 0.0, %v4882
        %v4884 = vpop.f32.mrf.mxu0
        %4885 = vmatprep.mubr.bf16.mxu0 0
        %4886 = vmatmul.mubr.bf16.gmra.mxu0 %v4751
        %v4887 = vpop.f32.mrf.mxu0
        %v4888 = vadd.f32 0.0, %v4887
        %v4889 = vpop.f32.mrf.mxu0
        %v4890 = vpop.f32.mrf.mxu0
        %v4891 = vadd.f32 0.0, %v4890
        %v4892 = vpop.f32.mrf.mxu0
        %4893 = vmatprep.mubr.bf16.mxu0 0
        %4894 = vmatmul.mubr.bf16.gmra.mxu0 %v4754
        %v4895 = vpop.f32.mrf.mxu0
        %v4896 = vadd.f32 0.0, %v4895
        %v4897 = vpop.f32.mrf.mxu0
        %v4898 = vpop.f32.mrf.mxu0
        %v4899 = vadd.f32 0.0, %v4898
        %v4900 = vpop.f32.mrf.mxu0
        %4901 = vmatprep.mubr.bf16.mxu0 0
        %4902 = vmatmul.mubr.bf16.gmra.mxu0 %v4757
        %v4903 = vpop.f32.mrf.mxu0
        %v4904 = vadd.f32 0.0, %v4903
        %v4905 = vpop.f32.mrf.mxu0
        %v4906 = vpop.f32.mrf.mxu0
        %v4907 = vadd.f32 0.0, %v4906
        %v4908 = vpop.f32.mrf.mxu0
        %4909 = vmatprep.mubr.bf16.mxu0 0
        %4910 = vmatmul.mubr.bf16.gmra.mxu0 %v4760
        %v4911 = vpop.f32.mrf.mxu0
        %v4912 = vadd.f32 0.0, %v4911
        %v4913 = vpop.f32.mrf.mxu0
        %v4914 = vpop.f32.mrf.mxu0
        %v4915 = vadd.f32 0.0, %v4914
        %v4916 = vpop.f32.mrf.mxu0
        %4917 = vmatprep.mubr.bf16.mxu0 0
        %4918 = vmatmul.mubr.bf16.gmra.mxu0 %v4763
        %v4919 = vpop.f32.mrf.mxu0
        %v4920 = vadd.f32 0.0, %v4919
        %v4921 = vpop.f32.mrf.mxu0
        %v4922 = vpop.f32.mrf.mxu0
        %v4923 = vadd.f32 0.0, %v4922
        %v4924 = vpop.f32.mrf.mxu0
        %4925 = vdwg.mxu0
        %v4926 = vld [vmem:[%s8] sm:$0x1]
        %v4928 = vlaneseq
        %v4929 = vshrl.u32 %v4928, 7
        %v4930 = vsub.s32 0, %v4929
        %v4931 = vrot.slane %v4926, %v4930
        %v4933 = vmul.f32 %v4800, %v4931
        %v4934 = vmul.f32 %v4803, %v4931
        %v4935 = vmul.f32 %v4808, %v4931
        %v4936 = vmul.f32 %v4811, %v4931
        %v4937 = vmul.f32 %v4816, %v4931
        %v4938 = vmul.f32 %v4819, %v4931
        %v4939 = vmul.f32 %v4824, %v4931
        %v4940 = vmul.f32 %v4827, %v4931
        %v4941 = vmul.f32 %v4832, %v4931
        %v4942 = vmul.f32 %v4835, %v4931
        %v4943 = vmul.f32 %v4840, %v4931
        %v4944 = vmul.f32 %v4843, %v4931
        %v4945 = vmul.f32 %v4848, %v4931
        %v4946 = vmul.f32 %v4851, %v4931
        %v4947 = vmul.f32 %v4856, %v4931
        %v4948 = vmul.f32 %v4859, %v4931
        %v4949 = vmul.f32 %v4864, %v4931
        %v4950 = vmul.f32 %v4867, %v4931
        %v4951 = vmul.f32 %v4872, %v4931
        %v4952 = vmul.f32 %v4875, %v4931
        %v4953 = vmul.f32 %v4880, %v4931
        %v4954 = vmul.f32 %v4883, %v4931
        %v4955 = vmul.f32 %v4888, %v4931
        %v4956 = vmul.f32 %v4891, %v4931
        %v4957 = vmul.f32 %v4896, %v4931
        %v4958 = vmul.f32 %v4899, %v4931
        %v4959 = vmul.f32 %v4904, %v4931
        %v4960 = vmul.f32 %v4907, %v4931
        %v4961 = vmul.f32 %v4912, %v4931
        %v4962 = vmul.f32 %v4915, %v4931
        %v4963 = vmul.f32 %v4920, %v4931
        %v4964 = vmul.f32 %v4923, %v4931
        %v4965 = vld [vmem:[%s9] sm:$0x1]
        %v4967 = vlaneseq
        %v4968 = vshrl.u32 %v4967, 7
        %v4969 = vsub.s32 0, %v4968
        %v4970 = vrot.slane %v4965, %v4969
        %v4972 = vadd.f32 %v4933, %v4970
        %v4973 = vadd.f32 %v4934, %v4970
        %v4974 = vadd.f32 %v4935, %v4970
        %v4975 = vadd.f32 %v4936, %v4970
        %v4976 = vadd.f32 %v4937, %v4970
        %v4977 = vadd.f32 %v4938, %v4970
        %v4978 = vadd.f32 %v4939, %v4970
        %v4979 = vadd.f32 %v4940, %v4970
        %v4980 = vadd.f32 %v4941, %v4970
        %v4981 = vadd.f32 %v4942, %v4970
        %v4982 = vadd.f32 %v4943, %v4970
        %v4983 = vadd.f32 %v4944, %v4970
        %v4984 = vadd.f32 %v4945, %v4970
        %v4985 = vadd.f32 %v4946, %v4970
        %v4986 = vadd.f32 %v4947, %v4970
        %v4987 = vadd.f32 %v4948, %v4970
        %v4988 = vadd.f32 %v4949, %v4970
        %v4989 = vadd.f32 %v4950, %v4970
        %v4990 = vadd.f32 %v4951, %v4970
        %v4991 = vadd.f32 %v4952, %v4970
        %v4992 = vadd.f32 %v4953, %v4970
        %v4993 = vadd.f32 %v4954, %v4970
        %v4994 = vadd.f32 %v4955, %v4970
        %v4995 = vadd.f32 %v4956, %v4970
        %v4996 = vadd.f32 %v4957, %v4970
        %v4997 = vadd.f32 %v4958, %v4970
        %v4998 = vadd.f32 %v4959, %v4970
        %v4999 = vadd.f32 %v4960, %v4970
        %v5000 = vadd.f32 %v4961, %v4970
        %v5001 = vadd.f32 %v4962, %v4970
        %v5002 = vadd.f32 %v4963, %v4970
        %v5003 = vadd.f32 %v4964, %v4970
        %v5004 = vld [vmem:[%s416] sm:$0xf]
        %v5005 = vld [vmem:[%s416 + $0x4] sm:$0xf]
        %v5006 = vld [vmem:[%s416 + $0x8] sm:$0xf]
        %v5007 = vld [vmem:[%s416 + $0xc] sm:$0xf]
        %v5008 = vld [vmem:[%s416 + $0x10] sm:$0xf]
        %v5009 = vld [vmem:[%s416 + $0x14] sm:$0xf]
        %v5010 = vld [vmem:[%s416 + $0x18] sm:$0xf]
        %v5011 = vld [vmem:[%s416 + $0x1c] sm:$0xf]
        %v5012 = vld [vmem:[%s416 + $0x20] sm:$0xf]
        %v5013 = vld [vmem:[%s416 + $0x24] sm:$0xf]
        %v5014 = vld [vmem:[%s416 + $0x28] sm:$0xf]
        %v5015 = vld [vmem:[%s416 + $0x2c] sm:$0xf]
        %v5016 = vld [vmem:[%s416 + $0x30] sm:$0xf]
        %v5017 = vld [vmem:[%s416 + $0x34] sm:$0xf]
        %v5018 = vld [vmem:[%s416 + $0x38] sm:$0xf]
        %v5019 = vld [vmem:[%s416 + $0x3c] sm:$0xf]
        %v5020 = vld [vmem:[%s416 + $0x40] sm:$0xf]
        %v5021 = vld [vmem:[%s416 + $0x44] sm:$0xf]
        %v5022 = vld [vmem:[%s416 + $0x48] sm:$0xf]
        %v5023 = vld [vmem:[%s416 + $0x4c] sm:$0xf]
        %v5024 = vld [vmem:[%s416 + $0x50] sm:$0xf]
        %v5025 = vld [vmem:[%s416 + $0x54] sm:$0xf]
        %v5026 = vld [vmem:[%s416 + $0x58] sm:$0xf]
        %v5027 = vld [vmem:[%s416 + $0x5c] sm:$0xf]
        %v5028 = vld [vmem:[%s416 + $0x60] sm:$0xf]
        %v5029 = vld [vmem:[%s416 + $0x64] sm:$0xf]
        %v5030 = vld [vmem:[%s416 + $0x68] sm:$0xf]
        %v5031 = vld [vmem:[%s416 + $0x6c] sm:$0xf]
        %v5032 = vld [vmem:[%s416 + $0x70] sm:$0xf]
        %v5033 = vld [vmem:[%s416 + $0x74] sm:$0xf]
        %v5034 = vld [vmem:[%s416 + $0x78] sm:$0xf]
        %v5035 = vld [vmem:[%s416 + $0x7c] sm:$0xf]
        %v5036 = vld [vmem:[%s10] sm:$0xf]
        %v5037 = vld [vmem:[%s10 + $0x4] sm:$0xf]
        %v5070 = vunpack.c.l.b16 %v5004
        %v5071 = vunpack.c.l.b16 %v5005
        %v5072 = vunpack.c.l.b16 %v5006
        %v5073 = vunpack.c.l.b16 %v5007
        %v5074 = vunpack.c.l.b16 %v5008
        %v5075 = vunpack.c.l.b16 %v5009
        %v5076 = vunpack.c.l.b16 %v5010
        %v5077 = vunpack.c.l.b16 %v5011
        %v5078 = vunpack.c.l.b16 %v5012
        %v5079 = vunpack.c.l.b16 %v5013
        %v5080 = vunpack.c.l.b16 %v5014
        %v5081 = vunpack.c.l.b16 %v5015
        %v5082 = vunpack.c.l.b16 %v5016
        %v5083 = vunpack.c.l.b16 %v5017
        %v5084 = vunpack.c.l.b16 %v5018
        %v5085 = vunpack.c.l.b16 %v5019
        %v5086 = vunpack.c.l.b16 %v5020
        %v5087 = vunpack.c.l.b16 %v5021
        %v5088 = vunpack.c.l.b16 %v5022
        %v5089 = vunpack.c.l.b16 %v5023
        %v5090 = vunpack.c.l.b16 %v5024
        %v5091 = vunpack.c.l.b16 %v5025
        %v5092 = vunpack.c.l.b16 %v5026
        %v5093 = vunpack.c.l.b16 %v5027
        %v5094 = vunpack.c.l.b16 %v5028
        %v5095 = vunpack.c.l.b16 %v5029
        %v5096 = vunpack.c.l.b16 %v5030
        %v5097 = vunpack.c.l.b16 %v5031
        %v5098 = vunpack.c.l.b16 %v5032
        %v5099 = vunpack.c.l.b16 %v5033
        %v5100 = vunpack.c.l.b16 %v5034
        %v5101 = vunpack.c.l.b16 %v5035
        %v5102 = vpack.c.b16 %v5071, %v5070
        %v5103 = vpack.c.b16 %v5073, %v5072
        %v5104 = vpack.c.b16 %v5075, %v5074
        %v5105 = vpack.c.b16 %v5077, %v5076
        %v5106 = vpack.c.b16 %v5079, %v5078
        %v5107 = vpack.c.b16 %v5081, %v5080
        %v5108 = vpack.c.b16 %v5083, %v5082
        %v5109 = vpack.c.b16 %v5085, %v5084
        %v5110 = vpack.c.b16 %v5087, %v5086
        %v5111 = vpack.c.b16 %v5089, %v5088
        %v5112 = vpack.c.b16 %v5091, %v5090
        %v5113 = vpack.c.b16 %v5093, %v5092
        %v5114 = vpack.c.b16 %v5095, %v5094
        %v5115 = vpack.c.b16 %v5097, %v5096
        %v5116 = vpack.c.b16 %v5099, %v5098
        %v5117 = vpack.c.b16 %v5101, %v5100
        %v5120 = vunpack.c.l.b16 %v5036
        %v5121 = vunpack.c.l.b16 %v5037
        %v5122 = vpack.c.b16 %v5121, %v5120
        %v5125 = vsel %vm580, %v5102, 0
        %v5128 = vsel %vm580, %v5103, 0
        %v5131 = vsel %vm580, %v5104, 0
        %v5134 = vsel %vm580, %v5105, 0
        %v5137 = vsel %vm580, %v5106, 0
        %v5140 = vsel %vm580, %v5107, 0
        %v5143 = vsel %vm580, %v5108, 0
        %v5146 = vsel %vm580, %v5109, 0
        %v5149 = vsel %vm580, %v5110, 0
        %v5152 = vsel %vm580, %v5111, 0
        %v5155 = vsel %vm580, %v5112, 0
        %v5158 = vsel %vm580, %v5113, 0
        %v5161 = vsel %vm580, %v5114, 0
        %v5164 = vsel %vm580, %v5115, 0
        %v5167 = vsel %vm580, %v5116, 0
        %v5170 = vsel %vm580, %v5117, 0
        %5172 = vmatprep.subr.bf16.mxu0 0
        %5173 = vmatpush1.bf16.msra.mxu0 0
        %5174 = vmatprep.subr.bf16.mxu0 0
        %5175 = vmatpush1.bf16.msra.mxu0 0
        %5176 = vmatprep.subr.bf16.mxu0 0
        %5177 = vmatpush1.bf16.msra.mxu0 0
        %5178 = vmatprep.subr.bf16.mxu0 0
        %5179 = vmatpush1.bf16.msra.mxu0 0
        %5180 = vmatprep.subr.bf16.mxu0 0
        %5181 = vmatpush1.bf16.msra.mxu0 0
        %5182 = vmatprep.subr.bf16.mxu0 0
        %5183 = vmatpush1.bf16.msra.mxu0 0
        %5184 = vmatprep.subr.bf16.mxu0 0
        %5185 = vmatpush1.bf16.msra.mxu0 0
        %5186 = vmatprep.subr.bf16.mxu0 0
        %5187 = vmatpush1.bf16.msra.mxu0 %v5122
        %5188 = vmatprep.subr.bf16.mxu0 0
        %5189 = vmatpush2.bf16.msra.mxu0 0
        %5190 = vmatprep.subr.bf16.mxu0 0
        %5191 = vmatpush2.bf16.msra.mxu0 0
        %5192 = vmatprep.subr.bf16.mxu0 0
        %5193 = vmatpush2.bf16.msra.mxu0 0
        %5194 = vmatprep.subr.bf16.mxu0 0
        %5195 = vmatpush2.bf16.msra.mxu0 0
        %5196 = vmatprep.subr.bf16.mxu0 0
        %5197 = vmatpush2.bf16.msra.mxu0 0
        %5198 = vmatprep.subr.bf16.mxu0 0
        %5199 = vmatpush2.bf16.msra.mxu0 0
        %5200 = vmatprep.subr.bf16.mxu0 0
        %5201 = vmatpush2.bf16.msra.mxu0 0
        %5202 = vmatprep.subr.bf16.mxu0 0
        %5203 = vmatpush2.bf16.msra.mxu0 0
        %5204 = vmatprep.mubr.bf16.mxu0 0
        %5205 = vmatmul.mubr.bf16.gmra.mxu0 %v5125
        %v5206 = vpop.f32.mrf.mxu0
        %v5207 = vadd.f32 0.0, %v5206
        %v5208 = vpop.f32.mrf.mxu0
        %v5209 = vpop.f32.mrf.mxu0
        %v5210 = vadd.f32 0.0, %v5209
        %v5211 = vpop.f32.mrf.mxu0
        %5212 = vmatprep.mubr.bf16.mxu0 0
        %5213 = vmatmul.mubr.bf16.gmra.mxu0 %v5128
        %v5214 = vpop.f32.mrf.mxu0
        %v5215 = vadd.f32 0.0, %v5214
        %v5216 = vpop.f32.mrf.mxu0
        %v5217 = vpop.f32.mrf.mxu0
        %v5218 = vadd.f32 0.0, %v5217
        %v5219 = vpop.f32.mrf.mxu0
        %5220 = vmatprep.mubr.bf16.mxu0 0
        %5221 = vmatmul.mubr.bf16.gmra.mxu0 %v5131
        %v5222 = vpop.f32.mrf.mxu0
        %v5223 = vadd.f32 0.0, %v5222
        %v5224 = vpop.f32.mrf.mxu0
        %v5225 = vpop.f32.mrf.mxu0
        %v5226 = vadd.f32 0.0, %v5225
        %v5227 = vpop.f32.mrf.mxu0
        %5228 = vmatprep.mubr.bf16.mxu0 0
        %5229 = vmatmul.mubr.bf16.gmra.mxu0 %v5134
        %v5230 = vpop.f32.mrf.mxu0
        %v5231 = vadd.f32 0.0, %v5230
        %v5232 = vpop.f32.mrf.mxu0
        %v5233 = vpop.f32.mrf.mxu0
        %v5234 = vadd.f32 0.0, %v5233
        %v5235 = vpop.f32.mrf.mxu0
        %5236 = vmatprep.mubr.bf16.mxu0 0
        %5237 = vmatmul.mubr.bf16.gmra.mxu0 %v5137
        %v5238 = vpop.f32.mrf.mxu0
        %v5239 = vadd.f32 0.0, %v5238
        %v5240 = vpop.f32.mrf.mxu0
        %v5241 = vpop.f32.mrf.mxu0
        %v5242 = vadd.f32 0.0, %v5241
        %v5243 = vpop.f32.mrf.mxu0
        %5244 = vmatprep.mubr.bf16.mxu0 0
        %5245 = vmatmul.mubr.bf16.gmra.mxu0 %v5140
        %v5246 = vpop.f32.mrf.mxu0
        %v5247 = vadd.f32 0.0, %v5246
        %v5248 = vpop.f32.mrf.mxu0
        %v5249 = vpop.f32.mrf.mxu0
        %v5250 = vadd.f32 0.0, %v5249
        %v5251 = vpop.f32.mrf.mxu0
        %5252 = vmatprep.mubr.bf16.mxu0 0
        %5253 = vmatmul.mubr.bf16.gmra.mxu0 %v5143
        %v5254 = vpop.f32.mrf.mxu0
        %v5255 = vadd.f32 0.0, %v5254
        %v5256 = vpop.f32.mrf.mxu0
        %v5257 = vpop.f32.mrf.mxu0
        %v5258 = vadd.f32 0.0, %v5257
        %v5259 = vpop.f32.mrf.mxu0
        %5260 = vmatprep.mubr.bf16.mxu0 0
        %5261 = vmatmul.mubr.bf16.gmra.mxu0 %v5146
        %v5262 = vpop.f32.mrf.mxu0
        %v5263 = vadd.f32 0.0, %v5262
        %v5264 = vpop.f32.mrf.mxu0
        %v5265 = vpop.f32.mrf.mxu0
        %v5266 = vadd.f32 0.0, %v5265
        %v5267 = vpop.f32.mrf.mxu0
        %5268 = vmatprep.mubr.bf16.mxu0 0
        %5269 = vmatmul.mubr.bf16.gmra.mxu0 %v5149
        %v5270 = vpop.f32.mrf.mxu0
        %v5271 = vadd.f32 0.0, %v5270
        %v5272 = vpop.f32.mrf.mxu0
        %v5273 = vpop.f32.mrf.mxu0
        %v5274 = vadd.f32 0.0, %v5273
        %v5275 = vpop.f32.mrf.mxu0
        %5276 = vmatprep.mubr.bf16.mxu0 0
        %5277 = vmatmul.mubr.bf16.gmra.mxu0 %v5152
        %v5278 = vpop.f32.mrf.mxu0
        %v5279 = vadd.f32 0.0, %v5278
        %v5280 = vpop.f32.mrf.mxu0
        %v5281 = vpop.f32.mrf.mxu0
        %v5282 = vadd.f32 0.0, %v5281
        %v5283 = vpop.f32.mrf.mxu0
        %5284 = vmatprep.mubr.bf16.mxu0 0
        %5285 = vmatmul.mubr.bf16.gmra.mxu0 %v5155
        %v5286 = vpop.f32.mrf.mxu0
        %v5287 = vadd.f32 0.0, %v5286
        %v5288 = vpop.f32.mrf.mxu0
        %v5289 = vpop.f32.mrf.mxu0
        %v5290 = vadd.f32 0.0, %v5289
        %v5291 = vpop.f32.mrf.mxu0
        %5292 = vmatprep.mubr.bf16.mxu0 0
        %5293 = vmatmul.mubr.bf16.gmra.mxu0 %v5158
        %v5294 = vpop.f32.mrf.mxu0
        %v5295 = vadd.f32 0.0, %v5294
        %v5296 = vpop.f32.mrf.mxu0
        %v5297 = vpop.f32.mrf.mxu0
        %v5298 = vadd.f32 0.0, %v5297
        %v5299 = vpop.f32.mrf.mxu0
        %5300 = vmatprep.mubr.bf16.mxu0 0
        %5301 = vmatmul.mubr.bf16.gmra.mxu0 %v5161
        %v5302 = vpop.f32.mrf.mxu0
        %v5303 = vadd.f32 0.0, %v5302
        %v5304 = vpop.f32.mrf.mxu0
        %v5305 = vpop.f32.mrf.mxu0
        %v5306 = vadd.f32 0.0, %v5305
        %v5307 = vpop.f32.mrf.mxu0
        %5308 = vmatprep.mubr.bf16.mxu0 0
        %5309 = vmatmul.mubr.bf16.gmra.mxu0 %v5164
        %v5310 = vpop.f32.mrf.mxu0
        %v5311 = vadd.f32 0.0, %v5310
        %v5312 = vpop.f32.mrf.mxu0
        %v5313 = vpop.f32.mrf.mxu0
        %v5314 = vadd.f32 0.0, %v5313
        %v5315 = vpop.f32.mrf.mxu0
        %5316 = vmatprep.mubr.bf16.mxu0 0
        %5317 = vmatmul.mubr.bf16.gmra.mxu0 %v5167
        %v5318 = vpop.f32.mrf.mxu0
        %v5319 = vadd.f32 0.0, %v5318
        %v5320 = vpop.f32.mrf.mxu0
        %v5321 = vpop.f32.mrf.mxu0
        %v5322 = vadd.f32 0.0, %v5321
        %v5323 = vpop.f32.mrf.mxu0
        %5324 = vmatprep.mubr.bf16.mxu0 0
        %5325 = vmatmul.mubr.bf16.gmra.mxu0 %v5170
        %v5326 = vpop.f32.mrf.mxu0
        %v5327 = vadd.f32 0.0, %v5326
        %v5328 = vpop.f32.mrf.mxu0
        %v5329 = vpop.f32.mrf.mxu0
        %v5330 = vadd.f32 0.0, %v5329
        %v5331 = vpop.f32.mrf.mxu0
        %5332 = vdwg.mxu0
        %v5333 = vld [vmem:[%s11] sm:$0x1]
        %v5335 = vlaneseq
        %v5336 = vshrl.u32 %v5335, 7
        %v5337 = vsub.s32 0, %v5336
        %v5338 = vrot.slane %v5333, %v5337
        %v5340 = vmul.f32 %v5207, %v5338
        %v5341 = vmul.f32 %v5210, %v5338
        %v5342 = vmul.f32 %v5215, %v5338
        %v5343 = vmul.f32 %v5218, %v5338
        %v5344 = vmul.f32 %v5223, %v5338
        %v5345 = vmul.f32 %v5226, %v5338
        %v5346 = vmul.f32 %v5231, %v5338
        %v5347 = vmul.f32 %v5234, %v5338
        %v5348 = vmul.f32 %v5239, %v5338
        %v5349 = vmul.f32 %v5242, %v5338
        %v5350 = vmul.f32 %v5247, %v5338
        %v5351 = vmul.f32 %v5250, %v5338
        %v5352 = vmul.f32 %v5255, %v5338
        %v5353 = vmul.f32 %v5258, %v5338
        %v5354 = vmul.f32 %v5263, %v5338
        %v5355 = vmul.f32 %v5266, %v5338
        %v5356 = vmul.f32 %v5271, %v5338
        %v5357 = vmul.f32 %v5274, %v5338
        %v5358 = vmul.f32 %v5279, %v5338
        %v5359 = vmul.f32 %v5282, %v5338
        %v5360 = vmul.f32 %v5287, %v5338
        %v5361 = vmul.f32 %v5290, %v5338
        %v5362 = vmul.f32 %v5295, %v5338
        %v5363 = vmul.f32 %v5298, %v5338
        %v5364 = vmul.f32 %v5303, %v5338
        %v5365 = vmul.f32 %v5306, %v5338
        %v5366 = vmul.f32 %v5311, %v5338
        %v5367 = vmul.f32 %v5314, %v5338
        %v5368 = vmul.f32 %v5319, %v5338
        %v5369 = vmul.f32 %v5322, %v5338
        %v5370 = vmul.f32 %v5327, %v5338
        %v5371 = vmul.f32 %v5330, %v5338
        %v5372 = vld [vmem:[%s12] sm:$0x1]
        %v5374 = vlaneseq
        %v5375 = vshrl.u32 %v5374, 7
        %v5376 = vsub.s32 0, %v5375
        %v5377 = vrot.slane %v5372, %v5376
        %v5379 = vadd.f32 %v5340, %v5377
        %v5380 = vadd.f32 %v5341, %v5377
        %v5381 = vadd.f32 %v5342, %v5377
        %v5382 = vadd.f32 %v5343, %v5377
        %v5383 = vadd.f32 %v5344, %v5377
        %v5384 = vadd.f32 %v5345, %v5377
        %v5385 = vadd.f32 %v5346, %v5377
        %v5386 = vadd.f32 %v5347, %v5377
        %v5387 = vadd.f32 %v5348, %v5377
        %v5388 = vadd.f32 %v5349, %v5377
        %v5389 = vadd.f32 %v5350, %v5377
        %v5390 = vadd.f32 %v5351, %v5377
        %v5391 = vadd.f32 %v5352, %v5377
        %v5392 = vadd.f32 %v5353, %v5377
        %v5393 = vadd.f32 %v5354, %v5377
        %v5394 = vadd.f32 %v5355, %v5377
        %v5395 = vadd.f32 %v5356, %v5377
        %v5396 = vadd.f32 %v5357, %v5377
        %v5397 = vadd.f32 %v5358, %v5377
        %v5398 = vadd.f32 %v5359, %v5377
        %v5399 = vadd.f32 %v5360, %v5377
        %v5400 = vadd.f32 %v5361, %v5377
        %v5401 = vadd.f32 %v5362, %v5377
        %v5402 = vadd.f32 %v5363, %v5377
        %v5403 = vadd.f32 %v5364, %v5377
        %v5404 = vadd.f32 %v5365, %v5377
        %v5405 = vadd.f32 %v5366, %v5377
        %v5406 = vadd.f32 %v5367, %v5377
        %v5407 = vadd.f32 %v5368, %v5377
        %v5408 = vadd.f32 %v5369, %v5377
        %v5409 = vadd.f32 %v5370, %v5377
        %v5410 = vadd.f32 %v5371, %v5377
        %v5411 = vadd.f32 %v4972, %v5379
        %v5412 = vadd.f32 %v4973, %v5380
        %v5413 = vadd.f32 %v4974, %v5381
        %v5414 = vadd.f32 %v4975, %v5382
        %v5415 = vadd.f32 %v4976, %v5383
        %v5416 = vadd.f32 %v4977, %v5384
        %v5417 = vadd.f32 %v4978, %v5385
        %v5418 = vadd.f32 %v4979, %v5386
        %v5419 = vadd.f32 %v4980, %v5387
        %v5420 = vadd.f32 %v4981, %v5388
        %v5421 = vadd.f32 %v4982, %v5389
        %v5422 = vadd.f32 %v4983, %v5390
        %v5423 = vadd.f32 %v4984, %v5391
        %v5424 = vadd.f32 %v4985, %v5392
        %v5425 = vadd.f32 %v4986, %v5393
        %v5426 = vadd.f32 %v4987, %v5394
        %v5427 = vadd.f32 %v4988, %v5395
        %v5428 = vadd.f32 %v4989, %v5396
        %v5429 = vadd.f32 %v4990, %v5397
        %v5430 = vadd.f32 %v4991, %v5398
        %v5431 = vadd.f32 %v4992, %v5399
        %v5432 = vadd.f32 %v4993, %v5400
        %v5433 = vadd.f32 %v4994, %v5401
        %v5434 = vadd.f32 %v4995, %v5402
        %v5435 = vadd.f32 %v4996, %v5403
        %v5436 = vadd.f32 %v4997, %v5404
        %v5437 = vadd.f32 %v4998, %v5405
        %v5438 = vadd.f32 %v4999, %v5406
        %v5439 = vadd.f32 %v5000, %v5407
        %v5440 = vadd.f32 %v5001, %v5408
        %v5441 = vadd.f32 %v5002, %v5409
        %v5442 = vadd.f32 %v5003, %v5410
        %v5443 = vmax.f32 %v5411, 0.0
        %v5444 = vmax.f32 %v5412, 0.0
        %v5445 = vmax.f32 %v5413, 0.0
        %v5446 = vmax.f32 %v5414, 0.0
        %v5447 = vmax.f32 %v5415, 0.0
        %v5448 = vmax.f32 %v5416, 0.0
        %v5449 = vmax.f32 %v5417, 0.0
        %v5450 = vmax.f32 %v5418, 0.0
        %v5451 = vmax.f32 %v5419, 0.0
        %v5452 = vmax.f32 %v5420, 0.0
        %v5453 = vmax.f32 %v5421, 0.0
        %v5454 = vmax.f32 %v5422, 0.0
        %v5455 = vmax.f32 %v5423, 0.0
        %v5456 = vmax.f32 %v5424, 0.0
        %v5457 = vmax.f32 %v5425, 0.0
        %v5458 = vmax.f32 %v5426, 0.0
        %v5459 = vmax.f32 %v5427, 0.0
        %v5460 = vmax.f32 %v5428, 0.0
        %v5461 = vmax.f32 %v5429, 0.0
        %v5462 = vmax.f32 %v5430, 0.0
        %v5463 = vmax.f32 %v5431, 0.0
        %v5464 = vmax.f32 %v5432, 0.0
        %v5465 = vmax.f32 %v5433, 0.0
        %v5466 = vmax.f32 %v5434, 0.0
        %v5467 = vmax.f32 %v5435, 0.0
        %v5468 = vmax.f32 %v5436, 0.0
        %v5469 = vmax.f32 %v5437, 0.0
        %v5470 = vmax.f32 %v5438, 0.0
        %v5471 = vmax.f32 %v5439, 0.0
        %v5472 = vmax.f32 %v5440, 0.0
        %v5473 = vmax.f32 %v5441, 0.0
        %v5474 = vmax.f32 %v5442, 0.0
        %v5475 = vpack.c.bf16 %v5444, %v5443
        %v5476 = vpack.c.bf16 %v5446, %v5445
        %v5477 = vpack.c.bf16 %v5448, %v5447
        %v5478 = vpack.c.bf16 %v5450, %v5449
        %v5479 = vpack.c.bf16 %v5452, %v5451
        %v5480 = vpack.c.bf16 %v5454, %v5453
        %v5481 = vpack.c.bf16 %v5456, %v5455
        %v5482 = vpack.c.bf16 %v5458, %v5457
        %v5483 = vpack.c.bf16 %v5460, %v5459
        %v5484 = vpack.c.bf16 %v5462, %v5461
        %v5485 = vpack.c.bf16 %v5464, %v5463
        %v5486 = vpack.c.bf16 %v5466, %v5465
        %v5487 = vpack.c.bf16 %v5468, %v5467
        %v5488 = vpack.c.bf16 %v5470, %v5469
        %v5489 = vpack.c.bf16 %v5472, %v5471
        %v5490 = vpack.c.bf16 %v5474, %v5473
        %v5507 = vunpack.c.l.b16 %v5475
        %v5508 = vunpack.c.h.b16 %v5475
        %v5509 = vunpack.c.l.b16 %v5476
        %v5510 = vunpack.c.h.b16 %v5476
        %v5511 = vunpack.c.l.b16 %v5477
        %v5512 = vunpack.c.h.b16 %v5477
        %v5513 = vunpack.c.l.b16 %v5478
        %v5514 = vunpack.c.h.b16 %v5478
        %v5515 = vunpack.c.l.b16 %v5479
        %v5516 = vunpack.c.h.b16 %v5479
        %v5517 = vunpack.c.l.b16 %v5480
        %v5518 = vunpack.c.h.b16 %v5480
        %v5519 = vunpack.c.l.b16 %v5481
        %v5520 = vunpack.c.h.b16 %v5481
        %v5521 = vunpack.c.l.b16 %v5482
        %v5522 = vunpack.c.h.b16 %v5482
        %v5523 = vunpack.c.l.b16 %v5483
        %v5524 = vunpack.c.h.b16 %v5483
        %v5525 = vunpack.c.l.b16 %v5484
        %v5526 = vunpack.c.h.b16 %v5484
        %v5527 = vunpack.c.l.b16 %v5485
        %v5528 = vunpack.c.h.b16 %v5485
        %v5529 = vunpack.c.l.b16 %v5486
        %v5530 = vunpack.c.h.b16 %v5486
        %v5531 = vunpack.c.l.b16 %v5487
        %v5532 = vunpack.c.h.b16 %v5487
        %v5533 = vunpack.c.l.b16 %v5488
        %v5534 = vunpack.c.h.b16 %v5488
        %v5535 = vunpack.c.l.b16 %v5489
        %v5536 = vunpack.c.h.b16 %v5489
        %v5537 = vunpack.c.l.b16 %v5490
        %v5538 = vunpack.c.h.b16 %v5490
        %v5539 = vpack.c.b16 %v5507, %v5507
        %v5540 = vpack.c.b16 %v5508, %v5508
        %v5541 = vpack.c.b16 %v5509, %v5509
        %v5542 = vpack.c.b16 %v5510, %v5510
        %v5543 = vpack.c.b16 %v5511, %v5511
        %v5544 = vpack.c.b16 %v5512, %v5512
        %v5545 = vpack.c.b16 %v5513, %v5513
        %v5546 = vpack.c.b16 %v5514, %v5514
        %v5547 = vpack.c.b16 %v5515, %v5515
        %v5548 = vpack.c.b16 %v5516, %v5516
        %v5549 = vpack.c.b16 %v5517, %v5517
        %v5550 = vpack.c.b16 %v5518, %v5518
        %v5551 = vpack.c.b16 %v5519, %v5519
        %v5552 = vpack.c.b16 %v5520, %v5520
        %v5553 = vpack.c.b16 %v5521, %v5521
        %v5554 = vpack.c.b16 %v5522, %v5522
        %v5555 = vpack.c.b16 %v5523, %v5523
        %v5556 = vpack.c.b16 %v5524, %v5524
        %v5557 = vpack.c.b16 %v5525, %v5525
        %v5558 = vpack.c.b16 %v5526, %v5526
        %v5559 = vpack.c.b16 %v5527, %v5527
        %v5560 = vpack.c.b16 %v5528, %v5528
        %v5561 = vpack.c.b16 %v5529, %v5529
        %v5562 = vpack.c.b16 %v5530, %v5530
        %v5563 = vpack.c.b16 %v5531, %v5531
        %v5564 = vpack.c.b16 %v5532, %v5532
        %v5565 = vpack.c.b16 %v5533, %v5533
        %v5566 = vpack.c.b16 %v5534, %v5534
        %v5567 = vpack.c.b16 %v5535, %v5535
        %v5568 = vpack.c.b16 %v5536, %v5536
        %v5569 = vpack.c.b16 %v5537, %v5537
        %v5570 = vpack.c.b16 %v5538, %v5538
        %vm5603 = vcmask 519168
        %5604 = vst.msk [vmem:[%s458] sm:$0xf] %vm5603, %v5539
        %5605 = vst.msk [vmem:[%s458 + $0x4] sm:$0xf] %vm5603, %v5540
        %5606 = vst.msk [vmem:[%s458 + $0x8] sm:$0xf] %vm5603, %v5541
        %5607 = vst.msk [vmem:[%s458 + $0xc] sm:$0xf] %vm5603, %v5542
        %5608 = vst.msk [vmem:[%s458 + $0x10] sm:$0xf] %vm5603, %v5543
        %5609 = vst.msk [vmem:[%s458 + $0x14] sm:$0xf] %vm5603, %v5544
        %5610 = vst.msk [vmem:[%s458 + $0x18] sm:$0xf] %vm5603, %v5545
        %5611 = vst.msk [vmem:[%s458 + $0x1c] sm:$0xf] %vm5603, %v5546
        %5612 = vst.msk [vmem:[%s458 + $0x20] sm:$0xf] %vm5603, %v5547
        %5613 = vst.msk [vmem:[%s458 + $0x24] sm:$0xf] %vm5603, %v5548
        %5614 = vst.msk [vmem:[%s458 + $0x28] sm:$0xf] %vm5603, %v5549
        %5615 = vst.msk [vmem:[%s458 + $0x2c] sm:$0xf] %vm5603, %v5550
        %5616 = vst.msk [vmem:[%s458 + $0x30] sm:$0xf] %vm5603, %v5551
        %5617 = vst.msk [vmem:[%s458 + $0x34] sm:$0xf] %vm5603, %v5552
        %5618 = vst.msk [vmem:[%s458 + $0x38] sm:$0xf] %vm5603, %v5553
        %5619 = vst.msk [vmem:[%s458 + $0x3c] sm:$0xf] %vm5603, %v5554
        %5620 = vst.msk [vmem:[%s458 + $0x40] sm:$0xf] %vm5603, %v5555
        %5621 = vst.msk [vmem:[%s458 + $0x44] sm:$0xf] %vm5603, %v5556
        %5622 = vst.msk [vmem:[%s458 + $0x48] sm:$0xf] %vm5603, %v5557
        %5623 = vst.msk [vmem:[%s458 + $0x4c] sm:$0xf] %vm5603, %v5558
        %5624 = vst.msk [vmem:[%s458 + $0x50] sm:$0xf] %vm5603, %v5559
        %5625 = vst.msk [vmem:[%s458 + $0x54] sm:$0xf] %vm5603, %v5560
        %5626 = vst.msk [vmem:[%s458 + $0x58] sm:$0xf] %vm5603, %v5561
        %5627 = vst.msk [vmem:[%s458 + $0x5c] sm:$0xf] %vm5603, %v5562
        %5628 = vst.msk [vmem:[%s458 + $0x60] sm:$0xf] %vm5603, %v5563
        %5629 = vst.msk [vmem:[%s458 + $0x64] sm:$0xf] %vm5603, %v5564
        %5630 = vst.msk [vmem:[%s458 + $0x68] sm:$0xf] %vm5603, %v5565
        %5631 = vst.msk [vmem:[%s458 + $0x6c] sm:$0xf] %vm5603, %v5566
        %5632 = vst.msk [vmem:[%s458 + $0x70] sm:$0xf] %vm5603, %v5567
        %5633 = vst.msk [vmem:[%s458 + $0x74] sm:$0xf] %vm5603, %v5568
        %5634 = vst.msk [vmem:[%s458 + $0x78] sm:$0xf] %vm5603, %v5569
        %5635 = vst.msk [vmem:[%s458 + $0x7c] sm:$0xf] %vm5603, %v5570
        %s5636 = sand.u32 %s316, 1
        %s5637 = scalar_lea.sflag [#allocation5], %s5636
        %s5638 = sand.u32 %s316, 1
        %s5639 = smul.addr %s5638, 128
        %s5640 = scalar_lea.vmem [#allocation6], %s5639
        // Predicated region
        $region77: #{tpu_custom_call.1} parent=71 // pred_check
          %p5641 = pneg %p326
        $region78: #{tpu_custom_call.1} parent=71 // pred_check_branch
          %5643 = sbr.rel (%p5641) target = $region80
        $region79: #{tpu_custom_call.1} parent=71 // pred_region
          %s5645 = ssub.s32 2048, 2048
          %5646 = vsyncadd %s5637, %s5645
          %s5647 = smul.addr %s30, 32
          %s5648 = smul.addr %s5647, 64
          %s5649 = scalar_lea.hbm %s13, %s5648
          %s5650 = sshll.u32 %s5640, 4
          %s5651 = int_to_ptr.vmem [resolvable:$true] %s5650
          %5656 = dma.vmem_to_hbm [thread:$0]  %s5651, 2048, %s5649, %s5637, 64, 64, 4
        $region80: #{tpu_custom_call.1} parent=71 // pred_fallthru
          _
      $region72: #{tpu_custom_call.1} parent=5 // pred_fallthru
        _
      %p5657 = scmp.le.s32.totalorder 2, %s25
      // Predicated region
      $region81: #{tpu_custom_call.1} parent=5 // pred_check
        %p5658 = pneg %p5657
      $region82: #{tpu_custom_call.1} parent=5 // pred_check_branch
        %5660 = sbr.rel (%p5658) target = $region84
      $region83: #{tpu_custom_call.1} parent=5 // pred_region
        %s5661 = ssub.s32 %s25, 2
        // Predicated region
        $region85: #{tpu_custom_call.1} parent=83 // pred_check
          %p5662 = pneg %p332
        $region86: #{tpu_custom_call.1} parent=83 // pred_check_branch
          %5664 = sbr.rel (%p5662) target = $region88
        $region87: #{tpu_custom_call.1} parent=83 // pred_region
          %s5665 = sand.u32 %s317, 1
          %s5666 = scalar_lea.sflag [#allocation5], %s5665
          %s5667 = sand.u32 %s317, 1
          %s5668 = smul.addr %s5667, 128
          %s5669 = scalar_lea.vmem [#allocation6], %s5668
          %5670 = dma.done %s5666, 2048
        $region88: #{tpu_custom_call.1} parent=83 // pred_fallthru
          _
      $region84: #{tpu_custom_call.1} parent=5 // pred_fallthru
        _
    $region6: #{tpu_custom_call.1} parent=1 // loop_footer
      %s29 = sadd.s32 1, %s25
    $region7: #{tpu_custom_call.1} parent=1 // loop_footer_branch
      %24 = sbr.rel target = $region3
    $region8: #{tpu_custom_call.1} parent=1 // loop_exit
      _
    %5671 = vsyncpa [#allocation4], 1
    %s5672 = scalar_lea.sflag [#allocation4], 1
    %5673 = vsyncpa %s5672, 1
    %5674 = vsyncpa [#allocation5], 1
    %s5675 = scalar_lea.sflag [#allocation5], 1
    %5676 = vsyncpa %s5675, 1

</llo_original>
